<compile_context>
chip_gen: v7x
topology: tpu7x:2x2x1
jax: 0.10.0
libtpu: 0.0.40
codegen_flags: <defaults>
</compile_context>

<pallas_src>
import functools

import jax
import jax.numpy as jnp
import numpy as np
from jax.experimental import pallas as pl
from jax.experimental.pallas import tpu as pltpu

EPS = 1e-5
NEG_SLOPE = 0.01
LANES = 128                 # Cout padded to this -> lane-dense vst / full MXU output tile
                            # TODO(synk): round to 256 on v6e/v7x once real Cout > 128.
M_TILE_MAX = 256            # demo-sized; raise to ~1024-2048 (v5e/v6e) / ~1024 (v7x, 64 MiB VMEM)
Y_CACHE_MAX_BYTES = 8 << 20  # keep y resident in VMEM (skip 2nd matmul) below this size
VMEM_LIMIT_BYTES = 32 << 20  # explicit scoped-VMEM limit, safe on v5e/v6e/v7x


def _round_up(x, m):
    return ((x + m - 1) // m) * m


# ---------------------------------------------------------------------------
# Pallas kernel: matmul -> BatchNorm (training batch stats) -> LeakyReLU(0.01)
# ---------------------------------------------------------------------------
def _conv_bn_lrelu_kernel(x_ref, w_ref, p_ref, rm_ref, o_ref,
                          sum_ref, ssq_ref, *ycache, use_ycache):
    """grid = (2, num_m_tiles); axis 0 = phase (stats / normalize), axis 1 = M tiles.

    x_ref  : (tm, K) bf16      activation columns (K is NOT zero-padded)
    w_ref  : (K, C_pad) bf16   flattened conv weights, resident across the whole grid
    p_ref  : (8, C_pad) f32    rows = [bias, gamma, beta, 1/n, grp2, grp3, 0, 0]
    rm_ref : (tm, 3) f32       per-row BN multiplicities [base, m_pad1, m_pad2]
                               (all 0 for padded M rows -> excluded from the statistics)
    o_ref  : (tm, C_pad)       output (f32 or bf16)
    sum/ssq: (1, C_pad) f32    scratch: per-channel weighted sum / sum of squares
    ycache : optional (num_m_tiles, tm, C_pad) f32 scratch: y kept resident so the
             normalize pass neither redoes the matmul nor re-streams cols.
    """
    phase = pl.program_id(0)
    mtile = pl.program_id(1)
    y_ref = ycache[0] if use_ycache else None

    def matmul():
        # bf16 x bf16 inputs, f32 accumulation on the MXU.
        y = jnp.dot(x_ref[...], w_ref[...], preferred_element_type=jnp.float32)
        return y + p_ref[0:1, :]                     # conv bias (epilogue stays f32)

    @pl.when((phase == 0) & (mtile == 0))
    def _init():
        sum_ref[...] = jnp.zeros_like(sum_ref)
        ssq_ref[...] = jnp.zeros_like(ssq_ref)

    @pl.when(phase == 0)
    def _accumulate():
        y = matmul()
        # Rank-1 reconstruction of the BN multiplicity mask (review: no dense wmask):
        #   wm[r, c] = base[r] + (m1[r]-base[r])*grp2[c] + (m2[r]-base[r])*grp3[c]
        base = rm_ref[:, 0:1]
        wm = (base
              + (rm_ref[:, 1:2] - base) * p_ref[4:5, :]
              + (rm_ref[:, 2:3] - base) * p_ref[5:6, :])
        wy = wm * y
        sum_ref[...] = sum_ref[...] + jnp.sum(wy, axis=0, keepdims=True)
        ssq_ref[...] = ssq_ref[...] + jnp.sum(wy * y, axis=0, keepdims=True)
        if use_ycache:
            y_ref[mtile] = y                         # keep y resident; no placeholder store

    @pl.when(phase == 1)
    def _normalize():
        y = y_ref[mtile] if use_ycache else matmul()
        inv_n = p_ref[3:4, :]
        mean = sum_ref[...] * inv_n
        var = ssq_ref[...] * inv_n - mean * mean     # one-pass E[y^2]-E[y]^2 (f32)
        scale = jax.lax.rsqrt(var + EPS) * p_ref[1:2, :]   # gamma folded into the scale
        yn = (y - mean) * scale + p_ref[2:3, :]
        o_ref[...] = jnp.where(yn > 0.0, yn, NEG_SLOPE * yn).astype(o_ref.dtype)


# ---------------------------------------------------------------------------
# Pallas wrapper
# ---------------------------------------------------------------------------
def conv_bn_lrelu(cols, w_mat, bias, gamma, beta, inv_count,
                  grp2=None, grp3=None, mult1=None, mult2=None,
                  out_dtype=jnp.float32):
    """Fused conv(as matmul) -> BatchNorm2d(training batch stats) -> LeakyReLU(0.01).

    cols        : (M, K)  activation columns (cast to bf16 for the MXU, K unpadded)
    w_mat       : (K, C)  flattened conv weight
    bias/gamma/beta/inv_count : (C,)   (inv_count = 1 / effective BN element count)
    grp2/grp3   : optional (C,) 0/1 indicators of the channel groups whose BN statistics
                  use the pad-1 / pad-2 circular duplication multiplicities mult1/mult2
    mult1/mult2 : optional (M,) per-row duplication multiplicities
    returns     : (M, C) out_dtype
    """
    M, K = cols.shape
    C = w_mat.shape[1]
    C_pad = _round_up(C, LANES)

    tm = min(M_TILE_MAX, _round_up(M, 16))           # bf16 sublane pack: tm % 16 == 0
    M_pad = _round_up(M, tm)
    nm = M_pad // tm

    cols_b = cols.astype(jnp.bfloat16)
    if M_pad != M:
        cols_b = jnp.pad(cols_b, ((0, M_pad - M), (0, 0)))
    w_p = jnp.pad(w_mat.astype(jnp.float32),
                  ((0, 0), (0, C_pad - C))).astype(jnp.bfloat16)

    params = jnp.zeros((8, C_pad), jnp.float32)
    params = params.at[0, :C].set(bias.astype(jnp.float32))
    params = params.at[1, :C].set(gamma.astype(jnp.float32))
    params = params.at[2, :C].set(beta.astype(jnp.float32))
    params = params.at[3, :].set(1.0)
    params = params.at[3, :C].set(inv_count.astype(jnp.float32))
    if grp2 is not None:
        params = params.at[4, :C].set(grp2.astype(jnp.float32))
    if grp3 is not None:
        params = params.at[5, :C].set(grp3.astype(jnp.float32))

    rm = jnp.zeros((M_pad, 3), jnp.float32)           # padded M rows keep weight 0
    rm = rm.at[:M, 0].set(1.0)
    rm = rm.at[:M, 1].set(1.0 if mult1 is None else mult1.astype(jnp.float32))
    rm = rm.at[:M, 2].set(1.0 if mult2 is None else mult2.astype(jnp.float32))

    # When y fits in VMEM, cache it in phase 0 and skip the second matmul in phase 1.
    use_ycache = (M_pad * C_pad * 4) <= Y_CACHE_MAX_BYTES

    x_map = (lambda ph, m: (m * (1 - ph), 0)) if use_ycache else (lambda ph, m: (m, 0))
    rm_map = lambda ph, m: (m * (1 - ph), 0)          # stats pass only; pinned in phase 1
    o_map = lambda ph, m: (ph * m, 0)                 # phase 0 collapses -> no placeholder DMA

    scratch = [pltpu.VMEM((1, C_pad), jnp.float32),
               pltpu.VMEM((1, C_pad), jnp.float32)]
    if use_ycache:
        scratch.append(pltpu.VMEM((nm, tm, C_pad), jnp.float32))

    kernel = functools.partial(_conv_bn_lrelu_kernel, use_ycache=use_ycache)
    # TODO(synk): on v7x add a "parallel" channel-tile grid axis (BN stats are per-channel,
    # so a channel split needs no cross-core reduction) to use the second TensorCore.
    y = pl.pallas_call(
        kernel,
        out_shape=jax.ShapeDtypeStruct((M_pad, C_pad), out_dtype),
        grid=(2, nm),
        in_specs=[
            pl.BlockSpec((tm, K), x_map),
            pl.BlockSpec((K, C_pad), lambda ph, m: (0, 0)),
            pl.BlockSpec((8, C_pad), lambda ph, m: (0, 0)),
            pl.BlockSpec((tm, 3), rm_map),
        ],
        out_specs=pl.BlockSpec((tm, C_pad), o_map),
        scratch_shapes=scratch,
        compiler_params=pltpu.CompilerParams(
            dimension_semantics=("arbitrary", "arbitrary"),
            vmem_limit_bytes=VMEM_LIMIT_BYTES),
    )(cols_b, w_p, params, rm)
    return y[:M, :C]


# ---------------------------------------------------------------------------
# Plain-JAX glue (layout plumbing only)
# ---------------------------------------------------------------------------
def _w_mat(w_oihw):
    cout = w_oihw.shape[0]
    return jnp.transpose(w_oihw, (2, 3, 1, 0)).reshape(-1, cout)   # (kh*kw*cin, cout)


def _pad_circ(x_nhwc, p):
    return jnp.pad(x_nhwc, ((0, 0), (p, p), (p, p), (0, 0)), mode="wrap")


def _im2col(x_nhwc, k):
    """Valid k x k patches, NHWC -> (N*Ho*Wo, k*k*C), column order (kh, kw, c)."""
    # TODO(synk): build these patches inside the kernel (halo row blocks + per-tap matmul
    # accumulation) to avoid the k^2 HBM inflation for large images.
    N, Hp, Wp, C = x_nhwc.shape
    Ho, Wo = Hp - k + 1, Wp - k + 1
    cols = jnp.concatenate(
        [x_nhwc[:, i:i + Ho, j:j + Wo, :] for i in range(k) for j in range(k)], axis=-1)
    return cols.reshape(N * Ho * Wo, k * k * C)


def _circ_mult(L, p):
    """Multiplicity of each original index in a circular pad-by-p axis of length L."""
    m = np.ones((L,), np.float32)
    m[:p] += 1.0
    m[L - p:] += 1.0
    return m


def _maxpool3_circ(x_nhwc):
    """3x3/stride-1 max-pool of the circularly pad-by-1 input (tiny M x C plain-JAX op)."""
    N, H, W, _ = x_nhwc.shape
    xp = _pad_circ(x_nhwc, 1)
    mp = xp[:, 0:H, 0:W, :]
    for i in range(3):
        for j in range(3):
            if i == 0 and j == 0:
                continue
            mp = jnp.maximum(mp, xp[:, i:i + H, j:j + W, :])
    return mp


def inception_forward(x_nchw, params):
    x = jnp.transpose(x_nchw, (0, 2, 3, 1)).astype(jnp.float32)    # NCHW -> NHWC
    N, H, W, Cin = x.shape
    M = N * H * W

    p1, p2r, p2o = params["b1"], params["b2_red"], params["b2_out"]
    p3r, p3o, p4 = params["b3_red"], params["b3_out"], params["b4"]
    c1, c2, c3, c4 = (p1["w"].shape[0], p2r["w"].shape[0],
                      p3r["w"].shape[0], p4["w"].shape[0])

    # ---- Stage 1: ALL four 1x1 convs merged into one matmul over the unpadded grid.
    #  * Circular padding only duplicates pixels and 1x1-conv/BN/LeakyReLU are pointwise,
    #    so the reference's padded-tensor BN statistics are reproduced exactly via per-row
    #    duplication multiplicities (rank-1, rebuilt in-kernel) + padded element counts.
    #  * Branch 4: [x | maxpool(x)] along K with block-diagonal weights folds the
    #    1x1-after-maxpool into the same matmul (no 9-tap materialization).
    mp = _maxpool3_circ(x)
    cols1 = jnp.concatenate([x.reshape(M, Cin), mp.reshape(M, Cin)], axis=-1)   # (M, 2*Cin)

    w_merged = jnp.concatenate(
        [jnp.concatenate([_w_mat(p1["w"]), _w_mat(p2r["w"]), _w_mat(p3r["w"]),
                          jnp.zeros((Cin, c4), jnp.float32)], axis=1),
         jnp.concatenate([jnp.zeros((Cin, c1 + c2 + c3), jnp.float32),
                          _w_mat(p4["w"])], axis=1)], axis=0)                   # (2*Cin, Ctot)

    bias_m = jnp.concatenate([p1["b"], p2r["b"], p3r["b"], p4["b"]])
    gamma_m = jnp.concatenate([p1["gamma"], p2r["gamma"], p3r["gamma"], p4["gamma"]])
    beta_m = jnp.concatenate([p1["beta"], p2r["beta"], p3r["beta"], p4["beta"]])

    n0 = float(M)
    n1 = float(N * (H + 2) * (W + 2))       # branch2-reduce runs on the pad-1 tensor
    n2 = float(N * (H + 4) * (W + 4))       # branch3-reduce runs on the pad-2 tensor
    ctot = c1 + c2 + c3 + c4
    inv_cnt = np.concatenate([np.full(c1, 1.0 / n0, np.float32),
                              np.full(c2, 1.0 / n1, np.float32),
                              np.full(c3, 1.0 / n2, np.float32),
                              np.full(c4, 1.0 / n0, np.float32)])
    grp2 = np.zeros((ctot,), np.float32); grp2[c1:c1 + c2] = 1.0
    grp3 = np.zeros((ctot,), np.float32); grp3[c1 + c2:c1 + c2 + c3] = 1.0
    m1 = np.tile(np.outer(_circ_mult(H, 1), _circ_mult(W, 1)).reshape(-1), N)
    m2 = np.tile(np.outer(_circ_mult(H, 2), _circ_mult(W, 2)).reshape(-1), N)

    y1 = conv_bn_lrelu(cols1, w_merged, bias_m, gamma_m, beta_m,
                       jnp.asarray(inv_cnt),
                       grp2=jnp.asarray(grp2), grp3=jnp.asarray(grp3),
                       mult1=jnp.asarray(m1), mult2=jnp.asarray(m2),
                       out_dtype=jnp.bfloat16)        # bf16: feeds stage 2's bf16 matmul
    b1 = y1[:, :c1]
    b2r = y1[:, c1:c1 + c2].reshape(N, H, W, c2)
    b3r = y1[:, c1 + c2:c1 + c2 + c3].reshape(N, H, W, c3)
    b4 = y1[:, c1 + c2 + c3:ctot]

    # ---- Stage 2: branch2's 3x3 and branch3's 5x5 conv_blocks share ONE pallas_call
    # (concatenated-K block-diagonal weights, one shared C_pad).  BN stats are over M.
    cols2 = jnp.concatenate([_im2col(_pad_circ(b2r, 1), 3),
                             _im2col(_pad_circ(b3r, 2), 5)], axis=-1)   # (M, 9*c2 + 25*c3)
    w2 = _w_mat(p2o["w"])
    w3 = _w_mat(p3o["w"])
    k2, o2 = w2.shape
    k3, o3 = w3.shape
    w_blk = jnp.zeros((k2 + k3, o2 + o3), jnp.float32)
    w_blk = w_blk.at[:k2, :o2].set(w2)
    w_blk = w_blk.at[k2:, o2:].set(w3)

    y2 = conv_bn_lrelu(cols2, w_blk,
                       jnp.concatenate([p2o["b"], p3o["b"]]),
                       jnp.concatenate([p2o["gamma"], p3o["gamma"]]),
                       jnp.concatenate([p2o["beta"], p3o["beta"]]),
                       jnp.full((o2 + o3,), 1.0 / M, jnp.float32))
    b2 = y2[:, :o2]
    b3 = y2[:, o2:o2 + o3]

    out = jnp.concatenate([b1.astype(jnp.float32), b2, b3, b4.astype(jnp.float32)], axis=-1)
    out = out.reshape(N, H, W, -1)
    return jnp.transpose(out, (0, 3, 1, 2))                            # NHWC -> NCHW


# ---------------------------------------------------------------------------
# Pure-JAX reference (independent of the kernels) for a numerical sanity check
# ---------------------------------------------------------------------------
def ref_conv_block(x_nchw, p):
    y = jax.lax.conv_general_dilated(
        x_nchw, p["w"], (1, 1), "VALID",
        dimension_numbers=("NCHW", "OIHW", "NCHW"),
        precision=jax.lax.Precision.HIGHEST,
    ) + p["b"][None, :, None, None]
    m = jnp.mean(y, axis=(0, 2, 3), keepdims=True)
    v = jnp.mean((y - m) ** 2, axis=(0, 2, 3), keepdims=True)
    yn = (y - m) / jnp.sqrt(v + EPS)
    yn = yn * p["gamma"][None, :, None, None] + p["beta"][None, :, None, None]
    return jnp.where(yn > 0, yn, NEG_SLOPE * yn)


def ref_forward(x, params):
    def pad_circ(x, p):
        return jnp.pad(x, ((0, 0), (0, 0), (p, p), (p, p)), mode="wrap")

    b1 = ref_conv_block(x, params["b1"])
    b2 = ref_conv_block(ref_conv_block(pad_circ(x, 1), params["b2_red"]), params["b2_out"])
    b3 = ref_conv_block(ref_conv_block(pad_circ(x, 2), params["b3_red"]), params["b3_out"])
    mpool = jax.lax.reduce_window(pad_circ(x, 1), -jnp.inf, jax.lax.max,
                                  (1, 1, 3, 3), (1, 1, 1, 1), "VALID")
    b4 = ref_conv_block(mpool, params["b4"])
    return jnp.concatenate([b1, b2, b3, b4], axis=1)


# ---------------------------------------------------------------------------
# Deterministic parameter init (conv_block: conv weight/bias + BN gamma/beta)
# ---------------------------------------------------------------------------
def init_conv_block(key, cin, cout, k):
    k1, k2, k3, k4 = jax.random.split(key, 4)
    fan_in = cin * k * k
    return dict(
        w=jax.random.normal(k1, (cout, cin, k, k), jnp.float32) / jnp.sqrt(fan_in),
        b=0.1 * jax.random.normal(k2, (cout,), jnp.float32),
        gamma=1.0 + 0.1 * jax.random.normal(k3, (cout,), jnp.float32),
        beta=0.1 * jax.random.normal(k4, (cout,), jnp.float32),
    )


if __name__ == "__main__":
    key = jax.random.PRNGKey(0)
    kx, k1, k2a, k2b, k3a, k3b, k4 = jax.random.split(key, 7)

    # Inception_block(in_channels=4, out_1x1=4, red_3x3=4, out_3x3=8,
    #                 red_5x5=2, out_5x5=4, out_1x1pool=4)
    in_ch, out_1x1, red_3x3, out_3x3, red_5x5, out_5x5, out_pool = 4, 4, 4, 8, 2, 4, 4
    N, H, W = 2, 16, 16

    params = {
        "b1": init_conv_block(k1, in_ch, out_1x1, 1),
        "b2_red": init_conv_block(k2a, in_ch, red_3x3, 1),
        "b2_out": init_conv_block(k2b, red_3x3, out_3x3, 3),
        "b3_red": init_conv_block(k3a, in_ch, red_5x5, 1),
        "b3_out": init_conv_block(k3b, red_5x5, out_5x5, 5),
        "b4": init_conv_block(k4, in_ch, out_pool, 1),
    }

    x = jax.random.normal(kx, (N, in_ch, H, W), jnp.float32)

    out = jax.jit(inception_forward)(x, params)
    out = jax.block_until_ready(out)
    assert out.shape == (N, out_1x1 + out_3x3 + out_5x5 + out_pool, H, W)

    ref = jax.block_until_ready(ref_forward(x, params))
    # bf16 MXU inputs / bf16 stage-1 intermediate vs the f32 HIGHEST-precision reference.
    np.testing.assert_allclose(np.asarray(out), np.asarray(ref), rtol=2e-2, atol=2e-2)

    print("KERNEL_OK")
</pallas_src>

<mosaic_0001>
module attributes {stable_mosaic.version = 11 : i64} {
  func.func @_conv_bn_lrelu_kernel(%arg0: i32, %arg1: i32, %arg2: memref<256x8xbf16, #tpu.memory_space<vmem>>, %arg3: memref<8x128xbf16, #tpu.memory_space<vmem>>, %arg4: memref<8x128xf32, #tpu.memory_space<vmem>>, %arg5: memref<256x3xf32, #tpu.memory_space<vmem>>, %arg6: memref<256x128xbf16, #tpu.memory_space<vmem>>, %arg7: memref<1x128xf32, #tpu.memory_space<vmem>>, %arg8: memref<1x128xf32, #tpu.memory_space<vmem>>, %arg9: memref<2x256x128xf32, #tpu.memory_space<vmem>>) attributes {dimension_semantics = [#tpu.dimension_semantics<arbitrary>, #tpu.dimension_semantics<arbitrary>], iteration_bounds = array<i64: 2, 2>, scalar_prefetch = 0 : i64, scratch_operands = 3 : i64, tpu.core_type = #tpu.core_type<tc>, window_params = [{transform_indices = @transform_0, window_bounds = array<i64: 256, 8>}, {pipeline_mode = #tpu.pipeline_mode<synchronous>, transform_indices = @transform_1, window_bounds = array<i64: 8, 128>}, {pipeline_mode = #tpu.pipeline_mode<synchronous>, transform_indices = @transform_2, window_bounds = array<i64: 8, 128>}, {transform_indices = @transform_3, window_bounds = array<i64: 256, 3>}, {transform_indices = @transform_4, window_bounds = array<i64: 256, 128>}]} {
    %c0_i32 = arith.constant 0 : i32
    %0 = arith.cmpi eq, %arg0, %c0_i32 : i32
    %c0_i32_0 = arith.constant 0 : i32
    %1 = arith.cmpi eq, %arg1, %c0_i32_0 : i32
    %2 = arith.andi %0, %1 : i1
    %3 = arith.extui %2 : i1 to i32
    %c0_i32_1 = arith.constant 0 : i32
    %4 = arith.cmpi ne, %3, %c0_i32_1 : i32
    scf.if %4 {
      %cst = arith.constant 0.000000e+00 : f32
      %11 = vector.broadcast %cst : f32 to vector<1x128xf32>
      %c0 = arith.constant 0 : index
      %c0_5 = arith.constant 0 : index
      %12 = vector.load %arg7[%c0, %c0_5] : memref<1x128xf32, #tpu.memory_space<vmem>>, vector<1x128xf32>
      tpu.vector_store %arg7[%c0, %c0_5], %11 {strides = array<i32>} : memref<1x128xf32, #tpu.memory_space<vmem>>, vector<1x128xf32>,
      %cst_6 = arith.constant 0.000000e+00 : f32
      %13 = vector.broadcast %cst_6 : f32 to vector<1x128xf32>
      %c0_7 = arith.constant 0 : index
      %c0_8 = arith.constant 0 : index
      %14 = vector.load %arg8[%c0_7, %c0_8] : memref<1x128xf32, #tpu.memory_space<vmem>>, vector<1x128xf32>
      tpu.vector_store %arg8[%c0_7, %c0_8], %13 {strides = array<i32>} : memref<1x128xf32, #tpu.memory_space<vmem>>, vector<1x128xf32>,
    } else {
    }
    %c0_i32_2 = arith.constant 0 : i32
    %5 = arith.cmpi eq, %arg0, %c0_i32_2 : i32
    %6 = arith.extui %5 : i1 to i32
    %c0_i32_3 = arith.constant 0 : i32
    %7 = arith.cmpi ne, %6, %c0_i32_3 : i32
    scf.if %7 {
      %c0 = arith.constant 0 : index
      %c0_5 = arith.constant 0 : index
      %11 = vector.load %arg2[%c0, %c0_5] : memref<256x8xbf16, #tpu.memory_space<vmem>>, vector<256x8xbf16>
      %c0_6 = arith.constant 0 : index
      %c0_7 = arith.constant 0 : index
      %12 = vector.load %arg3[%c0_6, %c0_7] : memref<8x128xbf16, #tpu.memory_space<vmem>>, vector<8x128xbf16>
      %cst = arith.constant dense<0.000000e+00> : vector<256x128xf32>
      %13 = tpu.matmul %11, %12, %cst {dimension_numbers = #tpu.dot_dimension_numbers<[1], [0], [0], [1], [0, 0, 1, 1], [], []>} : vector<256x8xbf16>, vector<8x128xbf16>, vector<256x128xf32> -> vector<256x128xf32>
      %c0_8 = arith.constant 0 : index
      %c0_9 = arith.constant 0 : index
      %14 = vector.load %arg4[%c0_8, %c0_9] : memref<8x128xf32, #tpu.memory_space<vmem>>, vector<1x128xf32>
      %15 = vector.broadcast %14 : vector<1x128xf32> to vector<256x128xf32>
      %16 = arith.addf %13, %15 : vector<256x128xf32>
      %c0_10 = arith.constant 0 : index
      %c0_11 = arith.constant 0 : index
      %17 = vector.load %arg5[%c0_10, %c0_11] : memref<256x3xf32, #tpu.memory_space<vmem>>, vector<256x1xf32>
      %c0_12 = arith.constant 0 : index
      %c1 = arith.constant 1 : index
      %18 = vector.load %arg5[%c0_12, %c1] : memref<256x3xf32, #tpu.memory_space<vmem>>, vector<256x1xf32>
      %19 = arith.subf %18, %17 : vector<256x1xf32>
      %c4 = arith.constant 4 : index
      %c0_13 = arith.constant 0 : index
      %20 = vector.load %arg4[%c4, %c0_13] : memref<8x128xf32, #tpu.memory_space<vmem>>, vector<1x128xf32>
      %21 = vector.broadcast %19 : vector<256x1xf32> to vector<256x128xf32>
      %22 = vector.broadcast %20 : vector<1x128xf32> to vector<256x128xf32>
      %23 = arith.mulf %21, %22 : vector<256x128xf32>
      %24 = vector.broadcast %17 : vector<256x1xf32> to vector<256x128xf32>
      %25 = arith.addf %24, %23 : vector<256x128xf32>
      %c0_14 = arith.constant 0 : index
      %c2 = arith.constant 2 : index
      %26 = vector.load %arg5[%c0_14, %c2] : memref<256x3xf32, #tpu.memory_space<vmem>>, vector<256x1xf32>
      %27 = arith.subf %26, %17 : vector<256x1xf32>
      %c5 = arith.constant 5 : index
      %c0_15 = arith.constant 0 : index
      %28 = vector.load %arg4[%c5, %c0_15] : memref<8x128xf32, #tpu.memory_space<vmem>>, vector<1x128xf32>
      %29 = vector.broadcast %27 : vector<256x1xf32> to vector<256x128xf32>
      %30 = vector.broadcast %28 : vector<1x128xf32> to vector<256x128xf32>
      %31 = arith.mulf %29, %30 : vector<256x128xf32>
      %32 = arith.addf %25, %31 : vector<256x128xf32>
      %33 = arith.mulf %32, %16 : vector<256x128xf32>
      %c0_16 = arith.constant 0 : index
      %c0_17 = arith.constant 0 : index
      %34 = vector.load %arg7[%c0_16, %c0_17] : memref<1x128xf32, #tpu.memory_space<vmem>>, vector<1x128xf32>
      %cst_18 = arith.constant dense<0.000000e+00> : vector<128xf32>
      %35 = vector.multi_reduction <add>, %33, %cst_18 [0] : vector<256x128xf32> to vector<128xf32>
      %36 = vector.shape_cast %35 : vector<128xf32> to vector<1x128xf32>
      %37 = arith.addf %34, %36 : vector<1x128xf32>
      %c0_19 = arith.constant 0 : index
      %c0_20 = arith.constant 0 : index
      %38 = vector.load %arg7[%c0_19, %c0_20] : memref<1x128xf32, #tpu.memory_space<vmem>>, vector<1x128xf32>
      tpu.vector_store %arg7[%c0_19, %c0_20], %37 {strides = array<i32>} : memref<1x128xf32, #tpu.memory_space<vmem>>, vector<1x128xf32>,
      %c0_21 = arith.constant 0 : index
      %c0_22 = arith.constant 0 : index
      %39 = vector.load %arg8[%c0_21, %c0_22] : memref<1x128xf32, #tpu.memory_space<vmem>>, vector<1x128xf32>
      %40 = arith.mulf %33, %16 : vector<256x128xf32>
      %cst_23 = arith.constant dense<0.000000e+00> : vector<128xf32>
      %41 = vector.multi_reduction <add>, %40, %cst_23 [0] : vector<256x128xf32> to vector<128xf32>
      %42 = vector.shape_cast %41 : vector<128xf32> to vector<1x128xf32>
      %43 = arith.addf %39, %42 : vector<1x128xf32>
      %c0_24 = arith.constant 0 : index
      %c0_25 = arith.constant 0 : index
      %44 = vector.load %arg8[%c0_24, %c0_25] : memref<1x128xf32, #tpu.memory_space<vmem>>, vector<1x128xf32>
      tpu.vector_store %arg8[%c0_24, %c0_25], %43 {strides = array<i32>} : memref<1x128xf32, #tpu.memory_space<vmem>>, vector<1x128xf32>,
      %45 = arith.index_cast %arg1 : i32 to index
      %c0_26 = arith.constant 0 : index
      %c0_27 = arith.constant 0 : index
      %46 = vector.load %arg9[%45, %c0_26, %c0_27] : memref<2x256x128xf32, #tpu.memory_space<vmem>>, vector<1x256x128xf32>
      %47 = vector.shape_cast %46 : vector<1x256x128xf32> to vector<256x128xf32>
      %48 = vector.shape_cast %16 : vector<256x128xf32> to vector<1x256x128xf32>
      tpu.vector_store %arg9[%45, %c0_26, %c0_27], %48 {strides = array<i32>} : memref<2x256x128xf32, #tpu.memory_space<vmem>>, vector<1x256x128xf32>,
    } else {
    }
    %c1_i32 = arith.constant 1 : i32
    %8 = arith.cmpi eq, %arg0, %c1_i32 : i32
    %9 = arith.extui %8 : i1 to i32
    %c0_i32_4 = arith.constant 0 : i32
    %10 = arith.cmpi ne, %9, %c0_i32_4 : i32
    scf.if %10 {
      %11 = arith.index_cast %arg1 : i32 to index
      %c0 = arith.constant 0 : index
      %c0_5 = arith.constant 0 : index
      %12 = vector.load %arg9[%11, %c0, %c0_5] : memref<2x256x128xf32, #tpu.memory_space<vmem>>, vector<1x256x128xf32>
      %13 = vector.shape_cast %12 : vector<1x256x128xf32> to vector<256x128xf32>
      %c3 = arith.constant 3 : index
      %c0_6 = arith.constant 0 : index
      %14 = vector.load %arg4[%c3, %c0_6] : memref<8x128xf32, #tpu.memory_space<vmem>>, vector<1x128xf32>
      %c0_7 = arith.constant 0 : index
      %c0_8 = arith.constant 0 : index
      %15 = vector.load %arg7[%c0_7, %c0_8] : memref<1x128xf32, #tpu.memory_space<vmem>>, vector<1x128xf32>
      %16 = arith.mulf %15, %14 : vector<1x128xf32>
      %c0_9 = arith.constant 0 : index
      %c0_10 = arith.constant 0 : index
      %17 = vector.load %arg8[%c0_9, %c0_10] : memref<1x128xf32, #tpu.memory_space<vmem>>, vector<1x128xf32>
      %18 = arith.mulf %17, %14 : vector<1x128xf32>
      %19 = arith.mulf %16, %16 : vector<1x128xf32>
      %20 = arith.subf %18, %19 : vector<1x128xf32>
      %cst = arith.constant 9.99999974E-6 : f32
      %21 = vector.broadcast %cst : f32 to vector<1x128xf32>
      %22 = arith.addf %20, %21 : vector<1x128xf32>
      %23 = math.rsqrt %22 : vector<1x128xf32>
      %c1 = arith.constant 1 : index
      %c0_11 = arith.constant 0 : index
      %24 = vector.load %arg4[%c1, %c0_11] : memref<8x128xf32, #tpu.memory_space<vmem>>, vector<1x128xf32>
      %25 = arith.mulf %23, %24 : vector<1x128xf32>
      %26 = vector.broadcast %16 : vector<1x128xf32> to vector<256x128xf32>
      %27 = arith.subf %13, %26 : vector<256x128xf32>
      %28 = vector.broadcast %25 : vector<1x128xf32> to vector<256x128xf32>
      %29 = arith.mulf %27, %28 : vector<256x128xf32>
      %c2 = arith.constant 2 : index
      %c0_12 = arith.constant 0 : index
      %30 = vector.load %arg4[%c2, %c0_12] : memref<8x128xf32, #tpu.memory_space<vmem>>, vector<1x128xf32>
      %31 = vector.broadcast %30 : vector<1x128xf32> to vector<256x128xf32>
      %32 = arith.addf %29, %31 : vector<256x128xf32>
      %cst_13 = arith.constant 0.000000e+00 : f32
      %33 = vector.broadcast %cst_13 : f32 to vector<256x128xf32>
      %34 = arith.cmpf ogt, %32, %33 : vector<256x128xf32>
      %cst_14 = arith.constant 0.00999999977 : f32
      %35 = vector.broadcast %cst_14 : f32 to vector<256x128xf32>
      %36 = arith.mulf %35, %32 : vector<256x128xf32>
      %37 = arith.select %34, %32, %36 : vector<256x128xi1>, vector<256x128xf32>
      %38 = arith.truncf %37 : vector<256x128xf32> to vector<256x128xbf16>
      %c0_15 = arith.constant 0 : index
      %c0_16 = arith.constant 0 : index
      %39 = vector.load %arg6[%c0_15, %c0_16] : memref<256x128xbf16, #tpu.memory_space<vmem>>, vector<256x128xbf16>
      tpu.vector_store %arg6[%c0_15, %c0_16], %38 {strides = array<i32>} : memref<256x128xbf16, #tpu.memory_space<vmem>>, vector<256x128xbf16>,
    } else {
    }
    return
  }
  func.func @transform_0(%arg0: i32, %arg1: i32) -> (i32, i32) {
    %c1_i32 = arith.constant 1 : i32
    %0 = arith.subi %c1_i32, %arg0 : i32
    %1 = arith.muli %arg1, %0 : i32
    %c0_i32 = arith.constant 0 : i32
    %c0_i32_0 = arith.constant 0 : i32
    return %1, %c0_i32 : i32, i32
  }
  func.func @transform_1(%arg0: i32, %arg1: i32) -> (i32, i32) {
    %c0_i32 = arith.constant 0 : i32
    %c0_i32_0 = arith.constant 0 : i32
    %c0_i32_1 = arith.constant 0 : i32
    return %c0_i32, %c0_i32_0 : i32, i32
  }
  func.func @transform_2(%arg0: i32, %arg1: i32) -> (i32, i32) {
    %c0_i32 = arith.constant 0 : i32
    %c0_i32_0 = arith.constant 0 : i32
    %c0_i32_1 = arith.constant 0 : i32
    return %c0_i32, %c0_i32_0 : i32, i32
  }
  func.func @transform_3(%arg0: i32, %arg1: i32) -> (i32, i32) {
    %c1_i32 = arith.constant 1 : i32
    %0 = arith.subi %c1_i32, %arg0 : i32
    %1 = arith.muli %arg1, %0 : i32
    %c0_i32 = arith.constant 0 : i32
    %c0_i32_0 = arith.constant 0 : i32
    return %1, %c0_i32 : i32, i32
  }
  func.func @transform_4(%arg0: i32, %arg1: i32) -> (i32, i32) {
    %0 = arith.muli %arg0, %arg1 : i32
    %c0_i32 = arith.constant 0 : i32
    %c0_i32_0 = arith.constant 0 : i32
    return %0, %c0_i32 : i32, i32
  }
}

module attributes {stable_mosaic.version = 11 : i64} {
  func.func @_conv_bn_lrelu_kernel(%arg0: i32, %arg1: i32, %arg2: memref<256x86xbf16, #tpu.memory_space<vmem>>, %arg3: memref<86x128xbf16, #tpu.memory_space<vmem>>, %arg4: memref<8x128xf32, #tpu.memory_space<vmem>>, %arg5: memref<256x3xf32, #tpu.memory_space<vmem>>, %arg6: memref<256x128xf32, #tpu.memory_space<vmem>>, %arg7: memref<1x128xf32, #tpu.memory_space<vmem>>, %arg8: memref<1x128xf32, #tpu.memory_space<vmem>>, %arg9: memref<2x256x128xf32, #tpu.memory_space<vmem>>) attributes {dimension_semantics = [#tpu.dimension_semantics<arbitrary>, #tpu.dimension_semantics<arbitrary>], iteration_bounds = array<i64: 2, 2>, scalar_prefetch = 0 : i64, scratch_operands = 3 : i64, tpu.core_type = #tpu.core_type<tc>, window_params = [{transform_indices = @transform_0, window_bounds = array<i64: 256, 86>}, {pipeline_mode = #tpu.pipeline_mode<synchronous>, transform_indices = @transform_1, window_bounds = array<i64: 86, 128>}, {pipeline_mode = #tpu.pipeline_mode<synchronous>, transform_indices = @transform_2, window_bounds = array<i64: 8, 128>}, {transform_indices = @transform_3, window_bounds = array<i64: 256, 3>}, {transform_indices = @transform_4, window_bounds = array<i64: 256, 128>}]} {
    %c0_i32 = arith.constant 0 : i32
    %0 = arith.cmpi eq, %arg0, %c0_i32 : i32
    %c0_i32_0 = arith.constant 0 : i32
    %1 = arith.cmpi eq, %arg1, %c0_i32_0 : i32
    %2 = arith.andi %0, %1 : i1
    %3 = arith.extui %2 : i1 to i32
    %c0_i32_1 = arith.constant 0 : i32
    %4 = arith.cmpi ne, %3, %c0_i32_1 : i32
    scf.if %4 {
      %cst = arith.constant 0.000000e+00 : f32
      %11 = vector.broadcast %cst : f32 to vector<1x128xf32>
      %c0 = arith.constant 0 : index
      %c0_5 = arith.constant 0 : index
      %12 = vector.load %arg7[%c0, %c0_5] : memref<1x128xf32, #tpu.memory_space<vmem>>, vector<1x128xf32>
      tpu.vector_store %arg7[%c0, %c0_5], %11 {strides = array<i32>} : memref<1x128xf32, #tpu.memory_space<vmem>>, vector<1x128xf32>,
      %cst_6 = arith.constant 0.000000e+00 : f32
      %13 = vector.broadcast %cst_6 : f32 to vector<1x128xf32>
      %c0_7 = arith.constant 0 : index
      %c0_8 = arith.constant 0 : index
      %14 = vector.load %arg8[%c0_7, %c0_8] : memref<1x128xf32, #tpu.memory_space<vmem>>, vector<1x128xf32>
      tpu.vector_store %arg8[%c0_7, %c0_8], %13 {strides = array<i32>} : memref<1x128xf32, #tpu.memory_space<vmem>>, vector<1x128xf32>,
    } else {
    }
    %c0_i32_2 = arith.constant 0 : i32
    %5 = arith.cmpi eq, %arg0, %c0_i32_2 : i32
    %6 = arith.extui %5 : i1 to i32
    %c0_i32_3 = arith.constant 0 : i32
    %7 = arith.cmpi ne, %6, %c0_i32_3 : i32
    scf.if %7 {
      %c0 = arith.constant 0 : index
      %c0_5 = arith.constant 0 : index
      %11 = vector.load %arg2[%c0, %c0_5] : memref<256x86xbf16, #tpu.memory_space<vmem>>, vector<256x86xbf16>
      %c0_6 = arith.constant 0 : index
      %c0_7 = arith.constant 0 : index
      %12 = vector.load %arg3[%c0_6, %c0_7] : memref<86x128xbf16, #tpu.memory_space<vmem>>, vector<86x128xbf16>
      %cst = arith.constant dense<0.000000e+00> : vector<256x128xf32>
      %13 = tpu.matmul %11, %12, %cst {dimension_numbers = #tpu.dot_dimension_numbers<[1], [0], [0], [1], [0, 0, 1, 1], [], []>} : vector<256x86xbf16>, vector<86x128xbf16>, vector<256x128xf32> -> vector<256x128xf32>
      %c0_8 = arith.constant 0 : index
      %c0_9 = arith.constant 0 : index
      %14 = vector.load %arg4[%c0_8, %c0_9] : memref<8x128xf32, #tpu.memory_space<vmem>>, vector<1x128xf32>
      %15 = vector.broadcast %14 : vector<1x128xf32> to vector<256x128xf32>
      %16 = arith.addf %13, %15 : vector<256x128xf32>
      %c0_10 = arith.constant 0 : index
      %c0_11 = arith.constant 0 : index
      %17 = vector.load %arg5[%c0_10, %c0_11] : memref<256x3xf32, #tpu.memory_space<vmem>>, vector<256x1xf32>
      %c0_12 = arith.constant 0 : index
      %c1 = arith.constant 1 : index
      %18 = vector.load %arg5[%c0_12, %c1] : memref<256x3xf32, #tpu.memory_space<vmem>>, vector<256x1xf32>
      %19 = arith.subf %18, %17 : vector<256x1xf32>
      %c4 = arith.constant 4 : index
      %c0_13 = arith.constant 0 : index
      %20 = vector.load %arg4[%c4, %c0_13] : memref<8x128xf32, #tpu.memory_space<vmem>>, vector<1x128xf32>
      %21 = vector.broadcast %19 : vector<256x1xf32> to vector<256x128xf32>
      %22 = vector.broadcast %20 : vector<1x128xf32> to vector<256x128xf32>
      %23 = arith.mulf %21, %22 : vector<256x128xf32>
      %24 = vector.broadcast %17 : vector<256x1xf32> to vector<256x128xf32>
      %25 = arith.addf %24, %23 : vector<256x128xf32>
      %c0_14 = arith.constant 0 : index
      %c2 = arith.constant 2 : index
      %26 = vector.load %arg5[%c0_14, %c2] : memref<256x3xf32, #tpu.memory_space<vmem>>, vector<256x1xf32>
      %27 = arith.subf %26, %17 : vector<256x1xf32>
      %c5 = arith.constant 5 : index
      %c0_15 = arith.constant 0 : index
      %28 = vector.load %arg4[%c5, %c0_15] : memref<8x128xf32, #tpu.memory_space<vmem>>, vector<1x128xf32>
      %29 = vector.broadcast %27 : vector<256x1xf32> to vector<256x128xf32>
      %30 = vector.broadcast %28 : vector<1x128xf32> to vector<256x128xf32>
      %31 = arith.mulf %29, %30 : vector<256x128xf32>
      %32 = arith.addf %25, %31 : vector<256x128xf32>
      %33 = arith.mulf %32, %16 : vector<256x128xf32>
      %c0_16 = arith.constant 0 : index
      %c0_17 = arith.constant 0 : index
      %34 = vector.load %arg7[%c0_16, %c0_17] : memref<1x128xf32, #tpu.memory_space<vmem>>, vector<1x128xf32>
      %cst_18 = arith.constant dense<0.000000e+00> : vector<128xf32>
      %35 = vector.multi_reduction <add>, %33, %cst_18 [0] : vector<256x128xf32> to vector<128xf32>
      %36 = vector.shape_cast %35 : vector<128xf32> to vector<1x128xf32>
      %37 = arith.addf %34, %36 : vector<1x128xf32>
      %c0_19 = arith.constant 0 : index
      %c0_20 = arith.constant 0 : index
      %38 = vector.load %arg7[%c0_19, %c0_20] : memref<1x128xf32, #tpu.memory_space<vmem>>, vector<1x128xf32>
      tpu.vector_store %arg7[%c0_19, %c0_20], %37 {strides = array<i32>} : memref<1x128xf32, #tpu.memory_space<vmem>>, vector<1x128xf32>,
      %c0_21 = arith.constant 0 : index
      %c0_22 = arith.constant 0 : index
      %39 = vector.load %arg8[%c0_21, %c0_22] : memref<1x128xf32, #tpu.memory_space<vmem>>, vector<1x128xf32>
      %40 = arith.mulf %33, %16 : vector<256x128xf32>
      %cst_23 = arith.constant dense<0.000000e+00> : vector<128xf32>
      %41 = vector.multi_reduction <add>, %40, %cst_23 [0] : vector<256x128xf32> to vector<128xf32>
      %42 = vector.shape_cast %41 : vector<128xf32> to vector<1x128xf32>
      %43 = arith.addf %39, %42 : vector<1x128xf32>
      %c0_24 = arith.constant 0 : index
      %c0_25 = arith.constant 0 : index
      %44 = vector.load %arg8[%c0_24, %c0_25] : memref<1x128xf32, #tpu.memory_space<vmem>>, vector<1x128xf32>
      tpu.vector_store %arg8[%c0_24, %c0_25], %43 {strides = array<i32>} : memref<1x128xf32, #tpu.memory_space<vmem>>, vector<1x128xf32>,
      %45 = arith.index_cast %arg1 : i32 to index
      %c0_26 = arith.constant 0 : index
      %c0_27 = arith.constant 0 : index
      %46 = vector.load %arg9[%45, %c0_26, %c0_27] : memref<2x256x128xf32, #tpu.memory_space<vmem>>, vector<1x256x128xf32>
      %47 = vector.shape_cast %46 : vector<1x256x128xf32> to vector<256x128xf32>
      %48 = vector.shape_cast %16 : vector<256x128xf32> to vector<1x256x128xf32>
      tpu.vector_store %arg9[%45, %c0_26, %c0_27], %48 {strides = array<i32>} : memref<2x256x128xf32, #tpu.memory_space<vmem>>, vector<1x256x128xf32>,
    } else {
    }
    %c1_i32 = arith.constant 1 : i32
    %8 = arith.cmpi eq, %arg0, %c1_i32 : i32
    %9 = arith.extui %8 : i1 to i32
    %c0_i32_4 = arith.constant 0 : i32
    %10 = arith.cmpi ne, %9, %c0_i32_4 : i32
    scf.if %10 {
      %11 = arith.index_cast %arg1 : i32 to index
      %c0 = arith.constant 0 : index
      %c0_5 = arith.constant 0 : index
      %12 = vector.load %arg9[%11, %c0, %c0_5] : memref<2x256x128xf32, #tpu.memory_space<vmem>>, vector<1x256x128xf32>
      %13 = vector.shape_cast %12 : vector<1x256x128xf32> to vector<256x128xf32>
      %c3 = arith.constant 3 : index
      %c0_6 = arith.constant 0 : index
      %14 = vector.load %arg4[%c3, %c0_6] : memref<8x128xf32, #tpu.memory_space<vmem>>, vector<1x128xf32>
      %c0_7 = arith.constant 0 : index
      %c0_8 = arith.constant 0 : index
      %15 = vector.load %arg7[%c0_7, %c0_8] : memref<1x128xf32, #tpu.memory_space<vmem>>, vector<1x128xf32>
      %16 = arith.mulf %15, %14 : vector<1x128xf32>
      %c0_9 = arith.constant 0 : index
      %c0_10 = arith.constant 0 : index
      %17 = vector.load %arg8[%c0_9, %c0_10] : memref<1x128xf32, #tpu.memory_space<vmem>>, vector<1x128xf32>
      %18 = arith.mulf %17, %14 : vector<1x128xf32>
      %19 = arith.mulf %16, %16 : vector<1x128xf32>
      %20 = arith.subf %18, %19 : vector<1x128xf32>
      %cst = arith.constant 9.99999974E-6 : f32
      %21 = vector.broadcast %cst : f32 to vector<1x128xf32>
      %22 = arith.addf %20, %21 : vector<1x128xf32>
      %23 = math.rsqrt %22 : vector<1x128xf32>
      %c1 = arith.constant 1 : index
      %c0_11 = arith.constant 0 : index
      %24 = vector.load %arg4[%c1, %c0_11] : memref<8x128xf32, #tpu.memory_space<vmem>>, vector<1x128xf32>
      %25 = arith.mulf %23, %24 : vector<1x128xf32>
      %26 = vector.broadcast %16 : vector<1x128xf32> to vector<256x128xf32>
      %27 = arith.subf %13, %26 : vector<256x128xf32>
      %28 = vector.broadcast %25 : vector<1x128xf32> to vector<256x128xf32>
      %29 = arith.mulf %27, %28 : vector<256x128xf32>
      %c2 = arith.constant 2 : index
      %c0_12 = arith.constant 0 : index
      %30 = vector.load %arg4[%c2, %c0_12] : memref<8x128xf32, #tpu.memory_space<vmem>>, vector<1x128xf32>
      %31 = vector.broadcast %30 : vector<1x128xf32> to vector<256x128xf32>
      %32 = arith.addf %29, %31 : vector<256x128xf32>
      %cst_13 = arith.constant 0.000000e+00 : f32
      %33 = vector.broadcast %cst_13 : f32 to vector<256x128xf32>
      %34 = arith.cmpf ogt, %32, %33 : vector<256x128xf32>
      %cst_14 = arith.constant 0.00999999977 : f32
      %35 = vector.broadcast %cst_14 : f32 to vector<256x128xf32>
      %36 = arith.mulf %35, %32 : vector<256x128xf32>
      %37 = arith.select %34, %32, %36 : vector<256x128xi1>, vector<256x128xf32>
      %c0_15 = arith.constant 0 : index
      %c0_16 = arith.constant 0 : index
      %38 = vector.load %arg6[%c0_15, %c0_16] : memref<256x128xf32, #tpu.memory_space<vmem>>, vector<256x128xf32>
      tpu.vector_store %arg6[%c0_15, %c0_16], %37 {strides = array<i32>} : memref<256x128xf32, #tpu.memory_space<vmem>>, vector<256x128xf32>,
    } else {
    }
    return
  }
  func.func @transform_0(%arg0: i32, %arg1: i32) -> (i32, i32) {
    %c1_i32 = arith.constant 1 : i32
    %0 = arith.subi %c1_i32, %arg0 : i32
    %1 = arith.muli %arg1, %0 : i32
    %c0_i32 = arith.constant 0 : i32
    %c0_i32_0 = arith.constant 0 : i32
    return %1, %c0_i32 : i32, i32
  }
  func.func @transform_1(%arg0: i32, %arg1: i32) -> (i32, i32) {
    %c0_i32 = arith.constant 0 : i32
    %c0_i32_0 = arith.constant 0 : i32
    %c0_i32_1 = arith.constant 0 : i32
    return %c0_i32, %c0_i32_0 : i32, i32
  }
  func.func @transform_2(%arg0: i32, %arg1: i32) -> (i32, i32) {
    %c0_i32 = arith.constant 0 : i32
    %c0_i32_0 = arith.constant 0 : i32
    %c0_i32_1 = arith.constant 0 : i32
    return %c0_i32, %c0_i32_0 : i32, i32
  }
  func.func @transform_3(%arg0: i32, %arg1: i32) -> (i32, i32) {
    %c1_i32 = arith.constant 1 : i32
    %0 = arith.subi %c1_i32, %arg0 : i32
    %1 = arith.muli %arg1, %0 : i32
    %c0_i32 = arith.constant 0 : i32
    %c0_i32_0 = arith.constant 0 : i32
    return %1, %c0_i32 : i32, i32
  }
  func.func @transform_4(%arg0: i32, %arg1: i32) -> (i32, i32) {
    %0 = arith.muli %arg0, %arg1 : i32
    %c0_i32 = arith.constant 0 : i32
    %c0_i32_0 = arith.constant 0 : i32
    return %0, %c0_i32 : i32, i32
  }
}

</mosaic_0001>

<llo_original>
// kernel: inception_forward.2
$region0: #{inception_forward.2}
  #allocation0 [shape = 'u32[]', space=smem, size = 0x4, offset = 0x4, fixed_abs, tag = 'smem constant byte address 0x4 - core index']
  #allocation1 [shape = 'u32[144,128]{1,0:T(1,128)}', space=vmem, size = 0x12000, scoped, tag = 'internal scratch']
  #allocation2 [shape = 'f32[1,128]{1,0:T(1,128)}', space=vmem, size = 0x200, scoped, tag = 'scratch operand']
  #allocation3 [shape = 'f32[1,128]{1,0:T(1,128)}', space=vmem, size = 0x200, scoped, tag = 'scratch operand']
  #allocation4 [shape = 'f32[2,256,128]{2,1,0:T(8,128)}', space=vmem, size = 0x40000, scoped, tag = 'scratch operand']
  %s0 = inlined_call_operand.vmem [shape: bf16[512,8], index: 0, kind: input, shape index: {}]
  %s1 = inlined_call_operand.vmem [shape: bf16[8,128], index: 1, kind: input, shape index: {}]
  %s2 = inlined_call_operand.vmem [shape: f32[8,128], index: 2, kind: input, shape index: {}]
  %s3 = inlined_call_operand.vmem [shape: f32[512,3], index: 3, kind: input, shape index: {}]
  %s4 = inlined_call_operand.vmem [shape: bf16[512,128], index: 4, kind: output, shape index: {}]
  %s5 = sld [smem:[#allocation0]]
  $region61: #{inception_forward.2} parent=0
    _
  %s7 = ssub.s32 1, %s5
  %s8 = scalar_select 0, %s7, %s5
  loop: start=0, step=1, limit=6
  $region2: #{inception_forward.2} parent=0 // loop_pre_header
    _
  $region3: #{inception_forward.2} parent=0 // loop_header
    %s10 = sphi 0, %s14
    %p11 = scmp.ge.s32.totalorder %s10, 6
    %s17 = sphi 0, %s29
    %s18 = sphi 0, %s25
    %s19 = sphi 0, %s17
    %s20 = sphi 0, %s18
    %s21 = sphi 0, %s19
    %s22 = sphi 0, %s20
    %s36 = sphi 0, %s38
    %s39 = sphi 0, %s36
    %s40 = sphi 0, %s39
    %s56 = sphi 0, %s40
    %s60 = sphi 0, %s60
    %s62 = sphi 0, %s60
    %s63 = sphi 0, %s62
    %s77 = sphi 0, %s63
    %s81 = sphi 0, %s81
    %s83 = sphi 0, %s81
    %s84 = sphi 0, %s83
    %s98 = sphi 0, %s84
    %s108 = sphi 0, %s110
    %s111 = sphi 0, %s108
    %s112 = sphi 0, %s111
    %s128 = sphi 0, %s112
    %s136 = sphi 0, %s138
    %s139 = sphi 0, %s136
    %s140 = sphi 0, %s139
    %s156 = sphi 0, %s140
  $region4: #{inception_forward.2} parent=0 // loop_header_branch
    %13 = sbr.rel (%p11) target = $region8
  $region5: #{inception_forward.2} parent=0 // loop_body
    %s15 = ssub.s32 %s10, 1
    %s16 = ssub.s32 %s10, 2
    %s23 = sadd.s32 1, %s18
    %p24 = scmp.ge.s32.totalorder %s23, 2
    %s25 = scalar_select %p24, 0, %s23
    %s26 = sadd.s32 1, %s17
    %s27 = scalar_select %p24, %s26, %s17
    %p28 = scmp.ge.s32.totalorder %s27, 2
    %s29 = scalar_select %p28, 0, %s27
    %s30 = ssub.s32 1, %s17
    %s31 = smul.u32 %s18, %s30
    %s32 = ssub.s32 1, %s29
    %s33 = smul.u32 %s25, %s32
    %s34 = ssub.s32 %s31, %s33
    %p35 = scmp.eq.s32.totalorder %s34, 0
    %s37 = sadd.s32 %s36, 1
    %s38 = scalar_select %p35, %s36, %s37
    %p41 = pneg %p35
    %p42 = scmp.eq.s32.totalorder %s10, 3
    %p43 = por %p41, %p42
    %p44 = scmp.ne.s32.totalorder %s36, %s39
    %p45 = scmp.eq.s32.totalorder %s10, 0
    %p46 = por %p44, %p45
    %p47 = scmp.ne.s32.totalorder %s36, %s39
    %p48 = scmp.eq.s32.totalorder %s15, 3
    %p49 = por %p47, %p48
    %p50 = scmp.ne.s32.totalorder %s39, %s40
    %p51 = scmp.eq.s32.totalorder %s15, 0
    %p52 = por %p50, %p51
    %p53 = scmp.ne.s32.totalorder %s39, %s40
    %p54 = scmp.eq.s32.totalorder %s16, 3
    %p55 = por %p53, %p54
    %p57 = scmp.ne.s32.totalorder %s40, %s56
    %p58 = scmp.eq.s32.totalorder %s16, 0
    %p59 = por %p57, %p58
    %s61 = sadd.s32 %s60, 1
    %p64 = scmp.eq.s32.totalorder %s10, 3
    %p65 = scmp.ne.s32.totalorder %s60, %s62
    %p66 = scmp.eq.s32.totalorder %s10, 0
    %p67 = por %p65, %p66
    %p68 = scmp.ne.s32.totalorder %s60, %s62
    %p69 = scmp.eq.s32.totalorder %s15, 3
    %p70 = por %p68, %p69
    %p71 = scmp.ne.s32.totalorder %s62, %s63
    %p72 = scmp.eq.s32.totalorder %s15, 0
    %p73 = por %p71, %p72
    %p74 = scmp.ne.s32.totalorder %s62, %s63
    %p75 = scmp.eq.s32.totalorder %s16, 3
    %p76 = por %p74, %p75
    %p78 = scmp.ne.s32.totalorder %s63, %s77
    %p79 = scmp.eq.s32.totalorder %s16, 0
    %p80 = por %p78, %p79
    %s82 = sadd.s32 %s81, 1
    %p85 = scmp.eq.s32.totalorder %s10, 3
    %p86 = scmp.ne.s32.totalorder %s81, %s83
    %p87 = scmp.eq.s32.totalorder %s10, 0
    %p88 = por %p86, %p87
    %p89 = scmp.ne.s32.totalorder %s81, %s83
    %p90 = scmp.eq.s32.totalorder %s15, 3
    %p91 = por %p89, %p90
    %p92 = scmp.ne.s32.totalorder %s83, %s84
    %p93 = scmp.eq.s32.totalorder %s15, 0
    %p94 = por %p92, %p93
    %p95 = scmp.ne.s32.totalorder %s83, %s84
    %p96 = scmp.eq.s32.totalorder %s16, 3
    %p97 = por %p95, %p96
    %p99 = scmp.ne.s32.totalorder %s84, %s98
    %p100 = scmp.eq.s32.totalorder %s16, 0
    %p101 = por %p99, %p100
    %s102 = ssub.s32 1, %s17
    %s103 = smul.u32 %s18, %s102
    %s104 = ssub.s32 1, %s29
    %s105 = smul.u32 %s25, %s104
    %s106 = ssub.s32 %s103, %s105
    %p107 = scmp.eq.s32.totalorder %s106, 0
    %s109 = sadd.s32 %s108, 1
    %s110 = scalar_select %p107, %s108, %s109
    %p113 = pneg %p107
    %p114 = scmp.eq.s32.totalorder %s10, 3
    %p115 = por %p113, %p114
    %p116 = scmp.ne.s32.totalorder %s108, %s111
    %p117 = scmp.eq.s32.totalorder %s10, 0
    %p118 = por %p116, %p117
    %p119 = scmp.ne.s32.totalorder %s108, %s111
    %p120 = scmp.eq.s32.totalorder %s15, 3
    %p121 = por %p119, %p120
    %p122 = scmp.ne.s32.totalorder %s111, %s112
    %p123 = scmp.eq.s32.totalorder %s15, 0
    %p124 = por %p122, %p123
    %p125 = scmp.ne.s32.totalorder %s111, %s112
    %p126 = scmp.eq.s32.totalorder %s16, 3
    %p127 = por %p125, %p126
    %p129 = scmp.ne.s32.totalorder %s112, %s128
    %p130 = scmp.eq.s32.totalorder %s16, 0
    %p131 = por %p129, %p130
    %s132 = smul.u32 %s17, %s18
    %s133 = smul.u32 %s29, %s25
    %s134 = ssub.s32 %s132, %s133
    %p135 = scmp.eq.s32.totalorder %s134, 0
    %s137 = sadd.s32 %s136, 1
    %s138 = scalar_select %p135, %s136, %s137
    %p141 = pneg %p135
    %p142 = scmp.eq.s32.totalorder %s10, 3
    %p143 = por %p141, %p142
    %p144 = scmp.ne.s32.totalorder %s136, %s139
    %p145 = scmp.eq.s32.totalorder %s10, 0
    %p146 = por %p144, %p145
    %p147 = scmp.ne.s32.totalorder %s136, %s139
    %p148 = scmp.eq.s32.totalorder %s15, 3
    %p149 = por %p147, %p148
    %p150 = scmp.ne.s32.totalorder %s139, %s140
    %p151 = scmp.eq.s32.totalorder %s15, 0
    %p152 = por %p150, %p151
    %p153 = scmp.ne.s32.totalorder %s139, %s140
    %p154 = scmp.eq.s32.totalorder %s16, 3
    %p155 = por %p153, %p154
    %p157 = scmp.ne.s32.totalorder %s140, %s156
    %p158 = scmp.eq.s32.totalorder %s16, 0
    %p159 = por %p157, %p158
    %p160 = scmp.le.s32.totalorder 1, %s10
    %p161 = scmp.lt.s32.totalorder %s10, 5
    %p162 = pnand %p160, %p161
    %p163 = pneg %p162
    // Predicated region
    $region9: #{inception_forward.2} parent=5 // pred_check
      _
    $region10: #{inception_forward.2} parent=5 // pred_check_branch
      %165 = sbr.rel (%p162) target = $region12
    $region11: #{inception_forward.2} parent=5 // pred_region
      %s166 = ssub.s32 %s10, 1
      // Predicated region
      $region13: #{inception_forward.2} parent=11 // pred_check
        %p167 = pneg %p73
      $region14: #{inception_forward.2} parent=11 // pred_check_branch
        %169 = sbr.rel (%p167) target = $region16
      $region15: #{inception_forward.2} parent=11 // pred_region
        _
      $region16: #{inception_forward.2} parent=11 // pred_fallthru
        _
      // Predicated region
      $region17: #{inception_forward.2} parent=11 // pred_check
        %p170 = pneg %p94
      $region18: #{inception_forward.2} parent=11 // pred_check_branch
        %172 = sbr.rel (%p170) target = $region20
      $region19: #{inception_forward.2} parent=11 // pred_region
        _
      $region20: #{inception_forward.2} parent=11 // pred_fallthru
        _
    $region12: #{inception_forward.2} parent=5 // pred_fallthru
      _
    %p173 = scmp.lt.s32.totalorder %s10, 4
    // Predicated region
    $region21: #{inception_forward.2} parent=5 // pred_check
      %p174 = pneg %p173
    $region22: #{inception_forward.2} parent=5 // pred_check_branch
      %176 = sbr.rel (%p174) target = $region24
    $region23: #{inception_forward.2} parent=5 // pred_region
      // Predicated region
      $region25: #{inception_forward.2} parent=23 // pred_check
        %p177 = pneg %p46
      $region26: #{inception_forward.2} parent=23 // pred_check_branch
        %179 = sbr.rel (%p177) target = $region28
      $region27: #{inception_forward.2} parent=23 // pred_region
        %s180 = ssub.s32 1, %s17
        %s181 = smul.u32 %s18, %s180
        %s182 = smul.u32 32, %s181
        %p183 = scmp.lt.s32.totalorder %s182, 63
        %s184 = scalar_select %p183, %s182, 63
        %s185 = smul.addr %s184, 4
        %s186 = scalar_lea.vmem %s0, %s185
        %s187 = ssub.s32 1, %s17
        %s188 = smul.u32 %s18, %s187
        %s189 = smul.u32 32, %s188
      $region28: #{inception_forward.2} parent=23 // pred_fallthru
        _
      // Predicated region
      $region29: #{inception_forward.2} parent=23 // pred_check
        %p190 = pneg %p118
      $region30: #{inception_forward.2} parent=23 // pred_check_branch
        %192 = sbr.rel (%p190) target = $region32
      $region31: #{inception_forward.2} parent=23 // pred_region
        %s193 = ssub.s32 1, %s17
        %s194 = smul.u32 %s18, %s193
        %s195 = smul.u32 32, %s194
        %p196 = scmp.lt.s32.totalorder %s195, 63
        %s197 = scalar_select %p196, %s195, 63
        %s198 = smul.addr %s197, 8
        %s199 = scalar_lea.vmem %s3, %s198
        %s200 = ssub.s32 1, %s17
        %s201 = smul.u32 %s18, %s200
        %s202 = smul.u32 32, %s201
      $region32: #{inception_forward.2} parent=23 // pred_fallthru
        _
    $region24: #{inception_forward.2} parent=5 // pred_fallthru
      _
    %p203 = scmp.le.s32.totalorder 1, %s10
    %p204 = scmp.lt.s32.totalorder %s10, 5
    %p205 = pnand %p203, %p204
    %p206 = pneg %p205
    // Predicated region
    $region33: #{inception_forward.2} parent=5 // pred_check
      _
    $region34: #{inception_forward.2} parent=5 // pred_check_branch
      %208 = sbr.rel (%p205) target = $region36
    $region35: #{inception_forward.2} parent=5 // pred_region
      %s209 = ssub.s32 %s10, 1
      %s210 = ssub.s32 1, %s19
      %s211 = smul.u32 %s20, %s210
      %s212 = smul.u32 32, %s211
      %p213 = scmp.lt.s32.totalorder %s212, 63
      %s214 = scalar_select %p213, %s212, 63
      %s215 = smul.addr %s214, 4
      %s216 = scalar_lea.vmem %s0, %s215
      %p217 = pneg %p52
      %p218 = pneg %p49
      %p219 = pneg %p73
      %p220 = pneg %p70
      %p221 = pneg %p94
      %p222 = pneg %p91
      %s223 = ssub.s32 1, %s19
      %s224 = smul.u32 %s20, %s223
      %s225 = smul.u32 32, %s224
      %p226 = scmp.lt.s32.totalorder %s225, 63
      %s227 = scalar_select %p226, %s225, 63
      %s228 = smul.addr %s227, 8
      %s229 = scalar_lea.vmem %s3, %s228
      %p230 = pneg %p124
      %p231 = pneg %p121
      %p232 = pneg %p152
      %p233 = pneg %p149
      %s234 = smul.u32 %s19, %s20
      %s235 = smul.u32 32, %s234
      %p236 = scmp.lt.s32.totalorder %s235, 63
      %s237 = scalar_select %p236, %s235, 63
      %s238 = smul.addr %s237, 4
      %s239 = scalar_lea.vmem %s4, %s238
      %s240 = ssub.s32 1, %s19
      %s241 = smul.u32 %s20, %s240
      %s242 = smul.u32 32, %s241
      %p243 = scmp.lt.s32.totalorder %s242, 63
      %s244 = scalar_select %p243, %s242, 63
      %s245 = smul.addr %s244, 4
      %s246 = scalar_lea.vmem %s0, %s245
      %s247 = ssub.s32 1, %s19
      %s248 = smul.u32 %s20, %s247
      %s249 = smul.u32 32, %s248
      %s250 = ssub.s32 1, %s19
      %s251 = smul.u32 %s20, %s250
      %s252 = smul.u32 32, %s251
      %p253 = scmp.lt.s32.totalorder %s252, 63
      %s254 = scalar_select %p253, %s252, 63
      %s255 = smul.addr %s254, 8
      %s256 = scalar_lea.vmem %s3, %s255
      %s257 = ssub.s32 1, %s19
      %s258 = smul.u32 %s20, %s257
      %s259 = smul.u32 32, %s258
      %s260 = smul.u32 %s19, %s20
      %s261 = smul.u32 32, %s260
      %p262 = scmp.lt.s32.totalorder %s261, 63
      %s263 = scalar_select %p262, %s261, 63
      %s264 = smul.addr %s263, 4
      %s265 = scalar_lea.vmem %s4, %s264
      %s266 = smul.u32 %s19, %s20
      %s267 = smul.u32 32, %s266
      %p269 = scmp.eq.s32.totalorder %s19, 0
      %p270 = scmp.eq.s32.totalorder %s20, 0
      %p271 = pnand %p269, %p270
      %p272 = pneg %p271
      // Predicated region
      $region37: #{inception_forward.2} parent=35 // pred_check
        _
      $region38: #{inception_forward.2} parent=35 // pred_check_branch
        %274 = sbr.rel (%p271) target = $region40
      $region39: #{inception_forward.2} parent=35 // pred_region
        %275 = vst [vmem:[#allocation2] sm:$0x1] 0.0
        %276 = vst [vmem:[#allocation3] sm:$0x1] 0.0
      $region40: #{inception_forward.2} parent=35 // pred_fallthru
        _
      // Predicated region
      $region41: #{inception_forward.2} parent=35 // pred_check
        %p277 = pneg %p269
      $region42: #{inception_forward.2} parent=35 // pred_check_branch
        %279 = sbr.rel (%p277) target = $region44
      $region43: #{inception_forward.2} parent=35 // pred_region
        %v280 = vld [vmem:[%s246] sm:$0xf]
        %v281 = vld [vmem:[%s246 + $0x4] sm:$0xf]
        %v282 = vld [vmem:[%s246 + $0x8] sm:$0xf]
        %v283 = vld [vmem:[%s246 + $0xc] sm:$0xf]
        %v284 = vld [vmem:[%s246 + $0x10] sm:$0xf]
        %v285 = vld [vmem:[%s246 + $0x14] sm:$0xf]
        %v286 = vld [vmem:[%s246 + $0x18] sm:$0xf]
        %v287 = vld [vmem:[%s246 + $0x1c] sm:$0xf]
        %v288 = vld [vmem:[%s246 + $0x20] sm:$0xf]
        %v289 = vld [vmem:[%s246 + $0x24] sm:$0xf]
        %v290 = vld [vmem:[%s246 + $0x28] sm:$0xf]
        %v291 = vld [vmem:[%s246 + $0x2c] sm:$0xf]
        %v292 = vld [vmem:[%s246 + $0x30] sm:$0xf]
        %v293 = vld [vmem:[%s246 + $0x34] sm:$0xf]
        %v294 = vld [vmem:[%s246 + $0x38] sm:$0xf]
        %v295 = vld [vmem:[%s246 + $0x3c] sm:$0xf]
        %v296 = vld [vmem:[%s246 + $0x40] sm:$0xf]
        %v297 = vld [vmem:[%s246 + $0x44] sm:$0xf]
        %v298 = vld [vmem:[%s246 + $0x48] sm:$0xf]
        %v299 = vld [vmem:[%s246 + $0x4c] sm:$0xf]
        %v300 = vld [vmem:[%s246 + $0x50] sm:$0xf]
        %v301 = vld [vmem:[%s246 + $0x54] sm:$0xf]
        %v302 = vld [vmem:[%s246 + $0x58] sm:$0xf]
        %v303 = vld [vmem:[%s246 + $0x5c] sm:$0xf]
        %v304 = vld [vmem:[%s246 + $0x60] sm:$0xf]
        %v305 = vld [vmem:[%s246 + $0x64] sm:$0xf]
        %v306 = vld [vmem:[%s246 + $0x68] sm:$0xf]
        %v307 = vld [vmem:[%s246 + $0x6c] sm:$0xf]
        %v308 = vld [vmem:[%s246 + $0x70] sm:$0xf]
        %v309 = vld [vmem:[%s246 + $0x74] sm:$0xf]
        %v310 = vld [vmem:[%s246 + $0x78] sm:$0xf]
        %v311 = vld [vmem:[%s246 + $0x7c] sm:$0xf]
        %v312 = vld [vmem:[%s1] sm:$0xf]
        %v313 = vld [vmem:[%s2] sm:$0x1]
        %v314 = vlaneseq
        %v315 = vshrl.u32 %v314, 7
        %v316 = vsub.s32 0, %v315
        %v317 = vrot.slane %v313, %v316
        %v350 = vunpack.c.l.b16 %v280
        %v351 = vunpack.c.l.b16 %v281
        %v352 = vunpack.c.l.b16 %v282
        %v353 = vunpack.c.l.b16 %v283
        %v354 = vunpack.c.l.b16 %v284
        %v355 = vunpack.c.l.b16 %v285
        %v356 = vunpack.c.l.b16 %v286
        %v357 = vunpack.c.l.b16 %v287
        %v358 = vunpack.c.l.b16 %v288
        %v359 = vunpack.c.l.b16 %v289
        %v360 = vunpack.c.l.b16 %v290
        %v361 = vunpack.c.l.b16 %v291
        %v362 = vunpack.c.l.b16 %v292
        %v363 = vunpack.c.l.b16 %v293
        %v364 = vunpack.c.l.b16 %v294
        %v365 = vunpack.c.l.b16 %v295
        %v366 = vunpack.c.l.b16 %v296
        %v367 = vunpack.c.l.b16 %v297
        %v368 = vunpack.c.l.b16 %v298
        %v369 = vunpack.c.l.b16 %v299
        %v370 = vunpack.c.l.b16 %v300
        %v371 = vunpack.c.l.b16 %v301
        %v372 = vunpack.c.l.b16 %v302
        %v373 = vunpack.c.l.b16 %v303
        %v374 = vunpack.c.l.b16 %v304
        %v375 = vunpack.c.l.b16 %v305
        %v376 = vunpack.c.l.b16 %v306
        %v377 = vunpack.c.l.b16 %v307
        %v378 = vunpack.c.l.b16 %v308
        %v379 = vunpack.c.l.b16 %v309
        %v380 = vunpack.c.l.b16 %v310
        %v381 = vunpack.c.l.b16 %v311
        %v382 = vpack.c.b16 %v351, %v350
        %v383 = vpack.c.b16 %v353, %v352
        %v384 = vpack.c.b16 %v355, %v354
        %v385 = vpack.c.b16 %v357, %v356
        %v386 = vpack.c.b16 %v359, %v358
        %v387 = vpack.c.b16 %v361, %v360
        %v388 = vpack.c.b16 %v363, %v362
        %v389 = vpack.c.b16 %v365, %v364
        %v390 = vpack.c.b16 %v367, %v366
        %v391 = vpack.c.b16 %v369, %v368
        %v392 = vpack.c.b16 %v371, %v370
        %v393 = vpack.c.b16 %v373, %v372
        %v394 = vpack.c.b16 %v375, %v374
        %v395 = vpack.c.b16 %v377, %v376
        %v396 = vpack.c.b16 %v379, %v378
        %v397 = vpack.c.b16 %v381, %v380
        %vm398 = vcmask 64512
        %v400 = vsel %vm398, %v382, 0
        %v403 = vsel %vm398, %v383, 0
        %v406 = vsel %vm398, %v384, 0
        %v409 = vsel %vm398, %v385, 0
        %v412 = vsel %vm398, %v386, 0
        %v415 = vsel %vm398, %v387, 0
        %v418 = vsel %vm398, %v388, 0
        %v421 = vsel %vm398, %v389, 0
        %v424 = vsel %vm398, %v390, 0
        %v427 = vsel %vm398, %v391, 0
        %v430 = vsel %vm398, %v392, 0
        %v433 = vsel %vm398, %v393, 0
        %v436 = vsel %vm398, %v394, 0
        %v439 = vsel %vm398, %v395, 0
        %v442 = vsel %vm398, %v396, 0
        %v445 = vsel %vm398, %v397, 0
        %vm447 = vcmask 1043456
        %v449 = vsel %vm447, %v312, 0
        %451 = vmatprep.subr.bf16.mxu0 0
        %452 = vmatpush1.bf16.msra.mxu0 %v449
        %453 = vmatprep.subr.bf16.mxu0 0
        %454 = vmatpush1.bf16.msra.mxu0 0
        %455 = vmatprep.subr.bf16.mxu0 0
        %456 = vmatpush1.bf16.msra.mxu0 0
        %457 = vmatprep.subr.bf16.mxu0 0
        %458 = vmatpush1.bf16.msra.mxu0 0
        %459 = vmatprep.subr.bf16.mxu0 0
        %460 = vmatpush1.bf16.msra.mxu0 0
        %461 = vmatprep.subr.bf16.mxu0 0
        %462 = vmatpush1.bf16.msra.mxu0 0
        %463 = vmatprep.subr.bf16.mxu0 0
        %464 = vmatpush1.bf16.msra.mxu0 0
        %465 = vmatprep.subr.bf16.mxu0 0
        %466 = vmatpush1.bf16.msra.mxu0 0
        %467 = vmatprep.subr.bf16.mxu0 0
        %468 = vmatpush1.bf16.msra.mxu0 0
        %469 = vmatprep.subr.bf16.mxu0 0
        %470 = vmatpush1.bf16.msra.mxu0 0
        %471 = vmatprep.subr.bf16.mxu0 0
        %472 = vmatpush1.bf16.msra.mxu0 0
        %473 = vmatprep.subr.bf16.mxu0 0
        %474 = vmatpush1.bf16.msra.mxu0 0
        %475 = vmatprep.subr.bf16.mxu0 0
        %476 = vmatpush1.bf16.msra.mxu0 0
        %477 = vmatprep.subr.bf16.mxu0 0
        %478 = vmatpush1.bf16.msra.mxu0 0
        %479 = vmatprep.subr.bf16.mxu0 0
        %480 = vmatpush1.bf16.msra.mxu0 0
        %481 = vmatprep.subr.bf16.mxu0 0
        %482 = vmatpush1.bf16.msra.mxu0 0
        %483 = vmatprep.mubr.bf16.mxu0 0
        %484 = vmatmul.mubr.bf16.gmra.mrb[0].mxu0 %v400
        %v485 = vpop.f32.mrb[0].mxu0
        %v486 = vadd.f32 %v317, %v485
        %v487 = vpop.f32.mrb[0].mxu0
        %v488 = vpop.f32.mrb[0].mxu0
        %v489 = vadd.f32 %v317, %v488
        %v490 = vpop.f32.mrb[0].mxu0
        %491 = vmatprep.mubr.bf16.mxu0 0
        %492 = vmatmul.mubr.bf16.gmra.mrb[0].mxu0 %v403
        %v493 = vpop.f32.mrb[0].mxu0
        %v494 = vadd.f32 %v317, %v493
        %v495 = vpop.f32.mrb[0].mxu0
        %v496 = vpop.f32.mrb[0].mxu0
        %v497 = vadd.f32 %v317, %v496
        %v498 = vpop.f32.mrb[0].mxu0
        %499 = vmatprep.mubr.bf16.mxu0 0
        %500 = vmatmul.mubr.bf16.gmra.mrb[0].mxu0 %v406
        %v501 = vpop.f32.mrb[0].mxu0
        %v502 = vadd.f32 %v317, %v501
        %v503 = vpop.f32.mrb[0].mxu0
        %v504 = vpop.f32.mrb[0].mxu0
        %v505 = vadd.f32 %v317, %v504
        %v506 = vpop.f32.mrb[0].mxu0
        %507 = vmatprep.mubr.bf16.mxu0 0
        %508 = vmatmul.mubr.bf16.gmra.mrb[0].mxu0 %v409
        %v509 = vpop.f32.mrb[0].mxu0
        %v510 = vadd.f32 %v317, %v509
        %v511 = vpop.f32.mrb[0].mxu0
        %v512 = vpop.f32.mrb[0].mxu0
        %v513 = vadd.f32 %v317, %v512
        %v514 = vpop.f32.mrb[0].mxu0
        %515 = vmatprep.mubr.bf16.mxu0 0
        %516 = vmatmul.mubr.bf16.gmra.mrb[0].mxu0 %v412
        %v517 = vpop.f32.mrb[0].mxu0
        %v518 = vadd.f32 %v317, %v517
        %v519 = vpop.f32.mrb[0].mxu0
        %v520 = vpop.f32.mrb[0].mxu0
        %v521 = vadd.f32 %v317, %v520
        %v522 = vpop.f32.mrb[0].mxu0
        %523 = vmatprep.mubr.bf16.mxu0 0
        %524 = vmatmul.mubr.bf16.gmra.mrb[0].mxu0 %v415
        %v525 = vpop.f32.mrb[0].mxu0
        %v526 = vadd.f32 %v317, %v525
        %v527 = vpop.f32.mrb[0].mxu0
        %v528 = vpop.f32.mrb[0].mxu0
        %v529 = vadd.f32 %v317, %v528
        %v530 = vpop.f32.mrb[0].mxu0
        %531 = vmatprep.mubr.bf16.mxu0 0
        %532 = vmatmul.mubr.bf16.gmra.mrb[0].mxu0 %v418
        %v533 = vpop.f32.mrb[0].mxu0
        %v534 = vadd.f32 %v317, %v533
        %v535 = vpop.f32.mrb[0].mxu0
        %v536 = vpop.f32.mrb[0].mxu0
        %v537 = vadd.f32 %v317, %v536
        %v538 = vpop.f32.mrb[0].mxu0
        %539 = vmatprep.mubr.bf16.mxu0 0
        %540 = vmatmul.mubr.bf16.gmra.mrb[0].mxu0 %v421
        %v541 = vpop.f32.mrb[0].mxu0
        %v542 = vadd.f32 %v317, %v541
        %v543 = vpop.f32.mrb[0].mxu0
        %v544 = vpop.f32.mrb[0].mxu0
        %v545 = vadd.f32 %v317, %v544
        %v546 = vpop.f32.mrb[0].mxu0
        %547 = vmatprep.mubr.bf16.mxu0 0
        %548 = vmatmul.mubr.bf16.gmra.mrb[0].mxu0 %v424
        %v549 = vpop.f32.mrb[0].mxu0
        %v550 = vadd.f32 %v317, %v549
        %v551 = vpop.f32.mrb[0].mxu0
        %v552 = vpop.f32.mrb[0].mxu0
        %v553 = vadd.f32 %v317, %v552
        %v554 = vpop.f32.mrb[0].mxu0
        %555 = vmatprep.mubr.bf16.mxu0 0
        %556 = vmatmul.mubr.bf16.gmra.mrb[0].mxu0 %v427
        %v557 = vpop.f32.mrb[0].mxu0
        %v558 = vadd.f32 %v317, %v557
        %v559 = vpop.f32.mrb[0].mxu0
        %v560 = vpop.f32.mrb[0].mxu0
        %v561 = vadd.f32 %v317, %v560
        %v562 = vpop.f32.mrb[0].mxu0
        %563 = vmatprep.mubr.bf16.mxu0 0
        %564 = vmatmul.mubr.bf16.gmra.mrb[0].mxu0 %v430
        %v565 = vpop.f32.mrb[0].mxu0
        %v566 = vadd.f32 %v317, %v565
        %v567 = vpop.f32.mrb[0].mxu0
        %v568 = vpop.f32.mrb[0].mxu0
        %v569 = vadd.f32 %v317, %v568
        %v570 = vpop.f32.mrb[0].mxu0
        %571 = vmatprep.mubr.bf16.mxu0 0
        %572 = vmatmul.mubr.bf16.gmra.mrb[0].mxu0 %v433
        %v573 = vpop.f32.mrb[0].mxu0
        %v574 = vadd.f32 %v317, %v573
        %v575 = vpop.f32.mrb[0].mxu0
        %v576 = vpop.f32.mrb[0].mxu0
        %v577 = vadd.f32 %v317, %v576
        %v578 = vpop.f32.mrb[0].mxu0
        %579 = vmatprep.mubr.bf16.mxu0 0
        %580 = vmatmul.mubr.bf16.gmra.mrb[0].mxu0 %v436
        %v581 = vpop.f32.mrb[0].mxu0
        %v582 = vadd.f32 %v317, %v581
        %v583 = vpop.f32.mrb[0].mxu0
        %v584 = vpop.f32.mrb[0].mxu0
        %v585 = vadd.f32 %v317, %v584
        %v586 = vpop.f32.mrb[0].mxu0
        %587 = vmatprep.mubr.bf16.mxu0 0
        %588 = vmatmul.mubr.bf16.gmra.mrb[0].mxu0 %v439
        %v589 = vpop.f32.mrb[0].mxu0
        %v590 = vadd.f32 %v317, %v589
        %v591 = vpop.f32.mrb[0].mxu0
        %v592 = vpop.f32.mrb[0].mxu0
        %v593 = vadd.f32 %v317, %v592
        %v594 = vpop.f32.mrb[0].mxu0
        %595 = vmatprep.mubr.bf16.mxu0 0
        %596 = vmatmul.mubr.bf16.gmra.mrb[0].mxu0 %v442
        %v597 = vpop.f32.mrb[0].mxu0
        %v598 = vadd.f32 %v317, %v597
        %v599 = vpop.f32.mrb[0].mxu0
        %v600 = vpop.f32.mrb[0].mxu0
        %v601 = vadd.f32 %v317, %v600
        %v602 = vpop.f32.mrb[0].mxu0
        %603 = vmatprep.mubr.bf16.mxu0 0
        %604 = vmatmul.mubr.bf16.gmra.mrb[0].mxu0 %v445
        %v605 = vpop.f32.mrb[0].mxu0
        %v606 = vadd.f32 %v317, %v605
        %v607 = vpop.f32.mrb[0].mxu0
        %v608 = vpop.f32.mrb[0].mxu0
        %v609 = vadd.f32 %v317, %v608
        %v610 = vpop.f32.mrb[0].mxu0
        %611 = vdwg.mxu0
        %v612 = vld [vmem:[%s256] sm:$0xff]
        %v613 = vld [vmem:[%s256 + $0x8] sm:$0xff]
        %v614 = vld [vmem:[%s256 + $0x10] sm:$0xff]
        %v615 = vld [vmem:[%s256 + $0x18] sm:$0xff]
        %v616 = vld [vmem:[%s256 + $0x20] sm:$0xff]
        %v617 = vld [vmem:[%s256 + $0x28] sm:$0xff]
        %v618 = vld [vmem:[%s256 + $0x30] sm:$0xff]
        %v619 = vld [vmem:[%s256 + $0x38] sm:$0xff]
        %v620 = vld [vmem:[%s256 + $0x40] sm:$0xff]
        %v621 = vld [vmem:[%s256 + $0x48] sm:$0xff]
        %v622 = vld [vmem:[%s256 + $0x50] sm:$0xff]
        %v623 = vld [vmem:[%s256 + $0x58] sm:$0xff]
        %v624 = vld [vmem:[%s256 + $0x60] sm:$0xff]
        %v625 = vld [vmem:[%s256 + $0x68] sm:$0xff]
        %v626 = vld [vmem:[%s256 + $0x70] sm:$0xff]
        %v627 = vld [vmem:[%s256 + $0x78] sm:$0xff]
        %v628 = vld [vmem:[%s256 + $0x80] sm:$0xff]
        %v629 = vld [vmem:[%s256 + $0x88] sm:$0xff]
        %v630 = vld [vmem:[%s256 + $0x90] sm:$0xff]
        %v631 = vld [vmem:[%s256 + $0x98] sm:$0xff]
        %v632 = vld [vmem:[%s256 + $0xa0] sm:$0xff]
        %v633 = vld [vmem:[%s256 + $0xa8] sm:$0xff]
        %v634 = vld [vmem:[%s256 + $0xb0] sm:$0xff]
        %v635 = vld [vmem:[%s256 + $0xb8] sm:$0xff]
        %v636 = vld [vmem:[%s256 + $0xc0] sm:$0xff]
        %v637 = vld [vmem:[%s256 + $0xc8] sm:$0xff]
        %v638 = vld [vmem:[%s256 + $0xd0] sm:$0xff]
        %v639 = vld [vmem:[%s256 + $0xd8] sm:$0xff]
        %v640 = vld [vmem:[%s256 + $0xe0] sm:$0xff]
        %v641 = vld [vmem:[%s256 + $0xe8] sm:$0xff]
        %v642 = vld [vmem:[%s256 + $0xf0] sm:$0xff]
        %v643 = vld [vmem:[%s256 + $0xf8] sm:$0xff]
        %676 = vrot.lane.b32.xlu0 %v612, 1
        %v677 = vpop.permute.xlu0 %676
        %678 = vrot.lane.b32.xlu0 %v613, 1
        %v679 = vpop.permute.xlu0 %678
        %680 = vrot.lane.b32.xlu0 %v614, 1
        %v681 = vpop.permute.xlu0 %680
        %682 = vrot.lane.b32.xlu0 %v615, 1
        %v683 = vpop.permute.xlu0 %682
        %684 = vrot.lane.b32.xlu0 %v616, 1
        %v685 = vpop.permute.xlu0 %684
        %686 = vrot.lane.b32.xlu0 %v617, 1
        %v687 = vpop.permute.xlu0 %686
        %688 = vrot.lane.b32.xlu0 %v618, 1
        %v689 = vpop.permute.xlu0 %688
        %690 = vrot.lane.b32.xlu0 %v619, 1
        %v691 = vpop.permute.xlu0 %690
        %692 = vrot.lane.b32.xlu0 %v620, 1
        %v693 = vpop.permute.xlu0 %692
        %694 = vrot.lane.b32.xlu0 %v621, 1
        %v695 = vpop.permute.xlu0 %694
        %696 = vrot.lane.b32.xlu0 %v622, 1
        %v697 = vpop.permute.xlu0 %696
        %698 = vrot.lane.b32.xlu0 %v623, 1
        %v699 = vpop.permute.xlu0 %698
        %700 = vrot.lane.b32.xlu0 %v624, 1
        %v701 = vpop.permute.xlu0 %700
        %702 = vrot.lane.b32.xlu0 %v625, 1
        %v703 = vpop.permute.xlu0 %702
        %704 = vrot.lane.b32.xlu0 %v626, 1
        %v705 = vpop.permute.xlu0 %704
        %706 = vrot.lane.b32.xlu0 %v627, 1
        %v707 = vpop.permute.xlu0 %706
        %708 = vrot.lane.b32.xlu0 %v628, 1
        %v709 = vpop.permute.xlu0 %708
        %710 = vrot.lane.b32.xlu0 %v629, 1
        %v711 = vpop.permute.xlu0 %710
        %712 = vrot.lane.b32.xlu0 %v630, 1
        %v713 = vpop.permute.xlu0 %712
        %714 = vrot.lane.b32.xlu0 %v631, 1
        %v715 = vpop.permute.xlu0 %714
        %716 = vrot.lane.b32.xlu0 %v632, 1
        %v717 = vpop.permute.xlu0 %716
        %718 = vrot.lane.b32.xlu0 %v633, 1
        %v719 = vpop.permute.xlu0 %718
        %720 = vrot.lane.b32.xlu0 %v634, 1
        %v721 = vpop.permute.xlu0 %720
        %722 = vrot.lane.b32.xlu0 %v635, 1
        %v723 = vpop.permute.xlu0 %722
        %724 = vrot.lane.b32.xlu0 %v636, 1
        %v725 = vpop.permute.xlu0 %724
        %726 = vrot.lane.b32.xlu0 %v637, 1
        %v727 = vpop.permute.xlu0 %726
        %728 = vrot.lane.b32.xlu0 %v638, 1
        %v729 = vpop.permute.xlu0 %728
        %730 = vrot.lane.b32.xlu0 %v639, 1
        %v731 = vpop.permute.xlu0 %730
        %732 = vrot.lane.b32.xlu0 %v640, 1
        %v733 = vpop.permute.xlu0 %732
        %734 = vrot.lane.b32.xlu0 %v641, 1
        %v735 = vpop.permute.xlu0 %734
        %736 = vrot.lane.b32.xlu0 %v642, 1
        %v737 = vpop.permute.xlu0 %736
        %738 = vrot.lane.b32.xlu0 %v643, 1
        %v739 = vpop.permute.xlu0 %738
        %v772 = vsub.f32 %v612, %v677
        %v773 = vsub.f32 %v613, %v679
        %v774 = vsub.f32 %v614, %v681
        %v775 = vsub.f32 %v615, %v683
        %v776 = vsub.f32 %v616, %v685
        %v777 = vsub.f32 %v617, %v687
        %v778 = vsub.f32 %v618, %v689
        %v779 = vsub.f32 %v619, %v691
        %v780 = vsub.f32 %v620, %v693
        %v781 = vsub.f32 %v621, %v695
        %v782 = vsub.f32 %v622, %v697
        %v783 = vsub.f32 %v623, %v699
        %v784 = vsub.f32 %v624, %v701
        %v785 = vsub.f32 %v625, %v703
        %v786 = vsub.f32 %v626, %v705
        %v787 = vsub.f32 %v627, %v707
        %v788 = vsub.f32 %v628, %v709
        %v789 = vsub.f32 %v629, %v711
        %v790 = vsub.f32 %v630, %v713
        %v791 = vsub.f32 %v631, %v715
        %v792 = vsub.f32 %v632, %v717
        %v793 = vsub.f32 %v633, %v719
        %v794 = vsub.f32 %v634, %v721
        %v795 = vsub.f32 %v635, %v723
        %v796 = vsub.f32 %v636, %v725
        %v797 = vsub.f32 %v637, %v727
        %v798 = vsub.f32 %v638, %v729
        %v799 = vsub.f32 %v639, %v731
        %v800 = vsub.f32 %v640, %v733
        %v801 = vsub.f32 %v641, %v735
        %v802 = vsub.f32 %v642, %v737
        %v803 = vsub.f32 %v643, %v739
        %v804 = vld [vmem:[%s2 + $0x4] sm:$0x1]
        %806 = vset.pattern.permute.xlu0 1
        %807 = vperm.xlu0 %806, %v772
        %v808 = vpop.permute.xlu0 %807
        %811 = vset.pattern.permute.xlu0 1
        %812 = vperm.xlu0 %811, %v773
        %v813 = vpop.permute.xlu0 %812
        %816 = vset.pattern.permute.xlu0 1
        %817 = vperm.xlu0 %816, %v774
        %v818 = vpop.permute.xlu0 %817
        %821 = vset.pattern.permute.xlu0 1
        %822 = vperm.xlu0 %821, %v775
        %v823 = vpop.permute.xlu0 %822
        %826 = vset.pattern.permute.xlu0 1
        %827 = vperm.xlu0 %826, %v776
        %v828 = vpop.permute.xlu0 %827
        %831 = vset.pattern.permute.xlu0 1
        %832 = vperm.xlu0 %831, %v777
        %v833 = vpop.permute.xlu0 %832
        %836 = vset.pattern.permute.xlu0 1
        %837 = vperm.xlu0 %836, %v778
        %v838 = vpop.permute.xlu0 %837
        %841 = vset.pattern.permute.xlu0 1
        %842 = vperm.xlu0 %841, %v779
        %v843 = vpop.permute.xlu0 %842
        %846 = vset.pattern.permute.xlu0 1
        %847 = vperm.xlu0 %846, %v780
        %v848 = vpop.permute.xlu0 %847
        %851 = vset.pattern.permute.xlu0 1
        %852 = vperm.xlu0 %851, %v781
        %v853 = vpop.permute.xlu0 %852
        %856 = vset.pattern.permute.xlu0 1
        %857 = vperm.xlu0 %856, %v782
        %v858 = vpop.permute.xlu0 %857
        %861 = vset.pattern.permute.xlu0 1
        %862 = vperm.xlu0 %861, %v783
        %v863 = vpop.permute.xlu0 %862
        %866 = vset.pattern.permute.xlu0 1
        %867 = vperm.xlu0 %866, %v784
        %v868 = vpop.permute.xlu0 %867
        %871 = vset.pattern.permute.xlu0 1
        %872 = vperm.xlu0 %871, %v785
        %v873 = vpop.permute.xlu0 %872
        %876 = vset.pattern.permute.xlu0 1
        %877 = vperm.xlu0 %876, %v786
        %v878 = vpop.permute.xlu0 %877
        %881 = vset.pattern.permute.xlu0 1
        %882 = vperm.xlu0 %881, %v787
        %v883 = vpop.permute.xlu0 %882
        %886 = vset.pattern.permute.xlu0 1
        %887 = vperm.xlu0 %886, %v788
        %v888 = vpop.permute.xlu0 %887
        %891 = vset.pattern.permute.xlu0 1
        %892 = vperm.xlu0 %891, %v789
        %v893 = vpop.permute.xlu0 %892
        %896 = vset.pattern.permute.xlu0 1
        %897 = vperm.xlu0 %896, %v790
        %v898 = vpop.permute.xlu0 %897
        %901 = vset.pattern.permute.xlu0 1
        %902 = vperm.xlu0 %901, %v791
        %v903 = vpop.permute.xlu0 %902
        %906 = vset.pattern.permute.xlu0 1
        %907 = vperm.xlu0 %906, %v792
        %v908 = vpop.permute.xlu0 %907
        %911 = vset.pattern.permute.xlu0 1
        %912 = vperm.xlu0 %911, %v793
        %v913 = vpop.permute.xlu0 %912
        %916 = vset.pattern.permute.xlu0 1
        %917 = vperm.xlu0 %916, %v794
        %v918 = vpop.permute.xlu0 %917
        %921 = vset.pattern.permute.xlu0 1
        %922 = vperm.xlu0 %921, %v795
        %v923 = vpop.permute.xlu0 %922
        %926 = vset.pattern.permute.xlu0 1
        %927 = vperm.xlu0 %926, %v796
        %v928 = vpop.permute.xlu0 %927
        %931 = vset.pattern.permute.xlu0 1
        %932 = vperm.xlu0 %931, %v797
        %v933 = vpop.permute.xlu0 %932
        %936 = vset.pattern.permute.xlu0 1
        %937 = vperm.xlu0 %936, %v798
        %v938 = vpop.permute.xlu0 %937
        %941 = vset.pattern.permute.xlu0 1
        %942 = vperm.xlu0 %941, %v799
        %v943 = vpop.permute.xlu0 %942
        %946 = vset.pattern.permute.xlu0 1
        %947 = vperm.xlu0 %946, %v800
        %v948 = vpop.permute.xlu0 %947
        %951 = vset.pattern.permute.xlu0 1
        %952 = vperm.xlu0 %951, %v801
        %v953 = vpop.permute.xlu0 %952
        %956 = vset.pattern.permute.xlu0 1
        %957 = vperm.xlu0 %956, %v802
        %v958 = vpop.permute.xlu0 %957
        %961 = vset.pattern.permute.xlu0 1
        %962 = vperm.xlu0 %961, %v803
        %v963 = vpop.permute.xlu0 %962
        %v965 = vlaneseq
        %v966 = vshrl.u32 %v965, 7
        %v967 = vsub.s32 0, %v966
        %v968 = vrot.slane %v804, %v967
        %v969 = vmul.f32 %v808, %v968
        %v970 = vmul.f32 %v813, %v968
        %v971 = vmul.f32 %v818, %v968
        %v972 = vmul.f32 %v823, %v968
        %v973 = vmul.f32 %v828, %v968
        %v974 = vmul.f32 %v833, %v968
        %v975 = vmul.f32 %v838, %v968
        %v976 = vmul.f32 %v843, %v968
        %v977 = vmul.f32 %v848, %v968
        %v978 = vmul.f32 %v853, %v968
        %v979 = vmul.f32 %v858, %v968
        %v980 = vmul.f32 %v863, %v968
        %v981 = vmul.f32 %v868, %v968
        %v982 = vmul.f32 %v873, %v968
        %v983 = vmul.f32 %v878, %v968
        %v984 = vmul.f32 %v883, %v968
        %v985 = vmul.f32 %v888, %v968
        %v986 = vmul.f32 %v893, %v968
        %v987 = vmul.f32 %v898, %v968
        %v988 = vmul.f32 %v903, %v968
        %v989 = vmul.f32 %v908, %v968
        %v990 = vmul.f32 %v913, %v968
        %v991 = vmul.f32 %v918, %v968
        %v992 = vmul.f32 %v923, %v968
        %v993 = vmul.f32 %v928, %v968
        %v994 = vmul.f32 %v933, %v968
        %v995 = vmul.f32 %v938, %v968
        %v996 = vmul.f32 %v943, %v968
        %v997 = vmul.f32 %v948, %v968
        %v998 = vmul.f32 %v953, %v968
        %v999 = vmul.f32 %v958, %v968
        %v1000 = vmul.f32 %v963, %v968
        %1001 = vset.pattern.permute.xlu0 0
        %1002 = vperm.xlu0 %1001, %v612
        %v1003 = vpop.permute.xlu0 %1002
        %1005 = vset.pattern.permute.xlu0 0
        %1006 = vperm.xlu0 %1005, %v613
        %v1007 = vpop.permute.xlu0 %1006
        %1009 = vset.pattern.permute.xlu0 0
        %1010 = vperm.xlu0 %1009, %v614
        %v1011 = vpop.permute.xlu0 %1010
        %1013 = vset.pattern.permute.xlu0 0
        %1014 = vperm.xlu0 %1013, %v615
        %v1015 = vpop.permute.xlu0 %1014
        %1017 = vset.pattern.permute.xlu0 0
        %1018 = vperm.xlu0 %1017, %v616
        %v1019 = vpop.permute.xlu0 %1018
        %1021 = vset.pattern.permute.xlu0 0
        %1022 = vperm.xlu0 %1021, %v617
        %v1023 = vpop.permute.xlu0 %1022
        %1025 = vset.pattern.permute.xlu0 0
        %1026 = vperm.xlu0 %1025, %v618
        %v1027 = vpop.permute.xlu0 %1026
        %1029 = vset.pattern.permute.xlu0 0
        %1030 = vperm.xlu0 %1029, %v619
        %v1031 = vpop.permute.xlu0 %1030
        %1033 = vset.pattern.permute.xlu0 0
        %1034 = vperm.xlu0 %1033, %v620
        %v1035 = vpop.permute.xlu0 %1034
        %1037 = vset.pattern.permute.xlu0 0
        %1038 = vperm.xlu0 %1037, %v621
        %v1039 = vpop.permute.xlu0 %1038
        %1041 = vset.pattern.permute.xlu0 0
        %1042 = vperm.xlu0 %1041, %v622
        %v1043 = vpop.permute.xlu0 %1042
        %1045 = vset.pattern.permute.xlu0 0
        %1046 = vperm.xlu0 %1045, %v623
        %v1047 = vpop.permute.xlu0 %1046
        %1049 = vset.pattern.permute.xlu0 0
        %1050 = vperm.xlu0 %1049, %v624
        %v1051 = vpop.permute.xlu0 %1050
        %1053 = vset.pattern.permute.xlu0 0
        %1054 = vperm.xlu0 %1053, %v625
        %v1055 = vpop.permute.xlu0 %1054
        %1057 = vset.pattern.permute.xlu0 0
        %1058 = vperm.xlu0 %1057, %v626
        %v1059 = vpop.permute.xlu0 %1058
        %1061 = vset.pattern.permute.xlu0 0
        %1062 = vperm.xlu0 %1061, %v627
        %v1063 = vpop.permute.xlu0 %1062
        %1065 = vset.pattern.permute.xlu0 0
        %1066 = vperm.xlu0 %1065, %v628
        %v1067 = vpop.permute.xlu0 %1066
        %1069 = vset.pattern.permute.xlu0 0
        %1070 = vperm.xlu0 %1069, %v629
        %v1071 = vpop.permute.xlu0 %1070
        %1073 = vset.pattern.permute.xlu0 0
        %1074 = vperm.xlu0 %1073, %v630
        %v1075 = vpop.permute.xlu0 %1074
        %1077 = vset.pattern.permute.xlu0 0
        %1078 = vperm.xlu0 %1077, %v631
        %v1079 = vpop.permute.xlu0 %1078
        %1081 = vset.pattern.permute.xlu0 0
        %1082 = vperm.xlu0 %1081, %v632
        %v1083 = vpop.permute.xlu0 %1082
        %1085 = vset.pattern.permute.xlu0 0
        %1086 = vperm.xlu0 %1085, %v633
        %v1087 = vpop.permute.xlu0 %1086
        %1089 = vset.pattern.permute.xlu0 0
        %1090 = vperm.xlu0 %1089, %v634
        %v1091 = vpop.permute.xlu0 %1090
        %1093 = vset.pattern.permute.xlu0 0
        %1094 = vperm.xlu0 %1093, %v635
        %v1095 = vpop.permute.xlu0 %1094
        %1097 = vset.pattern.permute.xlu0 0
        %1098 = vperm.xlu0 %1097, %v636
        %v1099 = vpop.permute.xlu0 %1098
        %1101 = vset.pattern.permute.xlu0 0
        %1102 = vperm.xlu0 %1101, %v637
        %v1103 = vpop.permute.xlu0 %1102
        %1105 = vset.pattern.permute.xlu0 0
        %1106 = vperm.xlu0 %1105, %v638
        %v1107 = vpop.permute.xlu0 %1106
        %1109 = vset.pattern.permute.xlu0 0
        %1110 = vperm.xlu0 %1109, %v639
        %v1111 = vpop.permute.xlu0 %1110
        %1113 = vset.pattern.permute.xlu0 0
        %1114 = vperm.xlu0 %1113, %v640
        %v1115 = vpop.permute.xlu0 %1114
        %1117 = vset.pattern.permute.xlu0 0
        %1118 = vperm.xlu0 %1117, %v641
        %v1119 = vpop.permute.xlu0 %1118
        %1121 = vset.pattern.permute.xlu0 0
        %1122 = vperm.xlu0 %1121, %v642
        %v1123 = vpop.permute.xlu0 %1122
        %1125 = vset.pattern.permute.xlu0 0
        %1126 = vperm.xlu0 %1125, %v643
        %v1127 = vpop.permute.xlu0 %1126
        %v1129 = vadd.f32 %v1003, %v969
        %v1130 = vadd.f32 %v1007, %v970
        %v1131 = vadd.f32 %v1011, %v971
        %v1132 = vadd.f32 %v1015, %v972
        %v1133 = vadd.f32 %v1019, %v973
        %v1134 = vadd.f32 %v1023, %v974
        %v1135 = vadd.f32 %v1027, %v975
        %v1136 = vadd.f32 %v1031, %v976
        %v1137 = vadd.f32 %v1035, %v977
        %v1138 = vadd.f32 %v1039, %v978
        %v1139 = vadd.f32 %v1043, %v979
        %v1140 = vadd.f32 %v1047, %v980
        %v1141 = vadd.f32 %v1051, %v981
        %v1142 = vadd.f32 %v1055, %v982
        %v1143 = vadd.f32 %v1059, %v983
        %v1144 = vadd.f32 %v1063, %v984
        %v1145 = vadd.f32 %v1067, %v985
        %v1146 = vadd.f32 %v1071, %v986
        %v1147 = vadd.f32 %v1075, %v987
        %v1148 = vadd.f32 %v1079, %v988
        %v1149 = vadd.f32 %v1083, %v989
        %v1150 = vadd.f32 %v1087, %v990
        %v1151 = vadd.f32 %v1091, %v991
        %v1152 = vadd.f32 %v1095, %v992
        %v1153 = vadd.f32 %v1099, %v993
        %v1154 = vadd.f32 %v1103, %v994
        %v1155 = vadd.f32 %v1107, %v995
        %v1156 = vadd.f32 %v1111, %v996
        %v1157 = vadd.f32 %v1115, %v997
        %v1158 = vadd.f32 %v1119, %v998
        %v1159 = vadd.f32 %v1123, %v999
        %v1160 = vadd.f32 %v1127, %v1000
        %1161 = vrot.lane.b32.xlu0 %v612, 2
        %v1162 = vpop.permute.xlu0 %1161
        %1163 = vrot.lane.b32.xlu0 %v613, 2
        %v1164 = vpop.permute.xlu0 %1163
        %1165 = vrot.lane.b32.xlu0 %v614, 2
        %v1166 = vpop.permute.xlu0 %1165
        %1167 = vrot.lane.b32.xlu0 %v615, 2
        %v1168 = vpop.permute.xlu0 %1167
        %1169 = vrot.lane.b32.xlu0 %v616, 2
        %v1170 = vpop.permute.xlu0 %1169
        %1171 = vrot.lane.b32.xlu0 %v617, 2
        %v1172 = vpop.permute.xlu0 %1171
        %1173 = vrot.lane.b32.xlu0 %v618, 2
        %v1174 = vpop.permute.xlu0 %1173
        %1175 = vrot.lane.b32.xlu0 %v619, 2
        %v1176 = vpop.permute.xlu0 %1175
        %1177 = vrot.lane.b32.xlu0 %v620, 2
        %v1178 = vpop.permute.xlu0 %1177
        %1179 = vrot.lane.b32.xlu0 %v621, 2
        %v1180 = vpop.permute.xlu0 %1179
        %1181 = vrot.lane.b32.xlu0 %v622, 2
        %v1182 = vpop.permute.xlu0 %1181
        %1183 = vrot.lane.b32.xlu0 %v623, 2
        %v1184 = vpop.permute.xlu0 %1183
        %1185 = vrot.lane.b32.xlu0 %v624, 2
        %v1186 = vpop.permute.xlu0 %1185
        %1187 = vrot.lane.b32.xlu0 %v625, 2
        %v1188 = vpop.permute.xlu0 %1187
        %1189 = vrot.lane.b32.xlu0 %v626, 2
        %v1190 = vpop.permute.xlu0 %1189
        %1191 = vrot.lane.b32.xlu0 %v627, 2
        %v1192 = vpop.permute.xlu0 %1191
        %1193 = vrot.lane.b32.xlu0 %v628, 2
        %v1194 = vpop.permute.xlu0 %1193
        %1195 = vrot.lane.b32.xlu0 %v629, 2
        %v1196 = vpop.permute.xlu0 %1195
        %1197 = vrot.lane.b32.xlu0 %v630, 2
        %v1198 = vpop.permute.xlu0 %1197
        %1199 = vrot.lane.b32.xlu0 %v631, 2
        %v1200 = vpop.permute.xlu0 %1199
        %1201 = vrot.lane.b32.xlu0 %v632, 2
        %v1202 = vpop.permute.xlu0 %1201
        %1203 = vrot.lane.b32.xlu0 %v633, 2
        %v1204 = vpop.permute.xlu0 %1203
        %1205 = vrot.lane.b32.xlu0 %v634, 2
        %v1206 = vpop.permute.xlu0 %1205
        %1207 = vrot.lane.b32.xlu0 %v635, 2
        %v1208 = vpop.permute.xlu0 %1207
        %1209 = vrot.lane.b32.xlu0 %v636, 2
        %v1210 = vpop.permute.xlu0 %1209
        %1211 = vrot.lane.b32.xlu0 %v637, 2
        %v1212 = vpop.permute.xlu0 %1211
        %1213 = vrot.lane.b32.xlu0 %v638, 2
        %v1214 = vpop.permute.xlu0 %1213
        %1215 = vrot.lane.b32.xlu0 %v639, 2
        %v1216 = vpop.permute.xlu0 %1215
        %1217 = vrot.lane.b32.xlu0 %v640, 2
        %v1218 = vpop.permute.xlu0 %1217
        %1219 = vrot.lane.b32.xlu0 %v641, 2
        %v1220 = vpop.permute.xlu0 %1219
        %1221 = vrot.lane.b32.xlu0 %v642, 2
        %v1222 = vpop.permute.xlu0 %1221
        %1223 = vrot.lane.b32.xlu0 %v643, 2
        %v1224 = vpop.permute.xlu0 %1223
        %v1257 = vsub.f32 %v612, %v1162
        %v1258 = vsub.f32 %v613, %v1164
        %v1259 = vsub.f32 %v614, %v1166
        %v1260 = vsub.f32 %v615, %v1168
        %v1261 = vsub.f32 %v616, %v1170
        %v1262 = vsub.f32 %v617, %v1172
        %v1263 = vsub.f32 %v618, %v1174
        %v1264 = vsub.f32 %v619, %v1176
        %v1265 = vsub.f32 %v620, %v1178
        %v1266 = vsub.f32 %v621, %v1180
        %v1267 = vsub.f32 %v622, %v1182
        %v1268 = vsub.f32 %v623, %v1184
        %v1269 = vsub.f32 %v624, %v1186
        %v1270 = vsub.f32 %v625, %v1188
        %v1271 = vsub.f32 %v626, %v1190
        %v1272 = vsub.f32 %v627, %v1192
        %v1273 = vsub.f32 %v628, %v1194
        %v1274 = vsub.f32 %v629, %v1196
        %v1275 = vsub.f32 %v630, %v1198
        %v1276 = vsub.f32 %v631, %v1200
        %v1277 = vsub.f32 %v632, %v1202
        %v1278 = vsub.f32 %v633, %v1204
        %v1279 = vsub.f32 %v634, %v1206
        %v1280 = vsub.f32 %v635, %v1208
        %v1281 = vsub.f32 %v636, %v1210
        %v1282 = vsub.f32 %v637, %v1212
        %v1283 = vsub.f32 %v638, %v1214
        %v1284 = vsub.f32 %v639, %v1216
        %v1285 = vsub.f32 %v640, %v1218
        %v1286 = vsub.f32 %v641, %v1220
        %v1287 = vsub.f32 %v642, %v1222
        %v1288 = vsub.f32 %v643, %v1224
        %v1289 = vld [vmem:[%s2 + $0x5] sm:$0x1]
        %1291 = vset.pattern.permute.xlu0 2
        %1292 = vperm.xlu0 %1291, %v1257
        %v1293 = vpop.permute.xlu0 %1292
        %1296 = vset.pattern.permute.xlu0 2
        %1297 = vperm.xlu0 %1296, %v1258
        %v1298 = vpop.permute.xlu0 %1297
        %1301 = vset.pattern.permute.xlu0 2
        %1302 = vperm.xlu0 %1301, %v1259
        %v1303 = vpop.permute.xlu0 %1302
        %1306 = vset.pattern.permute.xlu0 2
        %1307 = vperm.xlu0 %1306, %v1260
        %v1308 = vpop.permute.xlu0 %1307
        %1311 = vset.pattern.permute.xlu0 2
        %1312 = vperm.xlu0 %1311, %v1261
        %v1313 = vpop.permute.xlu0 %1312
        %1316 = vset.pattern.permute.xlu0 2
        %1317 = vperm.xlu0 %1316, %v1262
        %v1318 = vpop.permute.xlu0 %1317
        %1321 = vset.pattern.permute.xlu0 2
        %1322 = vperm.xlu0 %1321, %v1263
        %v1323 = vpop.permute.xlu0 %1322
        %1326 = vset.pattern.permute.xlu0 2
        %1327 = vperm.xlu0 %1326, %v1264
        %v1328 = vpop.permute.xlu0 %1327
        %1331 = vset.pattern.permute.xlu0 2
        %1332 = vperm.xlu0 %1331, %v1265
        %v1333 = vpop.permute.xlu0 %1332
        %1336 = vset.pattern.permute.xlu0 2
        %1337 = vperm.xlu0 %1336, %v1266
        %v1338 = vpop.permute.xlu0 %1337
        %1341 = vset.pattern.permute.xlu0 2
        %1342 = vperm.xlu0 %1341, %v1267
        %v1343 = vpop.permute.xlu0 %1342
        %1346 = vset.pattern.permute.xlu0 2
        %1347 = vperm.xlu0 %1346, %v1268
        %v1348 = vpop.permute.xlu0 %1347
        %1351 = vset.pattern.permute.xlu0 2
        %1352 = vperm.xlu0 %1351, %v1269
        %v1353 = vpop.permute.xlu0 %1352
        %1356 = vset.pattern.permute.xlu0 2
        %1357 = vperm.xlu0 %1356, %v1270
        %v1358 = vpop.permute.xlu0 %1357
        %1361 = vset.pattern.permute.xlu0 2
        %1362 = vperm.xlu0 %1361, %v1271
        %v1363 = vpop.permute.xlu0 %1362
        %1366 = vset.pattern.permute.xlu0 2
        %1367 = vperm.xlu0 %1366, %v1272
        %v1368 = vpop.permute.xlu0 %1367
        %1371 = vset.pattern.permute.xlu0 2
        %1372 = vperm.xlu0 %1371, %v1273
        %v1373 = vpop.permute.xlu0 %1372
        %1376 = vset.pattern.permute.xlu0 2
        %1377 = vperm.xlu0 %1376, %v1274
        %v1378 = vpop.permute.xlu0 %1377
        %1381 = vset.pattern.permute.xlu0 2
        %1382 = vperm.xlu0 %1381, %v1275
        %v1383 = vpop.permute.xlu0 %1382
        %1386 = vset.pattern.permute.xlu0 2
        %1387 = vperm.xlu0 %1386, %v1276
        %v1388 = vpop.permute.xlu0 %1387
        %1391 = vset.pattern.permute.xlu0 2
        %1392 = vperm.xlu0 %1391, %v1277
        %v1393 = vpop.permute.xlu0 %1392
        %1396 = vset.pattern.permute.xlu0 2
        %1397 = vperm.xlu0 %1396, %v1278
        %v1398 = vpop.permute.xlu0 %1397
        %1401 = vset.pattern.permute.xlu0 2
        %1402 = vperm.xlu0 %1401, %v1279
        %v1403 = vpop.permute.xlu0 %1402
        %1406 = vset.pattern.permute.xlu0 2
        %1407 = vperm.xlu0 %1406, %v1280
        %v1408 = vpop.permute.xlu0 %1407
        %1411 = vset.pattern.permute.xlu0 2
        %1412 = vperm.xlu0 %1411, %v1281
        %v1413 = vpop.permute.xlu0 %1412
        %1416 = vset.pattern.permute.xlu0 2
        %1417 = vperm.xlu0 %1416, %v1282
        %v1418 = vpop.permute.xlu0 %1417
        %1421 = vset.pattern.permute.xlu0 2
        %1422 = vperm.xlu0 %1421, %v1283
        %v1423 = vpop.permute.xlu0 %1422
        %1426 = vset.pattern.permute.xlu0 2
        %1427 = vperm.xlu0 %1426, %v1284
        %v1428 = vpop.permute.xlu0 %1427
        %1431 = vset.pattern.permute.xlu0 2
        %1432 = vperm.xlu0 %1431, %v1285
        %v1433 = vpop.permute.xlu0 %1432
        %1436 = vset.pattern.permute.xlu0 2
        %1437 = vperm.xlu0 %1436, %v1286
        %v1438 = vpop.permute.xlu0 %1437
        %1441 = vset.pattern.permute.xlu0 2
        %1442 = vperm.xlu0 %1441, %v1287
        %v1443 = vpop.permute.xlu0 %1442
        %1446 = vset.pattern.permute.xlu0 2
        %1447 = vperm.xlu0 %1446, %v1288
        %v1448 = vpop.permute.xlu0 %1447
        %v1450 = vlaneseq
        %v1451 = vshrl.u32 %v1450, 7
        %v1452 = vsub.s32 0, %v1451
        %v1453 = vrot.slane %v1289, %v1452
        %v1454 = vmul.f32 %v1293, %v1453
        %v1455 = vmul.f32 %v1298, %v1453
        %v1456 = vmul.f32 %v1303, %v1453
        %v1457 = vmul.f32 %v1308, %v1453
        %v1458 = vmul.f32 %v1313, %v1453
        %v1459 = vmul.f32 %v1318, %v1453
        %v1460 = vmul.f32 %v1323, %v1453
        %v1461 = vmul.f32 %v1328, %v1453
        %v1462 = vmul.f32 %v1333, %v1453
        %v1463 = vmul.f32 %v1338, %v1453
        %v1464 = vmul.f32 %v1343, %v1453
        %v1465 = vmul.f32 %v1348, %v1453
        %v1466 = vmul.f32 %v1353, %v1453
        %v1467 = vmul.f32 %v1358, %v1453
        %v1468 = vmul.f32 %v1363, %v1453
        %v1469 = vmul.f32 %v1368, %v1453
        %v1470 = vmul.f32 %v1373, %v1453
        %v1471 = vmul.f32 %v1378, %v1453
        %v1472 = vmul.f32 %v1383, %v1453
        %v1473 = vmul.f32 %v1388, %v1453
        %v1474 = vmul.f32 %v1393, %v1453
        %v1475 = vmul.f32 %v1398, %v1453
        %v1476 = vmul.f32 %v1403, %v1453
        %v1477 = vmul.f32 %v1408, %v1453
        %v1478 = vmul.f32 %v1413, %v1453
        %v1479 = vmul.f32 %v1418, %v1453
        %v1480 = vmul.f32 %v1423, %v1453
        %v1481 = vmul.f32 %v1428, %v1453
        %v1482 = vmul.f32 %v1433, %v1453
        %v1483 = vmul.f32 %v1438, %v1453
        %v1484 = vmul.f32 %v1443, %v1453
        %v1485 = vmul.f32 %v1448, %v1453
        %v1486 = vadd.f32 %v1129, %v1454
        %v1487 = vadd.f32 %v1130, %v1455
        %v1488 = vadd.f32 %v1131, %v1456
        %v1489 = vadd.f32 %v1132, %v1457
        %v1490 = vadd.f32 %v1133, %v1458
        %v1491 = vadd.f32 %v1134, %v1459
        %v1492 = vadd.f32 %v1135, %v1460
        %v1493 = vadd.f32 %v1136, %v1461
        %v1494 = vadd.f32 %v1137, %v1462
        %v1495 = vadd.f32 %v1138, %v1463
        %v1496 = vadd.f32 %v1139, %v1464
        %v1497 = vadd.f32 %v1140, %v1465
        %v1498 = vadd.f32 %v1141, %v1466
        %v1499 = vadd.f32 %v1142, %v1467
        %v1500 = vadd.f32 %v1143, %v1468
        %v1501 = vadd.f32 %v1144, %v1469
        %v1502 = vadd.f32 %v1145, %v1470
        %v1503 = vadd.f32 %v1146, %v1471
        %v1504 = vadd.f32 %v1147, %v1472
        %v1505 = vadd.f32 %v1148, %v1473
        %v1506 = vadd.f32 %v1149, %v1474
        %v1507 = vadd.f32 %v1150, %v1475
        %v1508 = vadd.f32 %v1151, %v1476
        %v1509 = vadd.f32 %v1152, %v1477
        %v1510 = vadd.f32 %v1153, %v1478
        %v1511 = vadd.f32 %v1154, %v1479
        %v1512 = vadd.f32 %v1155, %v1480
        %v1513 = vadd.f32 %v1156, %v1481
        %v1514 = vadd.f32 %v1157, %v1482
        %v1515 = vadd.f32 %v1158, %v1483
        %v1516 = vadd.f32 %v1159, %v1484
        %v1517 = vadd.f32 %v1160, %v1485
        %v1518 = vmul.f32 %v1486, %v486
        %v1519 = vmul.f32 %v1487, %v489
        %v1520 = vmul.f32 %v1488, %v494
        %v1521 = vmul.f32 %v1489, %v497
        %v1522 = vmul.f32 %v1490, %v502
        %v1523 = vmul.f32 %v1491, %v505
        %v1524 = vmul.f32 %v1492, %v510
        %v1525 = vmul.f32 %v1493, %v513
        %v1526 = vmul.f32 %v1494, %v518
        %v1527 = vmul.f32 %v1495, %v521
        %v1528 = vmul.f32 %v1496, %v526
        %v1529 = vmul.f32 %v1497, %v529
        %v1530 = vmul.f32 %v1498, %v534
        %v1531 = vmul.f32 %v1499, %v537
        %v1532 = vmul.f32 %v1500, %v542
        %v1533 = vmul.f32 %v1501, %v545
        %v1534 = vmul.f32 %v1502, %v550
        %v1535 = vmul.f32 %v1503, %v553
        %v1536 = vmul.f32 %v1504, %v558
        %v1537 = vmul.f32 %v1505, %v561
        %v1538 = vmul.f32 %v1506, %v566
        %v1539 = vmul.f32 %v1507, %v569
        %v1540 = vmul.f32 %v1508, %v574
        %v1541 = vmul.f32 %v1509, %v577
        %v1542 = vmul.f32 %v1510, %v582
        %v1543 = vmul.f32 %v1511, %v585
        %v1544 = vmul.f32 %v1512, %v590
        %v1545 = vmul.f32 %v1513, %v593
        %v1546 = vmul.f32 %v1514, %v598
        %v1547 = vmul.f32 %v1515, %v601
        %v1548 = vmul.f32 %v1516, %v606
        %v1549 = vmul.f32 %v1517, %v609
        %v1550 = vld [vmem:[#allocation2] sm:$0x1]
        %v1551 = vadd.f32 %v1518, %v1519
        %v1552 = vadd.f32 %v1551, %v1520
        %v1553 = vadd.f32 %v1552, %v1521
        %v1554 = vadd.f32 %v1553, %v1522
        %v1555 = vadd.f32 %v1554, %v1523
        %v1556 = vadd.f32 %v1555, %v1524
        %v1557 = vadd.f32 %v1556, %v1525
        %v1558 = vadd.f32 %v1557, %v1526
        %v1559 = vadd.f32 %v1558, %v1527
        %v1560 = vadd.f32 %v1559, %v1528
        %v1561 = vadd.f32 %v1560, %v1529
        %v1562 = vadd.f32 %v1561, %v1530
        %v1563 = vadd.f32 %v1562, %v1531
        %v1564 = vadd.f32 %v1563, %v1532
        %v1565 = vadd.f32 %v1564, %v1533
        %v1566 = vadd.f32 %v1565, %v1534
        %v1567 = vadd.f32 %v1566, %v1535
        %v1568 = vadd.f32 %v1567, %v1536
        %v1569 = vadd.f32 %v1568, %v1537
        %v1570 = vadd.f32 %v1569, %v1538
        %v1571 = vadd.f32 %v1570, %v1539
        %v1572 = vadd.f32 %v1571, %v1540
        %v1573 = vadd.f32 %v1572, %v1541
        %v1574 = vadd.f32 %v1573, %v1542
        %v1575 = vadd.f32 %v1574, %v1543
        %v1576 = vadd.f32 %v1575, %v1544
        %v1577 = vadd.f32 %v1576, %v1545
        %v1578 = vadd.f32 %v1577, %v1546
        %v1579 = vadd.f32 %v1578, %v1547
        %v1580 = vadd.f32 %v1579, %v1548
        %v1581 = vadd.f32 %v1580, %v1549
        %v1582 = vrot.slane %v1581, 4
        %v1583 = vadd.f32 %v1581, %v1582
        %v1584 = vrot.slane %v1583, 2
        %v1585 = vadd.f32 %v1583, %v1584
        %v1586 = vrot.slane %v1585, 1
        %v1587 = vadd.f32 %v1585, %v1586
        %v1588 = vadd.f32 %v1550, %v1587
        %1589 = vst [vmem:[#allocation2] sm:$0x1] %v1588
        %v1590 = vld [vmem:[#allocation3] sm:$0x1]
        %v1591 = vmul.f32 %v1518, %v486
        %v1592 = vmul.f32 %v1519, %v489
        %v1593 = vmul.f32 %v1520, %v494
        %v1594 = vmul.f32 %v1521, %v497
        %v1595 = vmul.f32 %v1522, %v502
        %v1596 = vmul.f32 %v1523, %v505
        %v1597 = vmul.f32 %v1524, %v510
        %v1598 = vmul.f32 %v1525, %v513
        %v1599 = vmul.f32 %v1526, %v518
        %v1600 = vmul.f32 %v1527, %v521
        %v1601 = vmul.f32 %v1528, %v526
        %v1602 = vmul.f32 %v1529, %v529
        %v1603 = vmul.f32 %v1530, %v534
        %v1604 = vmul.f32 %v1531, %v537
        %v1605 = vmul.f32 %v1532, %v542
        %v1606 = vmul.f32 %v1533, %v545
        %v1607 = vmul.f32 %v1534, %v550
        %v1608 = vmul.f32 %v1535, %v553
        %v1609 = vmul.f32 %v1536, %v558
        %v1610 = vmul.f32 %v1537, %v561
        %v1611 = vmul.f32 %v1538, %v566
        %v1612 = vmul.f32 %v1539, %v569
        %v1613 = vmul.f32 %v1540, %v574
        %v1614 = vmul.f32 %v1541, %v577
        %v1615 = vmul.f32 %v1542, %v582
        %v1616 = vmul.f32 %v1543, %v585
        %v1617 = vmul.f32 %v1544, %v590
        %v1618 = vmul.f32 %v1545, %v593
        %v1619 = vmul.f32 %v1546, %v598
        %v1620 = vmul.f32 %v1547, %v601
        %v1621 = vmul.f32 %v1548, %v606
        %v1622 = vmul.f32 %v1549, %v609
        %v1623 = vadd.f32 %v1591, %v1592
        %v1624 = vadd.f32 %v1623, %v1593
        %v1625 = vadd.f32 %v1624, %v1594
        %v1626 = vadd.f32 %v1625, %v1595
        %v1627 = vadd.f32 %v1626, %v1596
        %v1628 = vadd.f32 %v1627, %v1597
        %v1629 = vadd.f32 %v1628, %v1598
        %v1630 = vadd.f32 %v1629, %v1599
        %v1631 = vadd.f32 %v1630, %v1600
        %v1632 = vadd.f32 %v1631, %v1601
        %v1633 = vadd.f32 %v1632, %v1602
        %v1634 = vadd.f32 %v1633, %v1603
        %v1635 = vadd.f32 %v1634, %v1604
        %v1636 = vadd.f32 %v1635, %v1605
        %v1637 = vadd.f32 %v1636, %v1606
        %v1638 = vadd.f32 %v1637, %v1607
        %v1639 = vadd.f32 %v1638, %v1608
        %v1640 = vadd.f32 %v1639, %v1609
        %v1641 = vadd.f32 %v1640, %v1610
        %v1642 = vadd.f32 %v1641, %v1611
        %v1643 = vadd.f32 %v1642, %v1612
        %v1644 = vadd.f32 %v1643, %v1613
        %v1645 = vadd.f32 %v1644, %v1614
        %v1646 = vadd.f32 %v1645, %v1615
        %v1647 = vadd.f32 %v1646, %v1616
        %v1648 = vadd.f32 %v1647, %v1617
        %v1649 = vadd.f32 %v1648, %v1618
        %v1650 = vadd.f32 %v1649, %v1619
        %v1651 = vadd.f32 %v1650, %v1620
        %v1652 = vadd.f32 %v1651, %v1621
        %v1653 = vadd.f32 %v1652, %v1622
        %v1654 = vrot.slane %v1653, 4
        %v1655 = vadd.f32 %v1653, %v1654
        %v1656 = vrot.slane %v1655, 2
        %v1657 = vadd.f32 %v1655, %v1656
        %v1658 = vrot.slane %v1657, 1
        %v1659 = vadd.f32 %v1657, %v1658
        %v1660 = vadd.f32 %v1590, %v1659
        %1661 = vst [vmem:[#allocation3] sm:$0x1] %v1660
        %s1662 = smul.u32 %s20, 256
        %s1663 = scalar_lea.vmem [#allocation4], %s1662
        %1664 = vst [vmem:[%s1663] sm:$0xff] %v486
        %1665 = vst [vmem:[%s1663 + $0x8] sm:$0xff] %v489
        %1666 = vst [vmem:[%s1663 + $0x10] sm:$0xff] %v494
        %1667 = vst [vmem:[%s1663 + $0x18] sm:$0xff] %v497
        %1668 = vst [vmem:[%s1663 + $0x20] sm:$0xff] %v502
        %1669 = vst [vmem:[%s1663 + $0x28] sm:$0xff] %v505
        %1670 = vst [vmem:[%s1663 + $0x30] sm:$0xff] %v510
        %1671 = vst [vmem:[%s1663 + $0x38] sm:$0xff] %v513
        %1672 = vst [vmem:[%s1663 + $0x40] sm:$0xff] %v518
        %1673 = vst [vmem:[%s1663 + $0x48] sm:$0xff] %v521
        %1674 = vst [vmem:[%s1663 + $0x50] sm:$0xff] %v526
        %1675 = vst [vmem:[%s1663 + $0x58] sm:$0xff] %v529
        %1676 = vst [vmem:[%s1663 + $0x60] sm:$0xff] %v534
        %1677 = vst [vmem:[%s1663 + $0x68] sm:$0xff] %v537
        %1678 = vst [vmem:[%s1663 + $0x70] sm:$0xff] %v542
        %1679 = vst [vmem:[%s1663 + $0x78] sm:$0xff] %v545
        %1680 = vst [vmem:[%s1663 + $0x80] sm:$0xff] %v550
        %1681 = vst [vmem:[%s1663 + $0x88] sm:$0xff] %v553
        %1682 = vst [vmem:[%s1663 + $0x90] sm:$0xff] %v558
        %1683 = vst [vmem:[%s1663 + $0x98] sm:$0xff] %v561
        %1684 = vst [vmem:[%s1663 + $0xa0] sm:$0xff] %v566
        %1685 = vst [vmem:[%s1663 + $0xa8] sm:$0xff] %v569
        %1686 = vst [vmem:[%s1663 + $0xb0] sm:$0xff] %v574
        %1687 = vst [vmem:[%s1663 + $0xb8] sm:$0xff] %v577
        %1688 = vst [vmem:[%s1663 + $0xc0] sm:$0xff] %v582
        %1689 = vst [vmem:[%s1663 + $0xc8] sm:$0xff] %v585
        %1690 = vst [vmem:[%s1663 + $0xd0] sm:$0xff] %v590
        %1691 = vst [vmem:[%s1663 + $0xd8] sm:$0xff] %v593
        %1692 = vst [vmem:[%s1663 + $0xe0] sm:$0xff] %v598
        %1693 = vst [vmem:[%s1663 + $0xe8] sm:$0xff] %v601
        %1694 = vst [vmem:[%s1663 + $0xf0] sm:$0xff] %v606
        %1695 = vst [vmem:[%s1663 + $0xf8] sm:$0xff] %v609
      $region44: #{inception_forward.2} parent=35 // pred_fallthru
        _
      %p1696 = scmp.eq.s32.totalorder %s19, 1
      // Predicated region
      $region45: #{inception_forward.2} parent=35 // pred_check
        %p1697 = pneg %p1696
      $region46: #{inception_forward.2} parent=35 // pred_check_branch
        %1699 = sbr.rel (%p1697) target = $region48
      $region47: #{inception_forward.2} parent=35 // pred_region
        %s1700 = smul.u32 %s20, 256
        %s1701 = scalar_lea.vmem [#allocation4], %s1700
        %v1702 = vld [vmem:[%s1701] sm:$0xff]
        %v1703 = vld [vmem:[%s1701 + $0x8] sm:$0xff]
        %v1704 = vld [vmem:[%s1701 + $0x10] sm:$0xff]
        %v1705 = vld [vmem:[%s1701 + $0x18] sm:$0xff]
        %v1706 = vld [vmem:[%s1701 + $0x20] sm:$0xff]
        %v1707 = vld [vmem:[%s1701 + $0x28] sm:$0xff]
        %v1708 = vld [vmem:[%s1701 + $0x30] sm:$0xff]
        %v1709 = vld [vmem:[%s1701 + $0x38] sm:$0xff]
        %v1710 = vld [vmem:[%s1701 + $0x40] sm:$0xff]
        %v1711 = vld [vmem:[%s1701 + $0x48] sm:$0xff]
        %v1712 = vld [vmem:[%s1701 + $0x50] sm:$0xff]
        %v1713 = vld [vmem:[%s1701 + $0x58] sm:$0xff]
        %v1714 = vld [vmem:[%s1701 + $0x60] sm:$0xff]
        %v1715 = vld [vmem:[%s1701 + $0x68] sm:$0xff]
        %v1716 = vld [vmem:[%s1701 + $0x70] sm:$0xff]
        %v1717 = vld [vmem:[%s1701 + $0x78] sm:$0xff]
        %v1718 = vld [vmem:[%s1701 + $0x80] sm:$0xff]
        %v1719 = vld [vmem:[%s1701 + $0x88] sm:$0xff]
        %v1720 = vld [vmem:[%s1701 + $0x90] sm:$0xff]
        %v1721 = vld [vmem:[%s1701 + $0x98] sm:$0xff]
        %v1722 = vld [vmem:[%s1701 + $0xa0] sm:$0xff]
        %v1723 = vld [vmem:[%s1701 + $0xa8] sm:$0xff]
        %v1724 = vld [vmem:[%s1701 + $0xb0] sm:$0xff]
        %v1725 = vld [vmem:[%s1701 + $0xb8] sm:$0xff]
        %v1726 = vld [vmem:[%s1701 + $0xc0] sm:$0xff]
        %v1727 = vld [vmem:[%s1701 + $0xc8] sm:$0xff]
        %v1728 = vld [vmem:[%s1701 + $0xd0] sm:$0xff]
        %v1729 = vld [vmem:[%s1701 + $0xd8] sm:$0xff]
        %v1730 = vld [vmem:[%s1701 + $0xe0] sm:$0xff]
        %v1731 = vld [vmem:[%s1701 + $0xe8] sm:$0xff]
        %v1732 = vld [vmem:[%s1701 + $0xf0] sm:$0xff]
        %v1733 = vld [vmem:[%s1701 + $0xf8] sm:$0xff]
        %v1734 = vld [vmem:[%s2 + $0x3] sm:$0x1]
        %v1735 = vld [vmem:[#allocation2] sm:$0x1]
        %v1736 = vmul.f32 %v1735, %v1734
        %v1737 = vld [vmem:[#allocation3] sm:$0x1]
        %v1738 = vmul.f32 %v1737, %v1734
        %v1739 = vmul.f32 %v1736, %v1736
        %v1740 = vsub.f32 %v1738, %v1739
        %v1741 = vadd.f32 %v1740, 1e-05
        %v1742 = vrsqrt.pop %v1741
        %v1743 = vld [vmem:[%s2 + $0x1] sm:$0x1]
        %v1744 = vmul.f32 %v1742, %v1743
        %v1746 = vlaneseq
        %v1747 = vshrl.u32 %v1746, 7
        %v1748 = vsub.s32 0, %v1747
        %v1749 = vrot.slane %v1736, %v1748
        %v1751 = vsub.f32 %v1702, %v1749
        %v1752 = vsub.f32 %v1703, %v1749
        %v1753 = vsub.f32 %v1704, %v1749
        %v1754 = vsub.f32 %v1705, %v1749
        %v1755 = vsub.f32 %v1706, %v1749
        %v1756 = vsub.f32 %v1707, %v1749
        %v1757 = vsub.f32 %v1708, %v1749
        %v1758 = vsub.f32 %v1709, %v1749
        %v1759 = vsub.f32 %v1710, %v1749
        %v1760 = vsub.f32 %v1711, %v1749
        %v1761 = vsub.f32 %v1712, %v1749
        %v1762 = vsub.f32 %v1713, %v1749
        %v1763 = vsub.f32 %v1714, %v1749
        %v1764 = vsub.f32 %v1715, %v1749
        %v1765 = vsub.f32 %v1716, %v1749
        %v1766 = vsub.f32 %v1717, %v1749
        %v1767 = vsub.f32 %v1718, %v1749
        %v1768 = vsub.f32 %v1719, %v1749
        %v1769 = vsub.f32 %v1720, %v1749
        %v1770 = vsub.f32 %v1721, %v1749
        %v1771 = vsub.f32 %v1722, %v1749
        %v1772 = vsub.f32 %v1723, %v1749
        %v1773 = vsub.f32 %v1724, %v1749
        %v1774 = vsub.f32 %v1725, %v1749
        %v1775 = vsub.f32 %v1726, %v1749
        %v1776 = vsub.f32 %v1727, %v1749
        %v1777 = vsub.f32 %v1728, %v1749
        %v1778 = vsub.f32 %v1729, %v1749
        %v1779 = vsub.f32 %v1730, %v1749
        %v1780 = vsub.f32 %v1731, %v1749
        %v1781 = vsub.f32 %v1732, %v1749
        %v1782 = vsub.f32 %v1733, %v1749
        %v1784 = vlaneseq
        %v1785 = vshrl.u32 %v1784, 7
        %v1786 = vsub.s32 0, %v1785
        %v1787 = vrot.slane %v1744, %v1786
        %v1789 = vmul.f32 %v1751, %v1787
        %v1790 = vmul.f32 %v1752, %v1787
        %v1791 = vmul.f32 %v1753, %v1787
        %v1792 = vmul.f32 %v1754, %v1787
        %v1793 = vmul.f32 %v1755, %v1787
        %v1794 = vmul.f32 %v1756, %v1787
        %v1795 = vmul.f32 %v1757, %v1787
        %v1796 = vmul.f32 %v1758, %v1787
        %v1797 = vmul.f32 %v1759, %v1787
        %v1798 = vmul.f32 %v1760, %v1787
        %v1799 = vmul.f32 %v1761, %v1787
        %v1800 = vmul.f32 %v1762, %v1787
        %v1801 = vmul.f32 %v1763, %v1787
        %v1802 = vmul.f32 %v1764, %v1787
        %v1803 = vmul.f32 %v1765, %v1787
        %v1804 = vmul.f32 %v1766, %v1787
        %v1805 = vmul.f32 %v1767, %v1787
        %v1806 = vmul.f32 %v1768, %v1787
        %v1807 = vmul.f32 %v1769, %v1787
        %v1808 = vmul.f32 %v1770, %v1787
        %v1809 = vmul.f32 %v1771, %v1787
        %v1810 = vmul.f32 %v1772, %v1787
        %v1811 = vmul.f32 %v1773, %v1787
        %v1812 = vmul.f32 %v1774, %v1787
        %v1813 = vmul.f32 %v1775, %v1787
        %v1814 = vmul.f32 %v1776, %v1787
        %v1815 = vmul.f32 %v1777, %v1787
        %v1816 = vmul.f32 %v1778, %v1787
        %v1817 = vmul.f32 %v1779, %v1787
        %v1818 = vmul.f32 %v1780, %v1787
        %v1819 = vmul.f32 %v1781, %v1787
        %v1820 = vmul.f32 %v1782, %v1787
        %v1821 = vld [vmem:[%s2 + $0x2] sm:$0x1]
        %v1822 = vlaneseq
        %v1823 = vshrl.u32 %v1822, 7
        %v1824 = vsub.s32 0, %v1823
        %v1825 = vrot.slane %v1821, %v1824
        %v1826 = vadd.f32 %v1789, %v1825
        %v1827 = vadd.f32 %v1790, %v1825
        %v1828 = vadd.f32 %v1791, %v1825
        %v1829 = vadd.f32 %v1792, %v1825
        %v1830 = vadd.f32 %v1793, %v1825
        %v1831 = vadd.f32 %v1794, %v1825
        %v1832 = vadd.f32 %v1795, %v1825
        %v1833 = vadd.f32 %v1796, %v1825
        %v1834 = vadd.f32 %v1797, %v1825
        %v1835 = vadd.f32 %v1798, %v1825
        %v1836 = vadd.f32 %v1799, %v1825
        %v1837 = vadd.f32 %v1800, %v1825
        %v1838 = vadd.f32 %v1801, %v1825
        %v1839 = vadd.f32 %v1802, %v1825
        %v1840 = vadd.f32 %v1803, %v1825
        %v1841 = vadd.f32 %v1804, %v1825
        %v1842 = vadd.f32 %v1805, %v1825
        %v1843 = vadd.f32 %v1806, %v1825
        %v1844 = vadd.f32 %v1807, %v1825
        %v1845 = vadd.f32 %v1808, %v1825
        %v1846 = vadd.f32 %v1809, %v1825
        %v1847 = vadd.f32 %v1810, %v1825
        %v1848 = vadd.f32 %v1811, %v1825
        %v1849 = vadd.f32 %v1812, %v1825
        %v1850 = vadd.f32 %v1813, %v1825
        %v1851 = vadd.f32 %v1814, %v1825
        %v1852 = vadd.f32 %v1815, %v1825
        %v1853 = vadd.f32 %v1816, %v1825
        %v1854 = vadd.f32 %v1817, %v1825
        %v1855 = vadd.f32 %v1818, %v1825
        %v1856 = vadd.f32 %v1819, %v1825
        %v1857 = vadd.f32 %v1820, %v1825
        %vm1858 = vcmp.gt.f32.partialorder %v1826, 0.0
        %vm1859 = vcmp.gt.f32.partialorder %v1827, 0.0
        %vm1860 = vcmp.gt.f32.partialorder %v1828, 0.0
        %vm1861 = vcmp.gt.f32.partialorder %v1829, 0.0
        %vm1862 = vcmp.gt.f32.partialorder %v1830, 0.0
        %vm1863 = vcmp.gt.f32.partialorder %v1831, 0.0
        %vm1864 = vcmp.gt.f32.partialorder %v1832, 0.0
        %vm1865 = vcmp.gt.f32.partialorder %v1833, 0.0
        %vm1866 = vcmp.gt.f32.partialorder %v1834, 0.0
        %vm1867 = vcmp.gt.f32.partialorder %v1835, 0.0
        %vm1868 = vcmp.gt.f32.partialorder %v1836, 0.0
        %vm1869 = vcmp.gt.f32.partialorder %v1837, 0.0
        %vm1870 = vcmp.gt.f32.partialorder %v1838, 0.0
        %vm1871 = vcmp.gt.f32.partialorder %v1839, 0.0
        %vm1872 = vcmp.gt.f32.partialorder %v1840, 0.0
        %vm1873 = vcmp.gt.f32.partialorder %v1841, 0.0
        %vm1874 = vcmp.gt.f32.partialorder %v1842, 0.0
        %vm1875 = vcmp.gt.f32.partialorder %v1843, 0.0
        %vm1876 = vcmp.gt.f32.partialorder %v1844, 0.0
        %vm1877 = vcmp.gt.f32.partialorder %v1845, 0.0
        %vm1878 = vcmp.gt.f32.partialorder %v1846, 0.0
        %vm1879 = vcmp.gt.f32.partialorder %v1847, 0.0
        %vm1880 = vcmp.gt.f32.partialorder %v1848, 0.0
        %vm1881 = vcmp.gt.f32.partialorder %v1849, 0.0
        %vm1882 = vcmp.gt.f32.partialorder %v1850, 0.0
        %vm1883 = vcmp.gt.f32.partialorder %v1851, 0.0
        %vm1884 = vcmp.gt.f32.partialorder %v1852, 0.0
        %vm1885 = vcmp.gt.f32.partialorder %v1853, 0.0
        %vm1886 = vcmp.gt.f32.partialorder %v1854, 0.0
        %vm1887 = vcmp.gt.f32.partialorder %v1855, 0.0
        %vm1888 = vcmp.gt.f32.partialorder %v1856, 0.0
        %vm1889 = vcmp.gt.f32.partialorder %v1857, 0.0
        %v1890 = vmul.f32 %v1826, 0.01
        %v1891 = vmul.f32 %v1827, 0.01
        %v1892 = vmul.f32 %v1828, 0.01
        %v1893 = vmul.f32 %v1829, 0.01
        %v1894 = vmul.f32 %v1830, 0.01
        %v1895 = vmul.f32 %v1831, 0.01
        %v1896 = vmul.f32 %v1832, 0.01
        %v1897 = vmul.f32 %v1833, 0.01
        %v1898 = vmul.f32 %v1834, 0.01
        %v1899 = vmul.f32 %v1835, 0.01
        %v1900 = vmul.f32 %v1836, 0.01
        %v1901 = vmul.f32 %v1837, 0.01
        %v1902 = vmul.f32 %v1838, 0.01
        %v1903 = vmul.f32 %v1839, 0.01
        %v1904 = vmul.f32 %v1840, 0.01
        %v1905 = vmul.f32 %v1841, 0.01
        %v1906 = vmul.f32 %v1842, 0.01
        %v1907 = vmul.f32 %v1843, 0.01
        %v1908 = vmul.f32 %v1844, 0.01
        %v1909 = vmul.f32 %v1845, 0.01
        %v1910 = vmul.f32 %v1846, 0.01
        %v1911 = vmul.f32 %v1847, 0.01
        %v1912 = vmul.f32 %v1848, 0.01
        %v1913 = vmul.f32 %v1849, 0.01
        %v1914 = vmul.f32 %v1850, 0.01
        %v1915 = vmul.f32 %v1851, 0.01
        %v1916 = vmul.f32 %v1852, 0.01
        %v1917 = vmul.f32 %v1853, 0.01
        %v1918 = vmul.f32 %v1854, 0.01
        %v1919 = vmul.f32 %v1855, 0.01
        %v1920 = vmul.f32 %v1856, 0.01
        %v1921 = vmul.f32 %v1857, 0.01
        %v1922 = vsel %vm1858, %v1826, %v1890
        %v1923 = vsel %vm1859, %v1827, %v1891
        %v1924 = vsel %vm1860, %v1828, %v1892
        %v1925 = vsel %vm1861, %v1829, %v1893
        %v1926 = vsel %vm1862, %v1830, %v1894
        %v1927 = vsel %vm1863, %v1831, %v1895
        %v1928 = vsel %vm1864, %v1832, %v1896
        %v1929 = vsel %vm1865, %v1833, %v1897
        %v1930 = vsel %vm1866, %v1834, %v1898
        %v1931 = vsel %vm1867, %v1835, %v1899
        %v1932 = vsel %vm1868, %v1836, %v1900
        %v1933 = vsel %vm1869, %v1837, %v1901
        %v1934 = vsel %vm1870, %v1838, %v1902
        %v1935 = vsel %vm1871, %v1839, %v1903
        %v1936 = vsel %vm1872, %v1840, %v1904
        %v1937 = vsel %vm1873, %v1841, %v1905
        %v1938 = vsel %vm1874, %v1842, %v1906
        %v1939 = vsel %vm1875, %v1843, %v1907
        %v1940 = vsel %vm1876, %v1844, %v1908
        %v1941 = vsel %vm1877, %v1845, %v1909
        %v1942 = vsel %vm1878, %v1846, %v1910
        %v1943 = vsel %vm1879, %v1847, %v1911
        %v1944 = vsel %vm1880, %v1848, %v1912
        %v1945 = vsel %vm1881, %v1849, %v1913
        %v1946 = vsel %vm1882, %v1850, %v1914
        %v1947 = vsel %vm1883, %v1851, %v1915
        %v1948 = vsel %vm1884, %v1852, %v1916
        %v1949 = vsel %vm1885, %v1853, %v1917
        %v1950 = vsel %vm1886, %v1854, %v1918
        %v1951 = vsel %vm1887, %v1855, %v1919
        %v1952 = vsel %vm1888, %v1856, %v1920
        %v1953 = vsel %vm1889, %v1857, %v1921
        %v1954 = vpack.c.bf16 %v1923, %v1922
        %v1955 = vpack.c.bf16 %v1925, %v1924
        %v1956 = vpack.c.bf16 %v1927, %v1926
        %v1957 = vpack.c.bf16 %v1929, %v1928
        %v1958 = vpack.c.bf16 %v1931, %v1930
        %v1959 = vpack.c.bf16 %v1933, %v1932
        %v1960 = vpack.c.bf16 %v1935, %v1934
        %v1961 = vpack.c.bf16 %v1937, %v1936
        %v1962 = vpack.c.bf16 %v1939, %v1938
        %v1963 = vpack.c.bf16 %v1941, %v1940
        %v1964 = vpack.c.bf16 %v1943, %v1942
        %v1965 = vpack.c.bf16 %v1945, %v1944
        %v1966 = vpack.c.bf16 %v1947, %v1946
        %v1967 = vpack.c.bf16 %v1949, %v1948
        %v1968 = vpack.c.bf16 %v1951, %v1950
        %v1969 = vpack.c.bf16 %v1953, %v1952
        %v1986 = vunpack.c.l.b16 %v1954
        %v1987 = vunpack.c.h.b16 %v1954
        %v1988 = vunpack.c.l.b16 %v1955
        %v1989 = vunpack.c.h.b16 %v1955
        %v1990 = vunpack.c.l.b16 %v1956
        %v1991 = vunpack.c.h.b16 %v1956
        %v1992 = vunpack.c.l.b16 %v1957
        %v1993 = vunpack.c.h.b16 %v1957
        %v1994 = vunpack.c.l.b16 %v1958
        %v1995 = vunpack.c.h.b16 %v1958
        %v1996 = vunpack.c.l.b16 %v1959
        %v1997 = vunpack.c.h.b16 %v1959
        %v1998 = vunpack.c.l.b16 %v1960
        %v1999 = vunpack.c.h.b16 %v1960
        %v2000 = vunpack.c.l.b16 %v1961
        %v2001 = vunpack.c.h.b16 %v1961
        %v2002 = vunpack.c.l.b16 %v1962
        %v2003 = vunpack.c.h.b16 %v1962
        %v2004 = vunpack.c.l.b16 %v1963
        %v2005 = vunpack.c.h.b16 %v1963
        %v2006 = vunpack.c.l.b16 %v1964
        %v2007 = vunpack.c.h.b16 %v1964
        %v2008 = vunpack.c.l.b16 %v1965
        %v2009 = vunpack.c.h.b16 %v1965
        %v2010 = vunpack.c.l.b16 %v1966
        %v2011 = vunpack.c.h.b16 %v1966
        %v2012 = vunpack.c.l.b16 %v1967
        %v2013 = vunpack.c.h.b16 %v1967
        %v2014 = vunpack.c.l.b16 %v1968
        %v2015 = vunpack.c.h.b16 %v1968
        %v2016 = vunpack.c.l.b16 %v1969
        %v2017 = vunpack.c.h.b16 %v1969
        %v2018 = vpack.c.b16 %v1986, %v1986
        %v2019 = vpack.c.b16 %v1987, %v1987
        %v2020 = vpack.c.b16 %v1988, %v1988
        %v2021 = vpack.c.b16 %v1989, %v1989
        %v2022 = vpack.c.b16 %v1990, %v1990
        %v2023 = vpack.c.b16 %v1991, %v1991
        %v2024 = vpack.c.b16 %v1992, %v1992
        %v2025 = vpack.c.b16 %v1993, %v1993
        %v2026 = vpack.c.b16 %v1994, %v1994
        %v2027 = vpack.c.b16 %v1995, %v1995
        %v2028 = vpack.c.b16 %v1996, %v1996
        %v2029 = vpack.c.b16 %v1997, %v1997
        %v2030 = vpack.c.b16 %v1998, %v1998
        %v2031 = vpack.c.b16 %v1999, %v1999
        %v2032 = vpack.c.b16 %v2000, %v2000
        %v2033 = vpack.c.b16 %v2001, %v2001
        %v2034 = vpack.c.b16 %v2002, %v2002
        %v2035 = vpack.c.b16 %v2003, %v2003
        %v2036 = vpack.c.b16 %v2004, %v2004
        %v2037 = vpack.c.b16 %v2005, %v2005
        %v2038 = vpack.c.b16 %v2006, %v2006
        %v2039 = vpack.c.b16 %v2007, %v2007
        %v2040 = vpack.c.b16 %v2008, %v2008
        %v2041 = vpack.c.b16 %v2009, %v2009
        %v2042 = vpack.c.b16 %v2010, %v2010
        %v2043 = vpack.c.b16 %v2011, %v2011
        %v2044 = vpack.c.b16 %v2012, %v2012
        %v2045 = vpack.c.b16 %v2013, %v2013
        %v2046 = vpack.c.b16 %v2014, %v2014
        %v2047 = vpack.c.b16 %v2015, %v2015
        %v2048 = vpack.c.b16 %v2016, %v2016
        %v2049 = vpack.c.b16 %v2017, %v2017
        %2082 = vst [vmem:[%s265] sm:$0xf] %v2018
        %2083 = vst [vmem:[%s265 + $0x4] sm:$0xf] %v2019
        %2084 = vst [vmem:[%s265 + $0x8] sm:$0xf] %v2020
        %2085 = vst [vmem:[%s265 + $0xc] sm:$0xf] %v2021
        %2086 = vst [vmem:[%s265 + $0x10] sm:$0xf] %v2022
        %2087 = vst [vmem:[%s265 + $0x14] sm:$0xf] %v2023
        %2088 = vst [vmem:[%s265 + $0x18] sm:$0xf] %v2024
        %2089 = vst [vmem:[%s265 + $0x1c] sm:$0xf] %v2025
        %2090 = vst [vmem:[%s265 + $0x20] sm:$0xf] %v2026
        %2091 = vst [vmem:[%s265 + $0x24] sm:$0xf] %v2027
        %2092 = vst [vmem:[%s265 + $0x28] sm:$0xf] %v2028
        %2093 = vst [vmem:[%s265 + $0x2c] sm:$0xf] %v2029
        %2094 = vst [vmem:[%s265 + $0x30] sm:$0xf] %v2030
        %2095 = vst [vmem:[%s265 + $0x34] sm:$0xf] %v2031
        %2096 = vst [vmem:[%s265 + $0x38] sm:$0xf] %v2032
        %2097 = vst [vmem:[%s265 + $0x3c] sm:$0xf] %v2033
        %2098 = vst [vmem:[%s265 + $0x40] sm:$0xf] %v2034
        %2099 = vst [vmem:[%s265 + $0x44] sm:$0xf] %v2035
        %2100 = vst [vmem:[%s265 + $0x48] sm:$0xf] %v2036
        %2101 = vst [vmem:[%s265 + $0x4c] sm:$0xf] %v2037
        %2102 = vst [vmem:[%s265 + $0x50] sm:$0xf] %v2038
        %2103 = vst [vmem:[%s265 + $0x54] sm:$0xf] %v2039
        %2104 = vst [vmem:[%s265 + $0x58] sm:$0xf] %v2040
        %2105 = vst [vmem:[%s265 + $0x5c] sm:$0xf] %v2041
        %2106 = vst [vmem:[%s265 + $0x60] sm:$0xf] %v2042
        %2107 = vst [vmem:[%s265 + $0x64] sm:$0xf] %v2043
        %2108 = vst [vmem:[%s265 + $0x68] sm:$0xf] %v2044
        %2109 = vst [vmem:[%s265 + $0x6c] sm:$0xf] %v2045
        %2110 = vst [vmem:[%s265 + $0x70] sm:$0xf] %v2046
        %2111 = vst [vmem:[%s265 + $0x74] sm:$0xf] %v2047
        %2112 = vst [vmem:[%s265 + $0x78] sm:$0xf] %v2048
        %2113 = vst [vmem:[%s265 + $0x7c] sm:$0xf] %v2049
      $region48: #{inception_forward.2} parent=35 // pred_fallthru
        _
      %s2114 = smul.u32 %s19, %s20
      %s2115 = smul.u32 32, %s2114
      %p2116 = scmp.lt.s32.totalorder %s2115, 63
      %s2117 = scalar_select %p2116, %s2115, 63
      %s2118 = smul.addr %s2117, 4
      %s2119 = scalar_lea.vmem %s4, %s2118
      // Predicated region
      $region49: #{inception_forward.2} parent=35 // pred_check
        %p2120 = pneg %p149
      $region50: #{inception_forward.2} parent=35 // pred_check_branch
        %2122 = sbr.rel (%p2120) target = $region52
      $region51: #{inception_forward.2} parent=35 // pred_region
        %s2123 = smul.u32 %s19, %s20
        %s2124 = smul.u32 32, %s2123
      $region52: #{inception_forward.2} parent=35 // pred_fallthru
        _
    $region36: #{inception_forward.2} parent=5 // pred_fallthru
      _
    %p2125 = scmp.le.s32.totalorder 2, %s10
    // Predicated region
    $region53: #{inception_forward.2} parent=5 // pred_check
      %p2126 = pneg %p2125
    $region54: #{inception_forward.2} parent=5 // pred_check_branch
      %2128 = sbr.rel (%p2126) target = $region56
    $region55: #{inception_forward.2} parent=5 // pred_region
      %s2129 = ssub.s32 %s10, 2
      // Predicated region
      $region57: #{inception_forward.2} parent=55 // pred_check
        %p2130 = pneg %p155
      $region58: #{inception_forward.2} parent=55 // pred_check_branch
        %2132 = sbr.rel (%p2130) target = $region60
      $region59: #{inception_forward.2} parent=55 // pred_region
        %s2133 = smul.u32 %s21, %s22
        %s2134 = smul.u32 32, %s2133
        %p2135 = scmp.lt.s32.totalorder %s2134, 63
        %s2136 = scalar_select %p2135, %s2134, 63
        %s2137 = smul.addr %s2136, 4
        %s2138 = scalar_lea.vmem %s4, %s2137
      $region60: #{inception_forward.2} parent=55 // pred_fallthru
        _
    $region56: #{inception_forward.2} parent=5 // pred_fallthru
      _
  $region6: #{inception_forward.2} parent=0 // loop_footer
    %s14 = sadd.s32 1, %s10
  $region7: #{inception_forward.2} parent=0 // loop_footer_branch
    %9 = sbr.rel target = $region3
  $region8: #{inception_forward.2} parent=0 // loop_exit
    _

// kernel: inception_forward.3
$region0: #{inception_forward.3}
  #allocation0 [shape = 'u32[]', space=smem, size = 0x4, offset = 0x4, fixed_abs, tag = 'smem constant byte address 0x4 - core index']
  #allocation1 [shape = 'u32[144,128]{1,0:T(1,128)}', space=vmem, size = 0x12000, scoped, tag = 'internal scratch']
  #allocation2 [shape = 'f32[1,128]{1,0:T(1,128)}', space=vmem, size = 0x200, scoped, tag = 'scratch operand']
  #allocation3 [shape = 'f32[1,128]{1,0:T(1,128)}', space=vmem, size = 0x200, scoped, tag = 'scratch operand']
  #allocation4 [shape = 'f32[2,256,128]{2,1,0:T(8,128)}', space=vmem, size = 0x40000, scoped, tag = 'scratch operand']
  %s0 = inlined_call_operand.vmem [shape: bf16[512,86], index: 0, kind: input, shape index: {}]
  %s1 = inlined_call_operand.vmem [shape: bf16[86,128], index: 1, kind: input, shape index: {}]
  %s2 = inlined_call_operand.vmem [shape: f32[8,128], index: 2, kind: input, shape index: {}]
  %s3 = inlined_call_operand.vmem [shape: f32[512,3], index: 3, kind: input, shape index: {}]
  %s4 = inlined_call_operand.vmem [shape: f32[512,128], index: 4, kind: output, shape index: {}]
  %s5 = sld [smem:[#allocation0]]
  $region61: #{inception_forward.3} parent=0
    _
  %s7 = ssub.s32 1, %s5
  %s8 = scalar_select 0, %s7, %s5
  loop: start=0, step=1, limit=6
  $region2: #{inception_forward.3} parent=0 // loop_pre_header
    _
  $region3: #{inception_forward.3} parent=0 // loop_header
    %s10 = sphi 0, %s14
    %p11 = scmp.ge.s32.totalorder %s10, 6
    %s17 = sphi 0, %s29
    %s18 = sphi 0, %s25
    %s19 = sphi 0, %s17
    %s20 = sphi 0, %s18
    %s21 = sphi 0, %s19
    %s22 = sphi 0, %s20
    %s36 = sphi 0, %s38
    %s39 = sphi 0, %s36
    %s40 = sphi 0, %s39
    %s56 = sphi 0, %s40
    %s60 = sphi 0, %s60
    %s62 = sphi 0, %s60
    %s63 = sphi 0, %s62
    %s77 = sphi 0, %s63
    %s81 = sphi 0, %s81
    %s83 = sphi 0, %s81
    %s84 = sphi 0, %s83
    %s98 = sphi 0, %s84
    %s108 = sphi 0, %s110
    %s111 = sphi 0, %s108
    %s112 = sphi 0, %s111
    %s128 = sphi 0, %s112
    %s136 = sphi 0, %s138
    %s139 = sphi 0, %s136
    %s140 = sphi 0, %s139
    %s156 = sphi 0, %s140
  $region4: #{inception_forward.3} parent=0 // loop_header_branch
    %13 = sbr.rel (%p11) target = $region8
  $region5: #{inception_forward.3} parent=0 // loop_body
    %s15 = ssub.s32 %s10, 1
    %s16 = ssub.s32 %s10, 2
    %s23 = sadd.s32 1, %s18
    %p24 = scmp.ge.s32.totalorder %s23, 2
    %s25 = scalar_select %p24, 0, %s23
    %s26 = sadd.s32 1, %s17
    %s27 = scalar_select %p24, %s26, %s17
    %p28 = scmp.ge.s32.totalorder %s27, 2
    %s29 = scalar_select %p28, 0, %s27
    %s30 = ssub.s32 1, %s17
    %s31 = smul.u32 %s18, %s30
    %s32 = ssub.s32 1, %s29
    %s33 = smul.u32 %s25, %s32
    %s34 = ssub.s32 %s31, %s33
    %p35 = scmp.eq.s32.totalorder %s34, 0
    %s37 = sadd.s32 %s36, 1
    %s38 = scalar_select %p35, %s36, %s37
    %p41 = pneg %p35
    %p42 = scmp.eq.s32.totalorder %s10, 3
    %p43 = por %p41, %p42
    %p44 = scmp.ne.s32.totalorder %s36, %s39
    %p45 = scmp.eq.s32.totalorder %s10, 0
    %p46 = por %p44, %p45
    %p47 = scmp.ne.s32.totalorder %s36, %s39
    %p48 = scmp.eq.s32.totalorder %s15, 3
    %p49 = por %p47, %p48
    %p50 = scmp.ne.s32.totalorder %s39, %s40
    %p51 = scmp.eq.s32.totalorder %s15, 0
    %p52 = por %p50, %p51
    %p53 = scmp.ne.s32.totalorder %s39, %s40
    %p54 = scmp.eq.s32.totalorder %s16, 3
    %p55 = por %p53, %p54
    %p57 = scmp.ne.s32.totalorder %s40, %s56
    %p58 = scmp.eq.s32.totalorder %s16, 0
    %p59 = por %p57, %p58
    %s61 = sadd.s32 %s60, 1
    %p64 = scmp.eq.s32.totalorder %s10, 3
    %p65 = scmp.ne.s32.totalorder %s60, %s62
    %p66 = scmp.eq.s32.totalorder %s10, 0
    %p67 = por %p65, %p66
    %p68 = scmp.ne.s32.totalorder %s60, %s62
    %p69 = scmp.eq.s32.totalorder %s15, 3
    %p70 = por %p68, %p69
    %p71 = scmp.ne.s32.totalorder %s62, %s63
    %p72 = scmp.eq.s32.totalorder %s15, 0
    %p73 = por %p71, %p72
    %p74 = scmp.ne.s32.totalorder %s62, %s63
    %p75 = scmp.eq.s32.totalorder %s16, 3
    %p76 = por %p74, %p75
    %p78 = scmp.ne.s32.totalorder %s63, %s77
    %p79 = scmp.eq.s32.totalorder %s16, 0
    %p80 = por %p78, %p79
    %s82 = sadd.s32 %s81, 1
    %p85 = scmp.eq.s32.totalorder %s10, 3
    %p86 = scmp.ne.s32.totalorder %s81, %s83
    %p87 = scmp.eq.s32.totalorder %s10, 0
    %p88 = por %p86, %p87
    %p89 = scmp.ne.s32.totalorder %s81, %s83
    %p90 = scmp.eq.s32.totalorder %s15, 3
    %p91 = por %p89, %p90
    %p92 = scmp.ne.s32.totalorder %s83, %s84
    %p93 = scmp.eq.s32.totalorder %s15, 0
    %p94 = por %p92, %p93
    %p95 = scmp.ne.s32.totalorder %s83, %s84
    %p96 = scmp.eq.s32.totalorder %s16, 3
    %p97 = por %p95, %p96
    %p99 = scmp.ne.s32.totalorder %s84, %s98
    %p100 = scmp.eq.s32.totalorder %s16, 0
    %p101 = por %p99, %p100
    %s102 = ssub.s32 1, %s17
    %s103 = smul.u32 %s18, %s102
    %s104 = ssub.s32 1, %s29
    %s105 = smul.u32 %s25, %s104
    %s106 = ssub.s32 %s103, %s105
    %p107 = scmp.eq.s32.totalorder %s106, 0
    %s109 = sadd.s32 %s108, 1
    %s110 = scalar_select %p107, %s108, %s109
    %p113 = pneg %p107
    %p114 = scmp.eq.s32.totalorder %s10, 3
    %p115 = por %p113, %p114
    %p116 = scmp.ne.s32.totalorder %s108, %s111
    %p117 = scmp.eq.s32.totalorder %s10, 0
    %p118 = por %p116, %p117
    %p119 = scmp.ne.s32.totalorder %s108, %s111
    %p120 = scmp.eq.s32.totalorder %s15, 3
    %p121 = por %p119, %p120
    %p122 = scmp.ne.s32.totalorder %s111, %s112
    %p123 = scmp.eq.s32.totalorder %s15, 0
    %p124 = por %p122, %p123
    %p125 = scmp.ne.s32.totalorder %s111, %s112
    %p126 = scmp.eq.s32.totalorder %s16, 3
    %p127 = por %p125, %p126
    %p129 = scmp.ne.s32.totalorder %s112, %s128
    %p130 = scmp.eq.s32.totalorder %s16, 0
    %p131 = por %p129, %p130
    %s132 = smul.u32 %s17, %s18
    %s133 = smul.u32 %s29, %s25
    %s134 = ssub.s32 %s132, %s133
    %p135 = scmp.eq.s32.totalorder %s134, 0
    %s137 = sadd.s32 %s136, 1
    %s138 = scalar_select %p135, %s136, %s137
    %p141 = pneg %p135
    %p142 = scmp.eq.s32.totalorder %s10, 3
    %p143 = por %p141, %p142
    %p144 = scmp.ne.s32.totalorder %s136, %s139
    %p145 = scmp.eq.s32.totalorder %s10, 0
    %p146 = por %p144, %p145
    %p147 = scmp.ne.s32.totalorder %s136, %s139
    %p148 = scmp.eq.s32.totalorder %s15, 3
    %p149 = por %p147, %p148
    %p150 = scmp.ne.s32.totalorder %s139, %s140
    %p151 = scmp.eq.s32.totalorder %s15, 0
    %p152 = por %p150, %p151
    %p153 = scmp.ne.s32.totalorder %s139, %s140
    %p154 = scmp.eq.s32.totalorder %s16, 3
    %p155 = por %p153, %p154
    %p157 = scmp.ne.s32.totalorder %s140, %s156
    %p158 = scmp.eq.s32.totalorder %s16, 0
    %p159 = por %p157, %p158
    %p160 = scmp.le.s32.totalorder 1, %s10
    %p161 = scmp.lt.s32.totalorder %s10, 5
    %p162 = pnand %p160, %p161
    %p163 = pneg %p162
    // Predicated region
    $region9: #{inception_forward.3} parent=5 // pred_check
      _
    $region10: #{inception_forward.3} parent=5 // pred_check_branch
      %165 = sbr.rel (%p162) target = $region12
    $region11: #{inception_forward.3} parent=5 // pred_region
      %s166 = ssub.s32 %s10, 1
      // Predicated region
      $region13: #{inception_forward.3} parent=11 // pred_check
        %p167 = pneg %p73
      $region14: #{inception_forward.3} parent=11 // pred_check_branch
        %169 = sbr.rel (%p167) target = $region16
      $region15: #{inception_forward.3} parent=11 // pred_region
        _
      $region16: #{inception_forward.3} parent=11 // pred_fallthru
        _
      // Predicated region
      $region17: #{inception_forward.3} parent=11 // pred_check
        %p170 = pneg %p94
      $region18: #{inception_forward.3} parent=11 // pred_check_branch
        %172 = sbr.rel (%p170) target = $region20
      $region19: #{inception_forward.3} parent=11 // pred_region
        _
      $region20: #{inception_forward.3} parent=11 // pred_fallthru
        _
    $region12: #{inception_forward.3} parent=5 // pred_fallthru
      _
    %p173 = scmp.lt.s32.totalorder %s10, 4
    // Predicated region
    $region21: #{inception_forward.3} parent=5 // pred_check
      %p174 = pneg %p173
    $region22: #{inception_forward.3} parent=5 // pred_check_branch
      %176 = sbr.rel (%p174) target = $region24
    $region23: #{inception_forward.3} parent=5 // pred_region
      // Predicated region
      $region25: #{inception_forward.3} parent=23 // pred_check
        %p177 = pneg %p46
      $region26: #{inception_forward.3} parent=23 // pred_check_branch
        %179 = sbr.rel (%p177) target = $region28
      $region27: #{inception_forward.3} parent=23 // pred_region
        %s180 = ssub.s32 1, %s17
        %s181 = smul.u32 %s18, %s180
        %s182 = smul.u32 32, %s181
        %p183 = scmp.lt.s32.totalorder %s182, 63
        %s184 = scalar_select %p183, %s182, 63
        %s185 = smul.addr %s184, 4
        %s186 = scalar_lea.vmem %s0, %s185
        %s187 = ssub.s32 1, %s17
        %s188 = smul.u32 %s18, %s187
        %s189 = smul.u32 32, %s188
      $region28: #{inception_forward.3} parent=23 // pred_fallthru
        _
      // Predicated region
      $region29: #{inception_forward.3} parent=23 // pred_check
        %p190 = pneg %p118
      $region30: #{inception_forward.3} parent=23 // pred_check_branch
        %192 = sbr.rel (%p190) target = $region32
      $region31: #{inception_forward.3} parent=23 // pred_region
        %s193 = ssub.s32 1, %s17
        %s194 = smul.u32 %s18, %s193
        %s195 = smul.u32 32, %s194
        %p196 = scmp.lt.s32.totalorder %s195, 63
        %s197 = scalar_select %p196, %s195, 63
        %s198 = smul.addr %s197, 8
        %s199 = scalar_lea.vmem %s3, %s198
        %s200 = ssub.s32 1, %s17
        %s201 = smul.u32 %s18, %s200
        %s202 = smul.u32 32, %s201
      $region32: #{inception_forward.3} parent=23 // pred_fallthru
        _
    $region24: #{inception_forward.3} parent=5 // pred_fallthru
      _
    %p203 = scmp.le.s32.totalorder 1, %s10
    %p204 = scmp.lt.s32.totalorder %s10, 5
    %p205 = pnand %p203, %p204
    %p206 = pneg %p205
    // Predicated region
    $region33: #{inception_forward.3} parent=5 // pred_check
      _
    $region34: #{inception_forward.3} parent=5 // pred_check_branch
      %208 = sbr.rel (%p205) target = $region36
    $region35: #{inception_forward.3} parent=5 // pred_region
      %s209 = ssub.s32 %s10, 1
      %s210 = ssub.s32 1, %s19
      %s211 = smul.u32 %s20, %s210
      %s212 = smul.u32 32, %s211
      %p213 = scmp.lt.s32.totalorder %s212, 63
      %s214 = scalar_select %p213, %s212, 63
      %s215 = smul.addr %s214, 4
      %s216 = scalar_lea.vmem %s0, %s215
      %p217 = pneg %p52
      %p218 = pneg %p49
      %p219 = pneg %p73
      %p220 = pneg %p70
      %p221 = pneg %p94
      %p222 = pneg %p91
      %s223 = ssub.s32 1, %s19
      %s224 = smul.u32 %s20, %s223
      %s225 = smul.u32 32, %s224
      %p226 = scmp.lt.s32.totalorder %s225, 63
      %s227 = scalar_select %p226, %s225, 63
      %s228 = smul.addr %s227, 8
      %s229 = scalar_lea.vmem %s3, %s228
      %p230 = pneg %p124
      %p231 = pneg %p121
      %p232 = pneg %p152
      %p233 = pneg %p149
      %s234 = smul.u32 %s19, %s20
      %s235 = smul.u32 32, %s234
      %p236 = scmp.lt.s32.totalorder %s235, 63
      %s237 = scalar_select %p236, %s235, 63
      %s238 = smul.addr %s237, 8
      %s239 = scalar_lea.vmem %s4, %s238
      %s240 = ssub.s32 1, %s19
      %s241 = smul.u32 %s20, %s240
      %s242 = smul.u32 32, %s241
      %p243 = scmp.lt.s32.totalorder %s242, 63
      %s244 = scalar_select %p243, %s242, 63
      %s245 = smul.addr %s244, 4
      %s246 = scalar_lea.vmem %s0, %s245
      %s247 = ssub.s32 1, %s19
      %s248 = smul.u32 %s20, %s247
      %s249 = smul.u32 32, %s248
      %s250 = ssub.s32 1, %s19
      %s251 = smul.u32 %s20, %s250
      %s252 = smul.u32 32, %s251
      %p253 = scmp.lt.s32.totalorder %s252, 63
      %s254 = scalar_select %p253, %s252, 63
      %s255 = smul.addr %s254, 8
      %s256 = scalar_lea.vmem %s3, %s255
      %s257 = ssub.s32 1, %s19
      %s258 = smul.u32 %s20, %s257
      %s259 = smul.u32 32, %s258
      %s260 = smul.u32 %s19, %s20
      %s261 = smul.u32 32, %s260
      %p262 = scmp.lt.s32.totalorder %s261, 63
      %s263 = scalar_select %p262, %s261, 63
      %s264 = smul.addr %s263, 8
      %s265 = scalar_lea.vmem %s4, %s264
      %s266 = smul.u32 %s19, %s20
      %s267 = smul.u32 32, %s266
      %p269 = scmp.eq.s32.totalorder %s19, 0
      %p270 = scmp.eq.s32.totalorder %s20, 0
      %p271 = pnand %p269, %p270
      %p272 = pneg %p271
      // Predicated region
      $region37: #{inception_forward.3} parent=35 // pred_check
        _
      $region38: #{inception_forward.3} parent=35 // pred_check_branch
        %274 = sbr.rel (%p271) target = $region40
      $region39: #{inception_forward.3} parent=35 // pred_region
        %275 = vst [vmem:[#allocation2] sm:$0x1] 0.0
        %276 = vst [vmem:[#allocation3] sm:$0x1] 0.0
      $region40: #{inception_forward.3} parent=35 // pred_fallthru
        _
      // Predicated region
      $region41: #{inception_forward.3} parent=35 // pred_check
        %p277 = pneg %p269
      $region42: #{inception_forward.3} parent=35 // pred_check_branch
        %279 = sbr.rel (%p277) target = $region44
      $region43: #{inception_forward.3} parent=35 // pred_region
        %v280 = vld [vmem:[%s246] sm:$0xf]
        %v281 = vld [vmem:[%s246 + $0x4] sm:$0xf]
        %v282 = vld [vmem:[%s246 + $0x8] sm:$0xf]
        %v283 = vld [vmem:[%s246 + $0xc] sm:$0xf]
        %v284 = vld [vmem:[%s246 + $0x10] sm:$0xf]
        %v285 = vld [vmem:[%s246 + $0x14] sm:$0xf]
        %v286 = vld [vmem:[%s246 + $0x18] sm:$0xf]
        %v287 = vld [vmem:[%s246 + $0x1c] sm:$0xf]
        %v288 = vld [vmem:[%s246 + $0x20] sm:$0xf]
        %v289 = vld [vmem:[%s246 + $0x24] sm:$0xf]
        %v290 = vld [vmem:[%s246 + $0x28] sm:$0xf]
        %v291 = vld [vmem:[%s246 + $0x2c] sm:$0xf]
        %v292 = vld [vmem:[%s246 + $0x30] sm:$0xf]
        %v293 = vld [vmem:[%s246 + $0x34] sm:$0xf]
        %v294 = vld [vmem:[%s246 + $0x38] sm:$0xf]
        %v295 = vld [vmem:[%s246 + $0x3c] sm:$0xf]
        %v296 = vld [vmem:[%s246 + $0x40] sm:$0xf]
        %v297 = vld [vmem:[%s246 + $0x44] sm:$0xf]
        %v298 = vld [vmem:[%s246 + $0x48] sm:$0xf]
        %v299 = vld [vmem:[%s246 + $0x4c] sm:$0xf]
        %v300 = vld [vmem:[%s246 + $0x50] sm:$0xf]
        %v301 = vld [vmem:[%s246 + $0x54] sm:$0xf]
        %v302 = vld [vmem:[%s246 + $0x58] sm:$0xf]
        %v303 = vld [vmem:[%s246 + $0x5c] sm:$0xf]
        %v304 = vld [vmem:[%s246 + $0x60] sm:$0xf]
        %v305 = vld [vmem:[%s246 + $0x64] sm:$0xf]
        %v306 = vld [vmem:[%s246 + $0x68] sm:$0xf]
        %v307 = vld [vmem:[%s246 + $0x6c] sm:$0xf]
        %v308 = vld [vmem:[%s246 + $0x70] sm:$0xf]
        %v309 = vld [vmem:[%s246 + $0x74] sm:$0xf]
        %v310 = vld [vmem:[%s246 + $0x78] sm:$0xf]
        %v311 = vld [vmem:[%s246 + $0x7c] sm:$0xf]
        %v312 = vld [vmem:[%s1] sm:$0xf]
        %v313 = vld [vmem:[%s1 + $0x4] sm:$0xf]
        %v314 = vld [vmem:[%s1 + $0x8] sm:$0xf]
        %v315 = vld [vmem:[%s1 + $0xc] sm:$0xf]
        %v316 = vld [vmem:[%s1 + $0x10] sm:$0xf]
        %v317 = vld [vmem:[%s1 + $0x14] sm:$0xf]
        %v318 = vld [vmem:[%s1 + $0x18] sm:$0xf]
        %v319 = vld [vmem:[%s1 + $0x1c] sm:$0xf]
        %v320 = vld [vmem:[%s1 + $0x20] sm:$0xf]
        %v321 = vld [vmem:[%s1 + $0x24] sm:$0xf]
        %v322 = vld [vmem:[%s1 + $0x28] sm:$0x7]
        %v323 = vld [vmem:[%s2] sm:$0x1]
        %v324 = vlaneseq
        %v325 = vshrl.u32 %v324, 7
        %v326 = vsub.s32 0, %v325
        %v327 = vrot.slane %v323, %v326
        %v360 = vunpack.c.l.b16 %v280
        %v361 = vunpack.c.l.b16 %v281
        %v362 = vunpack.c.l.b16 %v282
        %v363 = vunpack.c.l.b16 %v283
        %v364 = vunpack.c.l.b16 %v284
        %v365 = vunpack.c.l.b16 %v285
        %v366 = vunpack.c.l.b16 %v286
        %v367 = vunpack.c.l.b16 %v287
        %v368 = vunpack.c.l.b16 %v288
        %v369 = vunpack.c.l.b16 %v289
        %v370 = vunpack.c.l.b16 %v290
        %v371 = vunpack.c.l.b16 %v291
        %v372 = vunpack.c.l.b16 %v292
        %v373 = vunpack.c.l.b16 %v293
        %v374 = vunpack.c.l.b16 %v294
        %v375 = vunpack.c.l.b16 %v295
        %v376 = vunpack.c.l.b16 %v296
        %v377 = vunpack.c.l.b16 %v297
        %v378 = vunpack.c.l.b16 %v298
        %v379 = vunpack.c.l.b16 %v299
        %v380 = vunpack.c.l.b16 %v300
        %v381 = vunpack.c.l.b16 %v301
        %v382 = vunpack.c.l.b16 %v302
        %v383 = vunpack.c.l.b16 %v303
        %v384 = vunpack.c.l.b16 %v304
        %v385 = vunpack.c.l.b16 %v305
        %v386 = vunpack.c.l.b16 %v306
        %v387 = vunpack.c.l.b16 %v307
        %v388 = vunpack.c.l.b16 %v308
        %v389 = vunpack.c.l.b16 %v309
        %v390 = vunpack.c.l.b16 %v310
        %v391 = vunpack.c.l.b16 %v311
        %v392 = vpack.c.b16 %v361, %v360
        %v393 = vpack.c.b16 %v363, %v362
        %v394 = vpack.c.b16 %v365, %v364
        %v395 = vpack.c.b16 %v367, %v366
        %v396 = vpack.c.b16 %v369, %v368
        %v397 = vpack.c.b16 %v371, %v370
        %v398 = vpack.c.b16 %v373, %v372
        %v399 = vpack.c.b16 %v375, %v374
        %v400 = vpack.c.b16 %v377, %v376
        %v401 = vpack.c.b16 %v379, %v378
        %v402 = vpack.c.b16 %v381, %v380
        %v403 = vpack.c.b16 %v383, %v382
        %v404 = vpack.c.b16 %v385, %v384
        %v405 = vpack.c.b16 %v387, %v386
        %v406 = vpack.c.b16 %v389, %v388
        %v407 = vpack.c.b16 %v391, %v390
        %v419 = vunpack.c.l.b16 %v312
        %v420 = vunpack.c.l.b16 %v313
        %v421 = vunpack.c.l.b16 %v314
        %v422 = vunpack.c.l.b16 %v315
        %v423 = vunpack.c.l.b16 %v316
        %v424 = vunpack.c.l.b16 %v317
        %v425 = vunpack.c.l.b16 %v318
        %v426 = vunpack.c.l.b16 %v319
        %v427 = vunpack.c.l.b16 %v320
        %v428 = vunpack.c.l.b16 %v321
        %v429 = vunpack.c.l.b16 %v322
        %v430 = vpack.c.b16 %v420, %v419
        %v431 = vpack.c.b16 %v422, %v421
        %v432 = vpack.c.b16 %v424, %v423
        %v433 = vpack.c.b16 %v426, %v425
        %v434 = vpack.c.b16 %v428, %v427
        %v435 = vpack.c.b16 %v429, %v429
        %vm441 = vcmask 703488
        %v443 = vsel %vm441, %v392, 0
        %v446 = vsel %vm441, %v393, 0
        %v449 = vsel %vm441, %v394, 0
        %v452 = vsel %vm441, %v395, 0
        %v455 = vsel %vm441, %v396, 0
        %v458 = vsel %vm441, %v397, 0
        %v461 = vsel %vm441, %v398, 0
        %v464 = vsel %vm441, %v399, 0
        %v467 = vsel %vm441, %v400, 0
        %v470 = vsel %vm441, %v401, 0
        %v473 = vsel %vm441, %v402, 0
        %v476 = vsel %vm441, %v403, 0
        %v479 = vsel %vm441, %v404, 0
        %v482 = vsel %vm441, %v405, 0
        %v485 = vsel %vm441, %v406, 0
        %v488 = vsel %vm441, %v407, 0
        %vm490 = vcmask 1042432
        %v492 = vsel %vm490, %v435, 0
        %494 = vmatprep.subr.bf16.mxu0 0
        %495 = vmatpush1.bf16.msra.mxu0 %v430
        %496 = vmatprep.subr.bf16.mxu0 0
        %497 = vmatpush1.bf16.msra.mxu0 %v431
        %498 = vmatprep.subr.bf16.mxu0 0
        %499 = vmatpush1.bf16.msra.mxu0 %v432
        %500 = vmatprep.subr.bf16.mxu0 0
        %501 = vmatpush1.bf16.msra.mxu0 %v433
        %502 = vmatprep.subr.bf16.mxu0 0
        %503 = vmatpush1.bf16.msra.mxu0 %v434
        %504 = vmatprep.subr.bf16.mxu0 0
        %505 = vmatpush1.bf16.msra.mxu0 %v492
        %506 = vmatprep.subr.bf16.mxu0 0
        %507 = vmatpush1.bf16.msra.mxu0 0
        %508 = vmatprep.subr.bf16.mxu0 0
        %509 = vmatpush1.bf16.msra.mxu0 0
        %510 = vmatprep.subr.bf16.mxu0 0
        %511 = vmatpush1.bf16.msra.mxu0 0
        %512 = vmatprep.subr.bf16.mxu0 0
        %513 = vmatpush1.bf16.msra.mxu0 0
        %514 = vmatprep.subr.bf16.mxu0 0
        %515 = vmatpush1.bf16.msra.mxu0 0
        %516 = vmatprep.subr.bf16.mxu0 0
        %517 = vmatpush1.bf16.msra.mxu0 0
        %518 = vmatprep.subr.bf16.mxu0 0
        %519 = vmatpush1.bf16.msra.mxu0 0
        %520 = vmatprep.subr.bf16.mxu0 0
        %521 = vmatpush1.bf16.msra.mxu0 0
        %522 = vmatprep.subr.bf16.mxu0 0
        %523 = vmatpush1.bf16.msra.mxu0 0
        %524 = vmatprep.subr.bf16.mxu0 0
        %525 = vmatpush1.bf16.msra.mxu0 0
        %526 = vmatprep.mubr.bf16.mxu0 0
        %527 = vmatmul.mubr.bf16.gmra.mrb[0].mxu0 %v443
        %v528 = vpop.f32.mrb[0].mxu0
        %v529 = vadd.f32 %v327, %v528
        %v530 = vpop.f32.mrb[0].mxu0
        %v531 = vpop.f32.mrb[0].mxu0
        %v532 = vadd.f32 %v327, %v531
        %v533 = vpop.f32.mrb[0].mxu0
        %534 = vmatprep.mubr.bf16.mxu0 0
        %535 = vmatmul.mubr.bf16.gmra.mrb[0].mxu0 %v446
        %v536 = vpop.f32.mrb[0].mxu0
        %v537 = vadd.f32 %v327, %v536
        %v538 = vpop.f32.mrb[0].mxu0
        %v539 = vpop.f32.mrb[0].mxu0
        %v540 = vadd.f32 %v327, %v539
        %v541 = vpop.f32.mrb[0].mxu0
        %542 = vmatprep.mubr.bf16.mxu0 0
        %543 = vmatmul.mubr.bf16.gmra.mrb[0].mxu0 %v449
        %v544 = vpop.f32.mrb[0].mxu0
        %v545 = vadd.f32 %v327, %v544
        %v546 = vpop.f32.mrb[0].mxu0
        %v547 = vpop.f32.mrb[0].mxu0
        %v548 = vadd.f32 %v327, %v547
        %v549 = vpop.f32.mrb[0].mxu0
        %550 = vmatprep.mubr.bf16.mxu0 0
        %551 = vmatmul.mubr.bf16.gmra.mrb[0].mxu0 %v452
        %v552 = vpop.f32.mrb[0].mxu0
        %v553 = vadd.f32 %v327, %v552
        %v554 = vpop.f32.mrb[0].mxu0
        %v555 = vpop.f32.mrb[0].mxu0
        %v556 = vadd.f32 %v327, %v555
        %v557 = vpop.f32.mrb[0].mxu0
        %558 = vmatprep.mubr.bf16.mxu0 0
        %559 = vmatmul.mubr.bf16.gmra.mrb[0].mxu0 %v455
        %v560 = vpop.f32.mrb[0].mxu0
        %v561 = vadd.f32 %v327, %v560
        %v562 = vpop.f32.mrb[0].mxu0
        %v563 = vpop.f32.mrb[0].mxu0
        %v564 = vadd.f32 %v327, %v563
        %v565 = vpop.f32.mrb[0].mxu0
        %566 = vmatprep.mubr.bf16.mxu0 0
        %567 = vmatmul.mubr.bf16.gmra.mrb[0].mxu0 %v458
        %v568 = vpop.f32.mrb[0].mxu0
        %v569 = vadd.f32 %v327, %v568
        %v570 = vpop.f32.mrb[0].mxu0
        %v571 = vpop.f32.mrb[0].mxu0
        %v572 = vadd.f32 %v327, %v571
        %v573 = vpop.f32.mrb[0].mxu0
        %574 = vmatprep.mubr.bf16.mxu0 0
        %575 = vmatmul.mubr.bf16.gmra.mrb[0].mxu0 %v461
        %v576 = vpop.f32.mrb[0].mxu0
        %v577 = vadd.f32 %v327, %v576
        %v578 = vpop.f32.mrb[0].mxu0
        %v579 = vpop.f32.mrb[0].mxu0
        %v580 = vadd.f32 %v327, %v579
        %v581 = vpop.f32.mrb[0].mxu0
        %582 = vmatprep.mubr.bf16.mxu0 0
        %583 = vmatmul.mubr.bf16.gmra.mrb[0].mxu0 %v464
        %v584 = vpop.f32.mrb[0].mxu0
        %v585 = vadd.f32 %v327, %v584
        %v586 = vpop.f32.mrb[0].mxu0
        %v587 = vpop.f32.mrb[0].mxu0
        %v588 = vadd.f32 %v327, %v587
        %v589 = vpop.f32.mrb[0].mxu0
        %590 = vmatprep.mubr.bf16.mxu0 0
        %591 = vmatmul.mubr.bf16.gmra.mrb[0].mxu0 %v467
        %v592 = vpop.f32.mrb[0].mxu0
        %v593 = vadd.f32 %v327, %v592
        %v594 = vpop.f32.mrb[0].mxu0
        %v595 = vpop.f32.mrb[0].mxu0
        %v596 = vadd.f32 %v327, %v595
        %v597 = vpop.f32.mrb[0].mxu0
        %598 = vmatprep.mubr.bf16.mxu0 0
        %599 = vmatmul.mubr.bf16.gmra.mrb[0].mxu0 %v470
        %v600 = vpop.f32.mrb[0].mxu0
        %v601 = vadd.f32 %v327, %v600
        %v602 = vpop.f32.mrb[0].mxu0
        %v603 = vpop.f32.mrb[0].mxu0
        %v604 = vadd.f32 %v327, %v603
        %v605 = vpop.f32.mrb[0].mxu0
        %606 = vmatprep.mubr.bf16.mxu0 0
        %607 = vmatmul.mubr.bf16.gmra.mrb[0].mxu0 %v473
        %v608 = vpop.f32.mrb[0].mxu0
        %v609 = vadd.f32 %v327, %v608
        %v610 = vpop.f32.mrb[0].mxu0
        %v611 = vpop.f32.mrb[0].mxu0
        %v612 = vadd.f32 %v327, %v611
        %v613 = vpop.f32.mrb[0].mxu0
        %614 = vmatprep.mubr.bf16.mxu0 0
        %615 = vmatmul.mubr.bf16.gmra.mrb[0].mxu0 %v476
        %v616 = vpop.f32.mrb[0].mxu0
        %v617 = vadd.f32 %v327, %v616
        %v618 = vpop.f32.mrb[0].mxu0
        %v619 = vpop.f32.mrb[0].mxu0
        %v620 = vadd.f32 %v327, %v619
        %v621 = vpop.f32.mrb[0].mxu0
        %622 = vmatprep.mubr.bf16.mxu0 0
        %623 = vmatmul.mubr.bf16.gmra.mrb[0].mxu0 %v479
        %v624 = vpop.f32.mrb[0].mxu0
        %v625 = vadd.f32 %v327, %v624
        %v626 = vpop.f32.mrb[0].mxu0
        %v627 = vpop.f32.mrb[0].mxu0
        %v628 = vadd.f32 %v327, %v627
        %v629 = vpop.f32.mrb[0].mxu0
        %630 = vmatprep.mubr.bf16.mxu0 0
        %631 = vmatmul.mubr.bf16.gmra.mrb[0].mxu0 %v482
        %v632 = vpop.f32.mrb[0].mxu0
        %v633 = vadd.f32 %v327, %v632
        %v634 = vpop.f32.mrb[0].mxu0
        %v635 = vpop.f32.mrb[0].mxu0
        %v636 = vadd.f32 %v327, %v635
        %v637 = vpop.f32.mrb[0].mxu0
        %638 = vmatprep.mubr.bf16.mxu0 0
        %639 = vmatmul.mubr.bf16.gmra.mrb[0].mxu0 %v485
        %v640 = vpop.f32.mrb[0].mxu0
        %v641 = vadd.f32 %v327, %v640
        %v642 = vpop.f32.mrb[0].mxu0
        %v643 = vpop.f32.mrb[0].mxu0
        %v644 = vadd.f32 %v327, %v643
        %v645 = vpop.f32.mrb[0].mxu0
        %646 = vmatprep.mubr.bf16.mxu0 0
        %647 = vmatmul.mubr.bf16.gmra.mrb[0].mxu0 %v488
        %v648 = vpop.f32.mrb[0].mxu0
        %v649 = vadd.f32 %v327, %v648
        %v650 = vpop.f32.mrb[0].mxu0
        %v651 = vpop.f32.mrb[0].mxu0
        %v652 = vadd.f32 %v327, %v651
        %v653 = vpop.f32.mrb[0].mxu0
        %654 = vdwg.mxu0
        %v655 = vld [vmem:[%s256] sm:$0xff]
        %v656 = vld [vmem:[%s256 + $0x8] sm:$0xff]
        %v657 = vld [vmem:[%s256 + $0x10] sm:$0xff]
        %v658 = vld [vmem:[%s256 + $0x18] sm:$0xff]
        %v659 = vld [vmem:[%s256 + $0x20] sm:$0xff]
        %v660 = vld [vmem:[%s256 + $0x28] sm:$0xff]
        %v661 = vld [vmem:[%s256 + $0x30] sm:$0xff]
        %v662 = vld [vmem:[%s256 + $0x38] sm:$0xff]
        %v663 = vld [vmem:[%s256 + $0x40] sm:$0xff]
        %v664 = vld [vmem:[%s256 + $0x48] sm:$0xff]
        %v665 = vld [vmem:[%s256 + $0x50] sm:$0xff]
        %v666 = vld [vmem:[%s256 + $0x58] sm:$0xff]
        %v667 = vld [vmem:[%s256 + $0x60] sm:$0xff]
        %v668 = vld [vmem:[%s256 + $0x68] sm:$0xff]
        %v669 = vld [vmem:[%s256 + $0x70] sm:$0xff]
        %v670 = vld [vmem:[%s256 + $0x78] sm:$0xff]
        %v671 = vld [vmem:[%s256 + $0x80] sm:$0xff]
        %v672 = vld [vmem:[%s256 + $0x88] sm:$0xff]
        %v673 = vld [vmem:[%s256 + $0x90] sm:$0xff]
        %v674 = vld [vmem:[%s256 + $0x98] sm:$0xff]
        %v675 = vld [vmem:[%s256 + $0xa0] sm:$0xff]
        %v676 = vld [vmem:[%s256 + $0xa8] sm:$0xff]
        %v677 = vld [vmem:[%s256 + $0xb0] sm:$0xff]
        %v678 = vld [vmem:[%s256 + $0xb8] sm:$0xff]
        %v679 = vld [vmem:[%s256 + $0xc0] sm:$0xff]
        %v680 = vld [vmem:[%s256 + $0xc8] sm:$0xff]
        %v681 = vld [vmem:[%s256 + $0xd0] sm:$0xff]
        %v682 = vld [vmem:[%s256 + $0xd8] sm:$0xff]
        %v683 = vld [vmem:[%s256 + $0xe0] sm:$0xff]
        %v684 = vld [vmem:[%s256 + $0xe8] sm:$0xff]
        %v685 = vld [vmem:[%s256 + $0xf0] sm:$0xff]
        %v686 = vld [vmem:[%s256 + $0xf8] sm:$0xff]
        %719 = vrot.lane.b32.xlu0 %v655, 1
        %v720 = vpop.permute.xlu0 %719
        %721 = vrot.lane.b32.xlu0 %v656, 1
        %v722 = vpop.permute.xlu0 %721
        %723 = vrot.lane.b32.xlu0 %v657, 1
        %v724 = vpop.permute.xlu0 %723
        %725 = vrot.lane.b32.xlu0 %v658, 1
        %v726 = vpop.permute.xlu0 %725
        %727 = vrot.lane.b32.xlu0 %v659, 1
        %v728 = vpop.permute.xlu0 %727
        %729 = vrot.lane.b32.xlu0 %v660, 1
        %v730 = vpop.permute.xlu0 %729
        %731 = vrot.lane.b32.xlu0 %v661, 1
        %v732 = vpop.permute.xlu0 %731
        %733 = vrot.lane.b32.xlu0 %v662, 1
        %v734 = vpop.permute.xlu0 %733
        %735 = vrot.lane.b32.xlu0 %v663, 1
        %v736 = vpop.permute.xlu0 %735
        %737 = vrot.lane.b32.xlu0 %v664, 1
        %v738 = vpop.permute.xlu0 %737
        %739 = vrot.lane.b32.xlu0 %v665, 1
        %v740 = vpop.permute.xlu0 %739
        %741 = vrot.lane.b32.xlu0 %v666, 1
        %v742 = vpop.permute.xlu0 %741
        %743 = vrot.lane.b32.xlu0 %v667, 1
        %v744 = vpop.permute.xlu0 %743
        %745 = vrot.lane.b32.xlu0 %v668, 1
        %v746 = vpop.permute.xlu0 %745
        %747 = vrot.lane.b32.xlu0 %v669, 1
        %v748 = vpop.permute.xlu0 %747
        %749 = vrot.lane.b32.xlu0 %v670, 1
        %v750 = vpop.permute.xlu0 %749
        %751 = vrot.lane.b32.xlu0 %v671, 1
        %v752 = vpop.permute.xlu0 %751
        %753 = vrot.lane.b32.xlu0 %v672, 1
        %v754 = vpop.permute.xlu0 %753
        %755 = vrot.lane.b32.xlu0 %v673, 1
        %v756 = vpop.permute.xlu0 %755
        %757 = vrot.lane.b32.xlu0 %v674, 1
        %v758 = vpop.permute.xlu0 %757
        %759 = vrot.lane.b32.xlu0 %v675, 1
        %v760 = vpop.permute.xlu0 %759
        %761 = vrot.lane.b32.xlu0 %v676, 1
        %v762 = vpop.permute.xlu0 %761
        %763 = vrot.lane.b32.xlu0 %v677, 1
        %v764 = vpop.permute.xlu0 %763
        %765 = vrot.lane.b32.xlu0 %v678, 1
        %v766 = vpop.permute.xlu0 %765
        %767 = vrot.lane.b32.xlu0 %v679, 1
        %v768 = vpop.permute.xlu0 %767
        %769 = vrot.lane.b32.xlu0 %v680, 1
        %v770 = vpop.permute.xlu0 %769
        %771 = vrot.lane.b32.xlu0 %v681, 1
        %v772 = vpop.permute.xlu0 %771
        %773 = vrot.lane.b32.xlu0 %v682, 1
        %v774 = vpop.permute.xlu0 %773
        %775 = vrot.lane.b32.xlu0 %v683, 1
        %v776 = vpop.permute.xlu0 %775
        %777 = vrot.lane.b32.xlu0 %v684, 1
        %v778 = vpop.permute.xlu0 %777
        %779 = vrot.lane.b32.xlu0 %v685, 1
        %v780 = vpop.permute.xlu0 %779
        %781 = vrot.lane.b32.xlu0 %v686, 1
        %v782 = vpop.permute.xlu0 %781
        %v815 = vsub.f32 %v655, %v720
        %v816 = vsub.f32 %v656, %v722
        %v817 = vsub.f32 %v657, %v724
        %v818 = vsub.f32 %v658, %v726
        %v819 = vsub.f32 %v659, %v728
        %v820 = vsub.f32 %v660, %v730
        %v821 = vsub.f32 %v661, %v732
        %v822 = vsub.f32 %v662, %v734
        %v823 = vsub.f32 %v663, %v736
        %v824 = vsub.f32 %v664, %v738
        %v825 = vsub.f32 %v665, %v740
        %v826 = vsub.f32 %v666, %v742
        %v827 = vsub.f32 %v667, %v744
        %v828 = vsub.f32 %v668, %v746
        %v829 = vsub.f32 %v669, %v748
        %v830 = vsub.f32 %v670, %v750
        %v831 = vsub.f32 %v671, %v752
        %v832 = vsub.f32 %v672, %v754
        %v833 = vsub.f32 %v673, %v756
        %v834 = vsub.f32 %v674, %v758
        %v835 = vsub.f32 %v675, %v760
        %v836 = vsub.f32 %v676, %v762
        %v837 = vsub.f32 %v677, %v764
        %v838 = vsub.f32 %v678, %v766
        %v839 = vsub.f32 %v679, %v768
        %v840 = vsub.f32 %v680, %v770
        %v841 = vsub.f32 %v681, %v772
        %v842 = vsub.f32 %v682, %v774
        %v843 = vsub.f32 %v683, %v776
        %v844 = vsub.f32 %v684, %v778
        %v845 = vsub.f32 %v685, %v780
        %v846 = vsub.f32 %v686, %v782
        %v847 = vld [vmem:[%s2 + $0x4] sm:$0x1]
        %849 = vset.pattern.permute.xlu0 1
        %850 = vperm.xlu0 %849, %v815
        %v851 = vpop.permute.xlu0 %850
        %854 = vset.pattern.permute.xlu0 1
        %855 = vperm.xlu0 %854, %v816
        %v856 = vpop.permute.xlu0 %855
        %859 = vset.pattern.permute.xlu0 1
        %860 = vperm.xlu0 %859, %v817
        %v861 = vpop.permute.xlu0 %860
        %864 = vset.pattern.permute.xlu0 1
        %865 = vperm.xlu0 %864, %v818
        %v866 = vpop.permute.xlu0 %865
        %869 = vset.pattern.permute.xlu0 1
        %870 = vperm.xlu0 %869, %v819
        %v871 = vpop.permute.xlu0 %870
        %874 = vset.pattern.permute.xlu0 1
        %875 = vperm.xlu0 %874, %v820
        %v876 = vpop.permute.xlu0 %875
        %879 = vset.pattern.permute.xlu0 1
        %880 = vperm.xlu0 %879, %v821
        %v881 = vpop.permute.xlu0 %880
        %884 = vset.pattern.permute.xlu0 1
        %885 = vperm.xlu0 %884, %v822
        %v886 = vpop.permute.xlu0 %885
        %889 = vset.pattern.permute.xlu0 1
        %890 = vperm.xlu0 %889, %v823
        %v891 = vpop.permute.xlu0 %890
        %894 = vset.pattern.permute.xlu0 1
        %895 = vperm.xlu0 %894, %v824
        %v896 = vpop.permute.xlu0 %895
        %899 = vset.pattern.permute.xlu0 1
        %900 = vperm.xlu0 %899, %v825
        %v901 = vpop.permute.xlu0 %900
        %904 = vset.pattern.permute.xlu0 1
        %905 = vperm.xlu0 %904, %v826
        %v906 = vpop.permute.xlu0 %905
        %909 = vset.pattern.permute.xlu0 1
        %910 = vperm.xlu0 %909, %v827
        %v911 = vpop.permute.xlu0 %910
        %914 = vset.pattern.permute.xlu0 1
        %915 = vperm.xlu0 %914, %v828
        %v916 = vpop.permute.xlu0 %915
        %919 = vset.pattern.permute.xlu0 1
        %920 = vperm.xlu0 %919, %v829
        %v921 = vpop.permute.xlu0 %920
        %924 = vset.pattern.permute.xlu0 1
        %925 = vperm.xlu0 %924, %v830
        %v926 = vpop.permute.xlu0 %925
        %929 = vset.pattern.permute.xlu0 1
        %930 = vperm.xlu0 %929, %v831
        %v931 = vpop.permute.xlu0 %930
        %934 = vset.pattern.permute.xlu0 1
        %935 = vperm.xlu0 %934, %v832
        %v936 = vpop.permute.xlu0 %935
        %939 = vset.pattern.permute.xlu0 1
        %940 = vperm.xlu0 %939, %v833
        %v941 = vpop.permute.xlu0 %940
        %944 = vset.pattern.permute.xlu0 1
        %945 = vperm.xlu0 %944, %v834
        %v946 = vpop.permute.xlu0 %945
        %949 = vset.pattern.permute.xlu0 1
        %950 = vperm.xlu0 %949, %v835
        %v951 = vpop.permute.xlu0 %950
        %954 = vset.pattern.permute.xlu0 1
        %955 = vperm.xlu0 %954, %v836
        %v956 = vpop.permute.xlu0 %955
        %959 = vset.pattern.permute.xlu0 1
        %960 = vperm.xlu0 %959, %v837
        %v961 = vpop.permute.xlu0 %960
        %964 = vset.pattern.permute.xlu0 1
        %965 = vperm.xlu0 %964, %v838
        %v966 = vpop.permute.xlu0 %965
        %969 = vset.pattern.permute.xlu0 1
        %970 = vperm.xlu0 %969, %v839
        %v971 = vpop.permute.xlu0 %970
        %974 = vset.pattern.permute.xlu0 1
        %975 = vperm.xlu0 %974, %v840
        %v976 = vpop.permute.xlu0 %975
        %979 = vset.pattern.permute.xlu0 1
        %980 = vperm.xlu0 %979, %v841
        %v981 = vpop.permute.xlu0 %980
        %984 = vset.pattern.permute.xlu0 1
        %985 = vperm.xlu0 %984, %v842
        %v986 = vpop.permute.xlu0 %985
        %989 = vset.pattern.permute.xlu0 1
        %990 = vperm.xlu0 %989, %v843
        %v991 = vpop.permute.xlu0 %990
        %994 = vset.pattern.permute.xlu0 1
        %995 = vperm.xlu0 %994, %v844
        %v996 = vpop.permute.xlu0 %995
        %999 = vset.pattern.permute.xlu0 1
        %1000 = vperm.xlu0 %999, %v845
        %v1001 = vpop.permute.xlu0 %1000
        %1004 = vset.pattern.permute.xlu0 1
        %1005 = vperm.xlu0 %1004, %v846
        %v1006 = vpop.permute.xlu0 %1005
        %v1008 = vlaneseq
        %v1009 = vshrl.u32 %v1008, 7
        %v1010 = vsub.s32 0, %v1009
        %v1011 = vrot.slane %v847, %v1010
        %v1012 = vmul.f32 %v851, %v1011
        %v1013 = vmul.f32 %v856, %v1011
        %v1014 = vmul.f32 %v861, %v1011
        %v1015 = vmul.f32 %v866, %v1011
        %v1016 = vmul.f32 %v871, %v1011
        %v1017 = vmul.f32 %v876, %v1011
        %v1018 = vmul.f32 %v881, %v1011
        %v1019 = vmul.f32 %v886, %v1011
        %v1020 = vmul.f32 %v891, %v1011
        %v1021 = vmul.f32 %v896, %v1011
        %v1022 = vmul.f32 %v901, %v1011
        %v1023 = vmul.f32 %v906, %v1011
        %v1024 = vmul.f32 %v911, %v1011
        %v1025 = vmul.f32 %v916, %v1011
        %v1026 = vmul.f32 %v921, %v1011
        %v1027 = vmul.f32 %v926, %v1011
        %v1028 = vmul.f32 %v931, %v1011
        %v1029 = vmul.f32 %v936, %v1011
        %v1030 = vmul.f32 %v941, %v1011
        %v1031 = vmul.f32 %v946, %v1011
        %v1032 = vmul.f32 %v951, %v1011
        %v1033 = vmul.f32 %v956, %v1011
        %v1034 = vmul.f32 %v961, %v1011
        %v1035 = vmul.f32 %v966, %v1011
        %v1036 = vmul.f32 %v971, %v1011
        %v1037 = vmul.f32 %v976, %v1011
        %v1038 = vmul.f32 %v981, %v1011
        %v1039 = vmul.f32 %v986, %v1011
        %v1040 = vmul.f32 %v991, %v1011
        %v1041 = vmul.f32 %v996, %v1011
        %v1042 = vmul.f32 %v1001, %v1011
        %v1043 = vmul.f32 %v1006, %v1011
        %1044 = vset.pattern.permute.xlu0 0
        %1045 = vperm.xlu0 %1044, %v655
        %v1046 = vpop.permute.xlu0 %1045
        %1048 = vset.pattern.permute.xlu0 0
        %1049 = vperm.xlu0 %1048, %v656
        %v1050 = vpop.permute.xlu0 %1049
        %1052 = vset.pattern.permute.xlu0 0
        %1053 = vperm.xlu0 %1052, %v657
        %v1054 = vpop.permute.xlu0 %1053
        %1056 = vset.pattern.permute.xlu0 0
        %1057 = vperm.xlu0 %1056, %v658
        %v1058 = vpop.permute.xlu0 %1057
        %1060 = vset.pattern.permute.xlu0 0
        %1061 = vperm.xlu0 %1060, %v659
        %v1062 = vpop.permute.xlu0 %1061
        %1064 = vset.pattern.permute.xlu0 0
        %1065 = vperm.xlu0 %1064, %v660
        %v1066 = vpop.permute.xlu0 %1065
        %1068 = vset.pattern.permute.xlu0 0
        %1069 = vperm.xlu0 %1068, %v661
        %v1070 = vpop.permute.xlu0 %1069
        %1072 = vset.pattern.permute.xlu0 0
        %1073 = vperm.xlu0 %1072, %v662
        %v1074 = vpop.permute.xlu0 %1073
        %1076 = vset.pattern.permute.xlu0 0
        %1077 = vperm.xlu0 %1076, %v663
        %v1078 = vpop.permute.xlu0 %1077
        %1080 = vset.pattern.permute.xlu0 0
        %1081 = vperm.xlu0 %1080, %v664
        %v1082 = vpop.permute.xlu0 %1081
        %1084 = vset.pattern.permute.xlu0 0
        %1085 = vperm.xlu0 %1084, %v665
        %v1086 = vpop.permute.xlu0 %1085
        %1088 = vset.pattern.permute.xlu0 0
        %1089 = vperm.xlu0 %1088, %v666
        %v1090 = vpop.permute.xlu0 %1089
        %1092 = vset.pattern.permute.xlu0 0
        %1093 = vperm.xlu0 %1092, %v667
        %v1094 = vpop.permute.xlu0 %1093
        %1096 = vset.pattern.permute.xlu0 0
        %1097 = vperm.xlu0 %1096, %v668
        %v1098 = vpop.permute.xlu0 %1097
        %1100 = vset.pattern.permute.xlu0 0
        %1101 = vperm.xlu0 %1100, %v669
        %v1102 = vpop.permute.xlu0 %1101
        %1104 = vset.pattern.permute.xlu0 0
        %1105 = vperm.xlu0 %1104, %v670
        %v1106 = vpop.permute.xlu0 %1105
        %1108 = vset.pattern.permute.xlu0 0
        %1109 = vperm.xlu0 %1108, %v671
        %v1110 = vpop.permute.xlu0 %1109
        %1112 = vset.pattern.permute.xlu0 0
        %1113 = vperm.xlu0 %1112, %v672
        %v1114 = vpop.permute.xlu0 %1113
        %1116 = vset.pattern.permute.xlu0 0
        %1117 = vperm.xlu0 %1116, %v673
        %v1118 = vpop.permute.xlu0 %1117
        %1120 = vset.pattern.permute.xlu0 0
        %1121 = vperm.xlu0 %1120, %v674
        %v1122 = vpop.permute.xlu0 %1121
        %1124 = vset.pattern.permute.xlu0 0
        %1125 = vperm.xlu0 %1124, %v675
        %v1126 = vpop.permute.xlu0 %1125
        %1128 = vset.pattern.permute.xlu0 0
        %1129 = vperm.xlu0 %1128, %v676
        %v1130 = vpop.permute.xlu0 %1129
        %1132 = vset.pattern.permute.xlu0 0
        %1133 = vperm.xlu0 %1132, %v677
        %v1134 = vpop.permute.xlu0 %1133
        %1136 = vset.pattern.permute.xlu0 0
        %1137 = vperm.xlu0 %1136, %v678
        %v1138 = vpop.permute.xlu0 %1137
        %1140 = vset.pattern.permute.xlu0 0
        %1141 = vperm.xlu0 %1140, %v679
        %v1142 = vpop.permute.xlu0 %1141
        %1144 = vset.pattern.permute.xlu0 0
        %1145 = vperm.xlu0 %1144, %v680
        %v1146 = vpop.permute.xlu0 %1145
        %1148 = vset.pattern.permute.xlu0 0
        %1149 = vperm.xlu0 %1148, %v681
        %v1150 = vpop.permute.xlu0 %1149
        %1152 = vset.pattern.permute.xlu0 0
        %1153 = vperm.xlu0 %1152, %v682
        %v1154 = vpop.permute.xlu0 %1153
        %1156 = vset.pattern.permute.xlu0 0
        %1157 = vperm.xlu0 %1156, %v683
        %v1158 = vpop.permute.xlu0 %1157
        %1160 = vset.pattern.permute.xlu0 0
        %1161 = vperm.xlu0 %1160, %v684
        %v1162 = vpop.permute.xlu0 %1161
        %1164 = vset.pattern.permute.xlu0 0
        %1165 = vperm.xlu0 %1164, %v685
        %v1166 = vpop.permute.xlu0 %1165
        %1168 = vset.pattern.permute.xlu0 0
        %1169 = vperm.xlu0 %1168, %v686
        %v1170 = vpop.permute.xlu0 %1169
        %v1172 = vadd.f32 %v1046, %v1012
        %v1173 = vadd.f32 %v1050, %v1013
        %v1174 = vadd.f32 %v1054, %v1014
        %v1175 = vadd.f32 %v1058, %v1015
        %v1176 = vadd.f32 %v1062, %v1016
        %v1177 = vadd.f32 %v1066, %v1017
        %v1178 = vadd.f32 %v1070, %v1018
        %v1179 = vadd.f32 %v1074, %v1019
        %v1180 = vadd.f32 %v1078, %v1020
        %v1181 = vadd.f32 %v1082, %v1021
        %v1182 = vadd.f32 %v1086, %v1022
        %v1183 = vadd.f32 %v1090, %v1023
        %v1184 = vadd.f32 %v1094, %v1024
        %v1185 = vadd.f32 %v1098, %v1025
        %v1186 = vadd.f32 %v1102, %v1026
        %v1187 = vadd.f32 %v1106, %v1027
        %v1188 = vadd.f32 %v1110, %v1028
        %v1189 = vadd.f32 %v1114, %v1029
        %v1190 = vadd.f32 %v1118, %v1030
        %v1191 = vadd.f32 %v1122, %v1031
        %v1192 = vadd.f32 %v1126, %v1032
        %v1193 = vadd.f32 %v1130, %v1033
        %v1194 = vadd.f32 %v1134, %v1034
        %v1195 = vadd.f32 %v1138, %v1035
        %v1196 = vadd.f32 %v1142, %v1036
        %v1197 = vadd.f32 %v1146, %v1037
        %v1198 = vadd.f32 %v1150, %v1038
        %v1199 = vadd.f32 %v1154, %v1039
        %v1200 = vadd.f32 %v1158, %v1040
        %v1201 = vadd.f32 %v1162, %v1041
        %v1202 = vadd.f32 %v1166, %v1042
        %v1203 = vadd.f32 %v1170, %v1043
        %1204 = vrot.lane.b32.xlu0 %v655, 2
        %v1205 = vpop.permute.xlu0 %1204
        %1206 = vrot.lane.b32.xlu0 %v656, 2
        %v1207 = vpop.permute.xlu0 %1206
        %1208 = vrot.lane.b32.xlu0 %v657, 2
        %v1209 = vpop.permute.xlu0 %1208
        %1210 = vrot.lane.b32.xlu0 %v658, 2
        %v1211 = vpop.permute.xlu0 %1210
        %1212 = vrot.lane.b32.xlu0 %v659, 2
        %v1213 = vpop.permute.xlu0 %1212
        %1214 = vrot.lane.b32.xlu0 %v660, 2
        %v1215 = vpop.permute.xlu0 %1214
        %1216 = vrot.lane.b32.xlu0 %v661, 2
        %v1217 = vpop.permute.xlu0 %1216
        %1218 = vrot.lane.b32.xlu0 %v662, 2
        %v1219 = vpop.permute.xlu0 %1218
        %1220 = vrot.lane.b32.xlu0 %v663, 2
        %v1221 = vpop.permute.xlu0 %1220
        %1222 = vrot.lane.b32.xlu0 %v664, 2
        %v1223 = vpop.permute.xlu0 %1222
        %1224 = vrot.lane.b32.xlu0 %v665, 2
        %v1225 = vpop.permute.xlu0 %1224
        %1226 = vrot.lane.b32.xlu0 %v666, 2
        %v1227 = vpop.permute.xlu0 %1226
        %1228 = vrot.lane.b32.xlu0 %v667, 2
        %v1229 = vpop.permute.xlu0 %1228
        %1230 = vrot.lane.b32.xlu0 %v668, 2
        %v1231 = vpop.permute.xlu0 %1230
        %1232 = vrot.lane.b32.xlu0 %v669, 2
        %v1233 = vpop.permute.xlu0 %1232
        %1234 = vrot.lane.b32.xlu0 %v670, 2
        %v1235 = vpop.permute.xlu0 %1234
        %1236 = vrot.lane.b32.xlu0 %v671, 2
        %v1237 = vpop.permute.xlu0 %1236
        %1238 = vrot.lane.b32.xlu0 %v672, 2
        %v1239 = vpop.permute.xlu0 %1238
        %1240 = vrot.lane.b32.xlu0 %v673, 2
        %v1241 = vpop.permute.xlu0 %1240
        %1242 = vrot.lane.b32.xlu0 %v674, 2
        %v1243 = vpop.permute.xlu0 %1242
        %1244 = vrot.lane.b32.xlu0 %v675, 2
        %v1245 = vpop.permute.xlu0 %1244
        %1246 = vrot.lane.b32.xlu0 %v676, 2
        %v1247 = vpop.permute.xlu0 %1246
        %1248 = vrot.lane.b32.xlu0 %v677, 2
        %v1249 = vpop.permute.xlu0 %1248
        %1250 = vrot.lane.b32.xlu0 %v678, 2
        %v1251 = vpop.permute.xlu0 %1250
        %1252 = vrot.lane.b32.xlu0 %v679, 2
        %v1253 = vpop.permute.xlu0 %1252
        %1254 = vrot.lane.b32.xlu0 %v680, 2
        %v1255 = vpop.permute.xlu0 %1254
        %1256 = vrot.lane.b32.xlu0 %v681, 2
        %v1257 = vpop.permute.xlu0 %1256
        %1258 = vrot.lane.b32.xlu0 %v682, 2
        %v1259 = vpop.permute.xlu0 %1258
        %1260 = vrot.lane.b32.xlu0 %v683, 2
        %v1261 = vpop.permute.xlu0 %1260
        %1262 = vrot.lane.b32.xlu0 %v684, 2
        %v1263 = vpop.permute.xlu0 %1262
        %1264 = vrot.lane.b32.xlu0 %v685, 2
        %v1265 = vpop.permute.xlu0 %1264
        %1266 = vrot.lane.b32.xlu0 %v686, 2
        %v1267 = vpop.permute.xlu0 %1266
        %v1300 = vsub.f32 %v655, %v1205
        %v1301 = vsub.f32 %v656, %v1207
        %v1302 = vsub.f32 %v657, %v1209
        %v1303 = vsub.f32 %v658, %v1211
        %v1304 = vsub.f32 %v659, %v1213
        %v1305 = vsub.f32 %v660, %v1215
        %v1306 = vsub.f32 %v661, %v1217
        %v1307 = vsub.f32 %v662, %v1219
        %v1308 = vsub.f32 %v663, %v1221
        %v1309 = vsub.f32 %v664, %v1223
        %v1310 = vsub.f32 %v665, %v1225
        %v1311 = vsub.f32 %v666, %v1227
        %v1312 = vsub.f32 %v667, %v1229
        %v1313 = vsub.f32 %v668, %v1231
        %v1314 = vsub.f32 %v669, %v1233
        %v1315 = vsub.f32 %v670, %v1235
        %v1316 = vsub.f32 %v671, %v1237
        %v1317 = vsub.f32 %v672, %v1239
        %v1318 = vsub.f32 %v673, %v1241
        %v1319 = vsub.f32 %v674, %v1243
        %v1320 = vsub.f32 %v675, %v1245
        %v1321 = vsub.f32 %v676, %v1247
        %v1322 = vsub.f32 %v677, %v1249
        %v1323 = vsub.f32 %v678, %v1251
        %v1324 = vsub.f32 %v679, %v1253
        %v1325 = vsub.f32 %v680, %v1255
        %v1326 = vsub.f32 %v681, %v1257
        %v1327 = vsub.f32 %v682, %v1259
        %v1328 = vsub.f32 %v683, %v1261
        %v1329 = vsub.f32 %v684, %v1263
        %v1330 = vsub.f32 %v685, %v1265
        %v1331 = vsub.f32 %v686, %v1267
        %v1332 = vld [vmem:[%s2 + $0x5] sm:$0x1]
        %1334 = vset.pattern.permute.xlu0 2
        %1335 = vperm.xlu0 %1334, %v1300
        %v1336 = vpop.permute.xlu0 %1335
        %1339 = vset.pattern.permute.xlu0 2
        %1340 = vperm.xlu0 %1339, %v1301
        %v1341 = vpop.permute.xlu0 %1340
        %1344 = vset.pattern.permute.xlu0 2
        %1345 = vperm.xlu0 %1344, %v1302
        %v1346 = vpop.permute.xlu0 %1345
        %1349 = vset.pattern.permute.xlu0 2
        %1350 = vperm.xlu0 %1349, %v1303
        %v1351 = vpop.permute.xlu0 %1350
        %1354 = vset.pattern.permute.xlu0 2
        %1355 = vperm.xlu0 %1354, %v1304
        %v1356 = vpop.permute.xlu0 %1355
        %1359 = vset.pattern.permute.xlu0 2
        %1360 = vperm.xlu0 %1359, %v1305
        %v1361 = vpop.permute.xlu0 %1360
        %1364 = vset.pattern.permute.xlu0 2
        %1365 = vperm.xlu0 %1364, %v1306
        %v1366 = vpop.permute.xlu0 %1365
        %1369 = vset.pattern.permute.xlu0 2
        %1370 = vperm.xlu0 %1369, %v1307
        %v1371 = vpop.permute.xlu0 %1370
        %1374 = vset.pattern.permute.xlu0 2
        %1375 = vperm.xlu0 %1374, %v1308
        %v1376 = vpop.permute.xlu0 %1375
        %1379 = vset.pattern.permute.xlu0 2
        %1380 = vperm.xlu0 %1379, %v1309
        %v1381 = vpop.permute.xlu0 %1380
        %1384 = vset.pattern.permute.xlu0 2
        %1385 = vperm.xlu0 %1384, %v1310
        %v1386 = vpop.permute.xlu0 %1385
        %1389 = vset.pattern.permute.xlu0 2
        %1390 = vperm.xlu0 %1389, %v1311
        %v1391 = vpop.permute.xlu0 %1390
        %1394 = vset.pattern.permute.xlu0 2
        %1395 = vperm.xlu0 %1394, %v1312
        %v1396 = vpop.permute.xlu0 %1395
        %1399 = vset.pattern.permute.xlu0 2
        %1400 = vperm.xlu0 %1399, %v1313
        %v1401 = vpop.permute.xlu0 %1400
        %1404 = vset.pattern.permute.xlu0 2
        %1405 = vperm.xlu0 %1404, %v1314
        %v1406 = vpop.permute.xlu0 %1405
        %1409 = vset.pattern.permute.xlu0 2
        %1410 = vperm.xlu0 %1409, %v1315
        %v1411 = vpop.permute.xlu0 %1410
        %1414 = vset.pattern.permute.xlu0 2
        %1415 = vperm.xlu0 %1414, %v1316
        %v1416 = vpop.permute.xlu0 %1415
        %1419 = vset.pattern.permute.xlu0 2
        %1420 = vperm.xlu0 %1419, %v1317
        %v1421 = vpop.permute.xlu0 %1420
        %1424 = vset.pattern.permute.xlu0 2
        %1425 = vperm.xlu0 %1424, %v1318
        %v1426 = vpop.permute.xlu0 %1425
        %1429 = vset.pattern.permute.xlu0 2
        %1430 = vperm.xlu0 %1429, %v1319
        %v1431 = vpop.permute.xlu0 %1430
        %1434 = vset.pattern.permute.xlu0 2
        %1435 = vperm.xlu0 %1434, %v1320
        %v1436 = vpop.permute.xlu0 %1435
        %1439 = vset.pattern.permute.xlu0 2
        %1440 = vperm.xlu0 %1439, %v1321
        %v1441 = vpop.permute.xlu0 %1440
        %1444 = vset.pattern.permute.xlu0 2
        %1445 = vperm.xlu0 %1444, %v1322
        %v1446 = vpop.permute.xlu0 %1445
        %1449 = vset.pattern.permute.xlu0 2
        %1450 = vperm.xlu0 %1449, %v1323
        %v1451 = vpop.permute.xlu0 %1450
        %1454 = vset.pattern.permute.xlu0 2
        %1455 = vperm.xlu0 %1454, %v1324
        %v1456 = vpop.permute.xlu0 %1455
        %1459 = vset.pattern.permute.xlu0 2
        %1460 = vperm.xlu0 %1459, %v1325
        %v1461 = vpop.permute.xlu0 %1460
        %1464 = vset.pattern.permute.xlu0 2
        %1465 = vperm.xlu0 %1464, %v1326
        %v1466 = vpop.permute.xlu0 %1465
        %1469 = vset.pattern.permute.xlu0 2
        %1470 = vperm.xlu0 %1469, %v1327
        %v1471 = vpop.permute.xlu0 %1470
        %1474 = vset.pattern.permute.xlu0 2
        %1475 = vperm.xlu0 %1474, %v1328
        %v1476 = vpop.permute.xlu0 %1475
        %1479 = vset.pattern.permute.xlu0 2
        %1480 = vperm.xlu0 %1479, %v1329
        %v1481 = vpop.permute.xlu0 %1480
        %1484 = vset.pattern.permute.xlu0 2
        %1485 = vperm.xlu0 %1484, %v1330
        %v1486 = vpop.permute.xlu0 %1485
        %1489 = vset.pattern.permute.xlu0 2
        %1490 = vperm.xlu0 %1489, %v1331
        %v1491 = vpop.permute.xlu0 %1490
        %v1493 = vlaneseq
        %v1494 = vshrl.u32 %v1493, 7
        %v1495 = vsub.s32 0, %v1494
        %v1496 = vrot.slane %v1332, %v1495
        %v1497 = vmul.f32 %v1336, %v1496
        %v1498 = vmul.f32 %v1341, %v1496
        %v1499 = vmul.f32 %v1346, %v1496
        %v1500 = vmul.f32 %v1351, %v1496
        %v1501 = vmul.f32 %v1356, %v1496
        %v1502 = vmul.f32 %v1361, %v1496
        %v1503 = vmul.f32 %v1366, %v1496
        %v1504 = vmul.f32 %v1371, %v1496
        %v1505 = vmul.f32 %v1376, %v1496
        %v1506 = vmul.f32 %v1381, %v1496
        %v1507 = vmul.f32 %v1386, %v1496
        %v1508 = vmul.f32 %v1391, %v1496
        %v1509 = vmul.f32 %v1396, %v1496
        %v1510 = vmul.f32 %v1401, %v1496
        %v1511 = vmul.f32 %v1406, %v1496
        %v1512 = vmul.f32 %v1411, %v1496
        %v1513 = vmul.f32 %v1416, %v1496
        %v1514 = vmul.f32 %v1421, %v1496
        %v1515 = vmul.f32 %v1426, %v1496
        %v1516 = vmul.f32 %v1431, %v1496
        %v1517 = vmul.f32 %v1436, %v1496
        %v1518 = vmul.f32 %v1441, %v1496
        %v1519 = vmul.f32 %v1446, %v1496
        %v1520 = vmul.f32 %v1451, %v1496
        %v1521 = vmul.f32 %v1456, %v1496
        %v1522 = vmul.f32 %v1461, %v1496
        %v1523 = vmul.f32 %v1466, %v1496
        %v1524 = vmul.f32 %v1471, %v1496
        %v1525 = vmul.f32 %v1476, %v1496
        %v1526 = vmul.f32 %v1481, %v1496
        %v1527 = vmul.f32 %v1486, %v1496
        %v1528 = vmul.f32 %v1491, %v1496
        %v1529 = vadd.f32 %v1172, %v1497
        %v1530 = vadd.f32 %v1173, %v1498
        %v1531 = vadd.f32 %v1174, %v1499
        %v1532 = vadd.f32 %v1175, %v1500
        %v1533 = vadd.f32 %v1176, %v1501
        %v1534 = vadd.f32 %v1177, %v1502
        %v1535 = vadd.f32 %v1178, %v1503
        %v1536 = vadd.f32 %v1179, %v1504
        %v1537 = vadd.f32 %v1180, %v1505
        %v1538 = vadd.f32 %v1181, %v1506
        %v1539 = vadd.f32 %v1182, %v1507
        %v1540 = vadd.f32 %v1183, %v1508
        %v1541 = vadd.f32 %v1184, %v1509
        %v1542 = vadd.f32 %v1185, %v1510
        %v1543 = vadd.f32 %v1186, %v1511
        %v1544 = vadd.f32 %v1187, %v1512
        %v1545 = vadd.f32 %v1188, %v1513
        %v1546 = vadd.f32 %v1189, %v1514
        %v1547 = vadd.f32 %v1190, %v1515
        %v1548 = vadd.f32 %v1191, %v1516
        %v1549 = vadd.f32 %v1192, %v1517
        %v1550 = vadd.f32 %v1193, %v1518
        %v1551 = vadd.f32 %v1194, %v1519
        %v1552 = vadd.f32 %v1195, %v1520
        %v1553 = vadd.f32 %v1196, %v1521
        %v1554 = vadd.f32 %v1197, %v1522
        %v1555 = vadd.f32 %v1198, %v1523
        %v1556 = vadd.f32 %v1199, %v1524
        %v1557 = vadd.f32 %v1200, %v1525
        %v1558 = vadd.f32 %v1201, %v1526
        %v1559 = vadd.f32 %v1202, %v1527
        %v1560 = vadd.f32 %v1203, %v1528
        %v1561 = vmul.f32 %v1529, %v529
        %v1562 = vmul.f32 %v1530, %v532
        %v1563 = vmul.f32 %v1531, %v537
        %v1564 = vmul.f32 %v1532, %v540
        %v1565 = vmul.f32 %v1533, %v545
        %v1566 = vmul.f32 %v1534, %v548
        %v1567 = vmul.f32 %v1535, %v553
        %v1568 = vmul.f32 %v1536, %v556
        %v1569 = vmul.f32 %v1537, %v561
        %v1570 = vmul.f32 %v1538, %v564
        %v1571 = vmul.f32 %v1539, %v569
        %v1572 = vmul.f32 %v1540, %v572
        %v1573 = vmul.f32 %v1541, %v577
        %v1574 = vmul.f32 %v1542, %v580
        %v1575 = vmul.f32 %v1543, %v585
        %v1576 = vmul.f32 %v1544, %v588
        %v1577 = vmul.f32 %v1545, %v593
        %v1578 = vmul.f32 %v1546, %v596
        %v1579 = vmul.f32 %v1547, %v601
        %v1580 = vmul.f32 %v1548, %v604
        %v1581 = vmul.f32 %v1549, %v609
        %v1582 = vmul.f32 %v1550, %v612
        %v1583 = vmul.f32 %v1551, %v617
        %v1584 = vmul.f32 %v1552, %v620
        %v1585 = vmul.f32 %v1553, %v625
        %v1586 = vmul.f32 %v1554, %v628
        %v1587 = vmul.f32 %v1555, %v633
        %v1588 = vmul.f32 %v1556, %v636
        %v1589 = vmul.f32 %v1557, %v641
        %v1590 = vmul.f32 %v1558, %v644
        %v1591 = vmul.f32 %v1559, %v649
        %v1592 = vmul.f32 %v1560, %v652
        %v1593 = vld [vmem:[#allocation2] sm:$0x1]
        %v1594 = vadd.f32 %v1561, %v1562
        %v1595 = vadd.f32 %v1594, %v1563
        %v1596 = vadd.f32 %v1595, %v1564
        %v1597 = vadd.f32 %v1596, %v1565
        %v1598 = vadd.f32 %v1597, %v1566
        %v1599 = vadd.f32 %v1598, %v1567
        %v1600 = vadd.f32 %v1599, %v1568
        %v1601 = vadd.f32 %v1600, %v1569
        %v1602 = vadd.f32 %v1601, %v1570
        %v1603 = vadd.f32 %v1602, %v1571
        %v1604 = vadd.f32 %v1603, %v1572
        %v1605 = vadd.f32 %v1604, %v1573
        %v1606 = vadd.f32 %v1605, %v1574
        %v1607 = vadd.f32 %v1606, %v1575
        %v1608 = vadd.f32 %v1607, %v1576
        %v1609 = vadd.f32 %v1608, %v1577
        %v1610 = vadd.f32 %v1609, %v1578
        %v1611 = vadd.f32 %v1610, %v1579
        %v1612 = vadd.f32 %v1611, %v1580
        %v1613 = vadd.f32 %v1612, %v1581
        %v1614 = vadd.f32 %v1613, %v1582
        %v1615 = vadd.f32 %v1614, %v1583
        %v1616 = vadd.f32 %v1615, %v1584
        %v1617 = vadd.f32 %v1616, %v1585
        %v1618 = vadd.f32 %v1617, %v1586
        %v1619 = vadd.f32 %v1618, %v1587
        %v1620 = vadd.f32 %v1619, %v1588
        %v1621 = vadd.f32 %v1620, %v1589
        %v1622 = vadd.f32 %v1621, %v1590
        %v1623 = vadd.f32 %v1622, %v1591
        %v1624 = vadd.f32 %v1623, %v1592
        %v1625 = vrot.slane %v1624, 4
        %v1626 = vadd.f32 %v1624, %v1625
        %v1627 = vrot.slane %v1626, 2
        %v1628 = vadd.f32 %v1626, %v1627
        %v1629 = vrot.slane %v1628, 1
        %v1630 = vadd.f32 %v1628, %v1629
        %v1631 = vadd.f32 %v1593, %v1630
        %1632 = vst [vmem:[#allocation2] sm:$0x1] %v1631
        %v1633 = vld [vmem:[#allocation3] sm:$0x1]
        %v1634 = vmul.f32 %v1561, %v529
        %v1635 = vmul.f32 %v1562, %v532
        %v1636 = vmul.f32 %v1563, %v537
        %v1637 = vmul.f32 %v1564, %v540
        %v1638 = vmul.f32 %v1565, %v545
        %v1639 = vmul.f32 %v1566, %v548
        %v1640 = vmul.f32 %v1567, %v553
        %v1641 = vmul.f32 %v1568, %v556
        %v1642 = vmul.f32 %v1569, %v561
        %v1643 = vmul.f32 %v1570, %v564
        %v1644 = vmul.f32 %v1571, %v569
        %v1645 = vmul.f32 %v1572, %v572
        %v1646 = vmul.f32 %v1573, %v577
        %v1647 = vmul.f32 %v1574, %v580
        %v1648 = vmul.f32 %v1575, %v585
        %v1649 = vmul.f32 %v1576, %v588
        %v1650 = vmul.f32 %v1577, %v593
        %v1651 = vmul.f32 %v1578, %v596
        %v1652 = vmul.f32 %v1579, %v601
        %v1653 = vmul.f32 %v1580, %v604
        %v1654 = vmul.f32 %v1581, %v609
        %v1655 = vmul.f32 %v1582, %v612
        %v1656 = vmul.f32 %v1583, %v617
        %v1657 = vmul.f32 %v1584, %v620
        %v1658 = vmul.f32 %v1585, %v625
        %v1659 = vmul.f32 %v1586, %v628
        %v1660 = vmul.f32 %v1587, %v633
        %v1661 = vmul.f32 %v1588, %v636
        %v1662 = vmul.f32 %v1589, %v641
        %v1663 = vmul.f32 %v1590, %v644
        %v1664 = vmul.f32 %v1591, %v649
        %v1665 = vmul.f32 %v1592, %v652
        %v1666 = vadd.f32 %v1634, %v1635
        %v1667 = vadd.f32 %v1666, %v1636
        %v1668 = vadd.f32 %v1667, %v1637
        %v1669 = vadd.f32 %v1668, %v1638
        %v1670 = vadd.f32 %v1669, %v1639
        %v1671 = vadd.f32 %v1670, %v1640
        %v1672 = vadd.f32 %v1671, %v1641
        %v1673 = vadd.f32 %v1672, %v1642
        %v1674 = vadd.f32 %v1673, %v1643
        %v1675 = vadd.f32 %v1674, %v1644
        %v1676 = vadd.f32 %v1675, %v1645
        %v1677 = vadd.f32 %v1676, %v1646
        %v1678 = vadd.f32 %v1677, %v1647
        %v1679 = vadd.f32 %v1678, %v1648
        %v1680 = vadd.f32 %v1679, %v1649
        %v1681 = vadd.f32 %v1680, %v1650
        %v1682 = vadd.f32 %v1681, %v1651
        %v1683 = vadd.f32 %v1682, %v1652
        %v1684 = vadd.f32 %v1683, %v1653
        %v1685 = vadd.f32 %v1684, %v1654
        %v1686 = vadd.f32 %v1685, %v1655
        %v1687 = vadd.f32 %v1686, %v1656
        %v1688 = vadd.f32 %v1687, %v1657
        %v1689 = vadd.f32 %v1688, %v1658
        %v1690 = vadd.f32 %v1689, %v1659
        %v1691 = vadd.f32 %v1690, %v1660
        %v1692 = vadd.f32 %v1691, %v1661
        %v1693 = vadd.f32 %v1692, %v1662
        %v1694 = vadd.f32 %v1693, %v1663
        %v1695 = vadd.f32 %v1694, %v1664
        %v1696 = vadd.f32 %v1695, %v1665
        %v1697 = vrot.slane %v1696, 4
        %v1698 = vadd.f32 %v1696, %v1697
        %v1699 = vrot.slane %v1698, 2
        %v1700 = vadd.f32 %v1698, %v1699
        %v1701 = vrot.slane %v1700, 1
        %v1702 = vadd.f32 %v1700, %v1701
        %v1703 = vadd.f32 %v1633, %v1702
        %1704 = vst [vmem:[#allocation3] sm:$0x1] %v1703
        %s1705 = smul.u32 %s20, 256
        %s1706 = scalar_lea.vmem [#allocation4], %s1705
        %1707 = vst [vmem:[%s1706] sm:$0xff] %v529
        %1708 = vst [vmem:[%s1706 + $0x8] sm:$0xff] %v532
        %1709 = vst [vmem:[%s1706 + $0x10] sm:$0xff] %v537
        %1710 = vst [vmem:[%s1706 + $0x18] sm:$0xff] %v540
        %1711 = vst [vmem:[%s1706 + $0x20] sm:$0xff] %v545
        %1712 = vst [vmem:[%s1706 + $0x28] sm:$0xff] %v548
        %1713 = vst [vmem:[%s1706 + $0x30] sm:$0xff] %v553
        %1714 = vst [vmem:[%s1706 + $0x38] sm:$0xff] %v556
        %1715 = vst [vmem:[%s1706 + $0x40] sm:$0xff] %v561
        %1716 = vst [vmem:[%s1706 + $0x48] sm:$0xff] %v564
        %1717 = vst [vmem:[%s1706 + $0x50] sm:$0xff] %v569
        %1718 = vst [vmem:[%s1706 + $0x58] sm:$0xff] %v572
        %1719 = vst [vmem:[%s1706 + $0x60] sm:$0xff] %v577
        %1720 = vst [vmem:[%s1706 + $0x68] sm:$0xff] %v580
        %1721 = vst [vmem:[%s1706 + $0x70] sm:$0xff] %v585
        %1722 = vst [vmem:[%s1706 + $0x78] sm:$0xff] %v588
        %1723 = vst [vmem:[%s1706 + $0x80] sm:$0xff] %v593
        %1724 = vst [vmem:[%s1706 + $0x88] sm:$0xff] %v596
        %1725 = vst [vmem:[%s1706 + $0x90] sm:$0xff] %v601
        %1726 = vst [vmem:[%s1706 + $0x98] sm:$0xff] %v604
        %1727 = vst [vmem:[%s1706 + $0xa0] sm:$0xff] %v609
        %1728 = vst [vmem:[%s1706 + $0xa8] sm:$0xff] %v612
        %1729 = vst [vmem:[%s1706 + $0xb0] sm:$0xff] %v617
        %1730 = vst [vmem:[%s1706 + $0xb8] sm:$0xff] %v620
        %1731 = vst [vmem:[%s1706 + $0xc0] sm:$0xff] %v625
        %1732 = vst [vmem:[%s1706 + $0xc8] sm:$0xff] %v628
        %1733 = vst [vmem:[%s1706 + $0xd0] sm:$0xff] %v633
        %1734 = vst [vmem:[%s1706 + $0xd8] sm:$0xff] %v636
        %1735 = vst [vmem:[%s1706 + $0xe0] sm:$0xff] %v641
        %1736 = vst [vmem:[%s1706 + $0xe8] sm:$0xff] %v644
        %1737 = vst [vmem:[%s1706 + $0xf0] sm:$0xff] %v649
        %1738 = vst [vmem:[%s1706 + $0xf8] sm:$0xff] %v652
      $region44: #{inception_forward.3} parent=35 // pred_fallthru
        _
      %p1739 = scmp.eq.s32.totalorder %s19, 1
      // Predicated region
      $region45: #{inception_forward.3} parent=35 // pred_check
        %p1740 = pneg %p1739
      $region46: #{inception_forward.3} parent=35 // pred_check_branch
        %1742 = sbr.rel (%p1740) target = $region48
      $region47: #{inception_forward.3} parent=35 // pred_region
        %s1743 = smul.u32 %s20, 256
        %s1744 = scalar_lea.vmem [#allocation4], %s1743
        %v1745 = vld [vmem:[%s1744] sm:$0xff]
        %v1746 = vld [vmem:[%s1744 + $0x8] sm:$0xff]
        %v1747 = vld [vmem:[%s1744 + $0x10] sm:$0xff]
        %v1748 = vld [vmem:[%s1744 + $0x18] sm:$0xff]
        %v1749 = vld [vmem:[%s1744 + $0x20] sm:$0xff]
        %v1750 = vld [vmem:[%s1744 + $0x28] sm:$0xff]
        %v1751 = vld [vmem:[%s1744 + $0x30] sm:$0xff]
        %v1752 = vld [vmem:[%s1744 + $0x38] sm:$0xff]
        %v1753 = vld [vmem:[%s1744 + $0x40] sm:$0xff]
        %v1754 = vld [vmem:[%s1744 + $0x48] sm:$0xff]
        %v1755 = vld [vmem:[%s1744 + $0x50] sm:$0xff]
        %v1756 = vld [vmem:[%s1744 + $0x58] sm:$0xff]
        %v1757 = vld [vmem:[%s1744 + $0x60] sm:$0xff]
        %v1758 = vld [vmem:[%s1744 + $0x68] sm:$0xff]
        %v1759 = vld [vmem:[%s1744 + $0x70] sm:$0xff]
        %v1760 = vld [vmem:[%s1744 + $0x78] sm:$0xff]
        %v1761 = vld [vmem:[%s1744 + $0x80] sm:$0xff]
        %v1762 = vld [vmem:[%s1744 + $0x88] sm:$0xff]
        %v1763 = vld [vmem:[%s1744 + $0x90] sm:$0xff]
        %v1764 = vld [vmem:[%s1744 + $0x98] sm:$0xff]
        %v1765 = vld [vmem:[%s1744 + $0xa0] sm:$0xff]
        %v1766 = vld [vmem:[%s1744 + $0xa8] sm:$0xff]
        %v1767 = vld [vmem:[%s1744 + $0xb0] sm:$0xff]
        %v1768 = vld [vmem:[%s1744 + $0xb8] sm:$0xff]
        %v1769 = vld [vmem:[%s1744 + $0xc0] sm:$0xff]
        %v1770 = vld [vmem:[%s1744 + $0xc8] sm:$0xff]
        %v1771 = vld [vmem:[%s1744 + $0xd0] sm:$0xff]
        %v1772 = vld [vmem:[%s1744 + $0xd8] sm:$0xff]
        %v1773 = vld [vmem:[%s1744 + $0xe0] sm:$0xff]
        %v1774 = vld [vmem:[%s1744 + $0xe8] sm:$0xff]
        %v1775 = vld [vmem:[%s1744 + $0xf0] sm:$0xff]
        %v1776 = vld [vmem:[%s1744 + $0xf8] sm:$0xff]
        %v1777 = vld [vmem:[%s2 + $0x3] sm:$0x1]
        %v1778 = vld [vmem:[#allocation2] sm:$0x1]
        %v1779 = vmul.f32 %v1778, %v1777
        %v1780 = vld [vmem:[#allocation3] sm:$0x1]
        %v1781 = vmul.f32 %v1780, %v1777
        %v1782 = vmul.f32 %v1779, %v1779
        %v1783 = vsub.f32 %v1781, %v1782
        %v1784 = vadd.f32 %v1783, 1e-05
        %v1785 = vrsqrt.pop %v1784
        %v1786 = vld [vmem:[%s2 + $0x1] sm:$0x1]
        %v1787 = vmul.f32 %v1785, %v1786
        %v1789 = vlaneseq
        %v1790 = vshrl.u32 %v1789, 7
        %v1791 = vsub.s32 0, %v1790
        %v1792 = vrot.slane %v1779, %v1791
        %v1794 = vsub.f32 %v1745, %v1792
        %v1795 = vsub.f32 %v1746, %v1792
        %v1796 = vsub.f32 %v1747, %v1792
        %v1797 = vsub.f32 %v1748, %v1792
        %v1798 = vsub.f32 %v1749, %v1792
        %v1799 = vsub.f32 %v1750, %v1792
        %v1800 = vsub.f32 %v1751, %v1792
        %v1801 = vsub.f32 %v1752, %v1792
        %v1802 = vsub.f32 %v1753, %v1792
        %v1803 = vsub.f32 %v1754, %v1792
        %v1804 = vsub.f32 %v1755, %v1792
        %v1805 = vsub.f32 %v1756, %v1792
        %v1806 = vsub.f32 %v1757, %v1792
        %v1807 = vsub.f32 %v1758, %v1792
        %v1808 = vsub.f32 %v1759, %v1792
        %v1809 = vsub.f32 %v1760, %v1792
        %v1810 = vsub.f32 %v1761, %v1792
        %v1811 = vsub.f32 %v1762, %v1792
        %v1812 = vsub.f32 %v1763, %v1792
        %v1813 = vsub.f32 %v1764, %v1792
        %v1814 = vsub.f32 %v1765, %v1792
        %v1815 = vsub.f32 %v1766, %v1792
        %v1816 = vsub.f32 %v1767, %v1792
        %v1817 = vsub.f32 %v1768, %v1792
        %v1818 = vsub.f32 %v1769, %v1792
        %v1819 = vsub.f32 %v1770, %v1792
        %v1820 = vsub.f32 %v1771, %v1792
        %v1821 = vsub.f32 %v1772, %v1792
        %v1822 = vsub.f32 %v1773, %v1792
        %v1823 = vsub.f32 %v1774, %v1792
        %v1824 = vsub.f32 %v1775, %v1792
        %v1825 = vsub.f32 %v1776, %v1792
        %v1827 = vlaneseq
        %v1828 = vshrl.u32 %v1827, 7
        %v1829 = vsub.s32 0, %v1828
        %v1830 = vrot.slane %v1787, %v1829
        %v1832 = vmul.f32 %v1794, %v1830
        %v1833 = vmul.f32 %v1795, %v1830
        %v1834 = vmul.f32 %v1796, %v1830
        %v1835 = vmul.f32 %v1797, %v1830
        %v1836 = vmul.f32 %v1798, %v1830
        %v1837 = vmul.f32 %v1799, %v1830
        %v1838 = vmul.f32 %v1800, %v1830
        %v1839 = vmul.f32 %v1801, %v1830
        %v1840 = vmul.f32 %v1802, %v1830
        %v1841 = vmul.f32 %v1803, %v1830
        %v1842 = vmul.f32 %v1804, %v1830
        %v1843 = vmul.f32 %v1805, %v1830
        %v1844 = vmul.f32 %v1806, %v1830
        %v1845 = vmul.f32 %v1807, %v1830
        %v1846 = vmul.f32 %v1808, %v1830
        %v1847 = vmul.f32 %v1809, %v1830
        %v1848 = vmul.f32 %v1810, %v1830
        %v1849 = vmul.f32 %v1811, %v1830
        %v1850 = vmul.f32 %v1812, %v1830
        %v1851 = vmul.f32 %v1813, %v1830
        %v1852 = vmul.f32 %v1814, %v1830
        %v1853 = vmul.f32 %v1815, %v1830
        %v1854 = vmul.f32 %v1816, %v1830
        %v1855 = vmul.f32 %v1817, %v1830
        %v1856 = vmul.f32 %v1818, %v1830
        %v1857 = vmul.f32 %v1819, %v1830
        %v1858 = vmul.f32 %v1820, %v1830
        %v1859 = vmul.f32 %v1821, %v1830
        %v1860 = vmul.f32 %v1822, %v1830
        %v1861 = vmul.f32 %v1823, %v1830
        %v1862 = vmul.f32 %v1824, %v1830
        %v1863 = vmul.f32 %v1825, %v1830
        %v1864 = vld [vmem:[%s2 + $0x2] sm:$0x1]
        %v1865 = vlaneseq
        %v1866 = vshrl.u32 %v1865, 7
        %v1867 = vsub.s32 0, %v1866
        %v1868 = vrot.slane %v1864, %v1867
        %v1869 = vadd.f32 %v1832, %v1868
        %v1870 = vadd.f32 %v1833, %v1868
        %v1871 = vadd.f32 %v1834, %v1868
        %v1872 = vadd.f32 %v1835, %v1868
        %v1873 = vadd.f32 %v1836, %v1868
        %v1874 = vadd.f32 %v1837, %v1868
        %v1875 = vadd.f32 %v1838, %v1868
        %v1876 = vadd.f32 %v1839, %v1868
        %v1877 = vadd.f32 %v1840, %v1868
        %v1878 = vadd.f32 %v1841, %v1868
        %v1879 = vadd.f32 %v1842, %v1868
        %v1880 = vadd.f32 %v1843, %v1868
        %v1881 = vadd.f32 %v1844, %v1868
        %v1882 = vadd.f32 %v1845, %v1868
        %v1883 = vadd.f32 %v1846, %v1868
        %v1884 = vadd.f32 %v1847, %v1868
        %v1885 = vadd.f32 %v1848, %v1868
        %v1886 = vadd.f32 %v1849, %v1868
        %v1887 = vadd.f32 %v1850, %v1868
        %v1888 = vadd.f32 %v1851, %v1868
        %v1889 = vadd.f32 %v1852, %v1868
        %v1890 = vadd.f32 %v1853, %v1868
        %v1891 = vadd.f32 %v1854, %v1868
        %v1892 = vadd.f32 %v1855, %v1868
        %v1893 = vadd.f32 %v1856, %v1868
        %v1894 = vadd.f32 %v1857, %v1868
        %v1895 = vadd.f32 %v1858, %v1868
        %v1896 = vadd.f32 %v1859, %v1868
        %v1897 = vadd.f32 %v1860, %v1868
        %v1898 = vadd.f32 %v1861, %v1868
        %v1899 = vadd.f32 %v1862, %v1868
        %v1900 = vadd.f32 %v1863, %v1868
        %vm1901 = vcmp.gt.f32.partialorder %v1869, 0.0
        %vm1902 = vcmp.gt.f32.partialorder %v1870, 0.0
        %vm1903 = vcmp.gt.f32.partialorder %v1871, 0.0
        %vm1904 = vcmp.gt.f32.partialorder %v1872, 0.0
        %vm1905 = vcmp.gt.f32.partialorder %v1873, 0.0
        %vm1906 = vcmp.gt.f32.partialorder %v1874, 0.0
        %vm1907 = vcmp.gt.f32.partialorder %v1875, 0.0
        %vm1908 = vcmp.gt.f32.partialorder %v1876, 0.0
        %vm1909 = vcmp.gt.f32.partialorder %v1877, 0.0
        %vm1910 = vcmp.gt.f32.partialorder %v1878, 0.0
        %vm1911 = vcmp.gt.f32.partialorder %v1879, 0.0
        %vm1912 = vcmp.gt.f32.partialorder %v1880, 0.0
        %vm1913 = vcmp.gt.f32.partialorder %v1881, 0.0
        %vm1914 = vcmp.gt.f32.partialorder %v1882, 0.0
        %vm1915 = vcmp.gt.f32.partialorder %v1883, 0.0
        %vm1916 = vcmp.gt.f32.partialorder %v1884, 0.0
        %vm1917 = vcmp.gt.f32.partialorder %v1885, 0.0
        %vm1918 = vcmp.gt.f32.partialorder %v1886, 0.0
        %vm1919 = vcmp.gt.f32.partialorder %v1887, 0.0
        %vm1920 = vcmp.gt.f32.partialorder %v1888, 0.0
        %vm1921 = vcmp.gt.f32.partialorder %v1889, 0.0
        %vm1922 = vcmp.gt.f32.partialorder %v1890, 0.0
        %vm1923 = vcmp.gt.f32.partialorder %v1891, 0.0
        %vm1924 = vcmp.gt.f32.partialorder %v1892, 0.0
        %vm1925 = vcmp.gt.f32.partialorder %v1893, 0.0
        %vm1926 = vcmp.gt.f32.partialorder %v1894, 0.0
        %vm1927 = vcmp.gt.f32.partialorder %v1895, 0.0
        %vm1928 = vcmp.gt.f32.partialorder %v1896, 0.0
        %vm1929 = vcmp.gt.f32.partialorder %v1897, 0.0
        %vm1930 = vcmp.gt.f32.partialorder %v1898, 0.0
        %vm1931 = vcmp.gt.f32.partialorder %v1899, 0.0
        %vm1932 = vcmp.gt.f32.partialorder %v1900, 0.0
        %v1933 = vmul.f32 %v1869, 0.01
        %v1934 = vmul.f32 %v1870, 0.01
        %v1935 = vmul.f32 %v1871, 0.01
        %v1936 = vmul.f32 %v1872, 0.01
        %v1937 = vmul.f32 %v1873, 0.01
        %v1938 = vmul.f32 %v1874, 0.01
        %v1939 = vmul.f32 %v1875, 0.01
        %v1940 = vmul.f32 %v1876, 0.01
        %v1941 = vmul.f32 %v1877, 0.01
        %v1942 = vmul.f32 %v1878, 0.01
        %v1943 = vmul.f32 %v1879, 0.01
        %v1944 = vmul.f32 %v1880, 0.01
        %v1945 = vmul.f32 %v1881, 0.01
        %v1946 = vmul.f32 %v1882, 0.01
        %v1947 = vmul.f32 %v1883, 0.01
        %v1948 = vmul.f32 %v1884, 0.01
        %v1949 = vmul.f32 %v1885, 0.01
        %v1950 = vmul.f32 %v1886, 0.01
        %v1951 = vmul.f32 %v1887, 0.01
        %v1952 = vmul.f32 %v1888, 0.01
        %v1953 = vmul.f32 %v1889, 0.01
        %v1954 = vmul.f32 %v1890, 0.01
        %v1955 = vmul.f32 %v1891, 0.01
        %v1956 = vmul.f32 %v1892, 0.01
        %v1957 = vmul.f32 %v1893, 0.01
        %v1958 = vmul.f32 %v1894, 0.01
        %v1959 = vmul.f32 %v1895, 0.01
        %v1960 = vmul.f32 %v1896, 0.01
        %v1961 = vmul.f32 %v1897, 0.01
        %v1962 = vmul.f32 %v1898, 0.01
        %v1963 = vmul.f32 %v1899, 0.01
        %v1964 = vmul.f32 %v1900, 0.01
        %v1965 = vsel %vm1901, %v1869, %v1933
        %v1966 = vsel %vm1902, %v1870, %v1934
        %v1967 = vsel %vm1903, %v1871, %v1935
        %v1968 = vsel %vm1904, %v1872, %v1936
        %v1969 = vsel %vm1905, %v1873, %v1937
        %v1970 = vsel %vm1906, %v1874, %v1938
        %v1971 = vsel %vm1907, %v1875, %v1939
        %v1972 = vsel %vm1908, %v1876, %v1940
        %v1973 = vsel %vm1909, %v1877, %v1941
        %v1974 = vsel %vm1910, %v1878, %v1942
        %v1975 = vsel %vm1911, %v1879, %v1943
        %v1976 = vsel %vm1912, %v1880, %v1944
        %v1977 = vsel %vm1913, %v1881, %v1945
        %v1978 = vsel %vm1914, %v1882, %v1946
        %v1979 = vsel %vm1915, %v1883, %v1947
        %v1980 = vsel %vm1916, %v1884, %v1948
        %v1981 = vsel %vm1917, %v1885, %v1949
        %v1982 = vsel %vm1918, %v1886, %v1950
        %v1983 = vsel %vm1919, %v1887, %v1951
        %v1984 = vsel %vm1920, %v1888, %v1952
        %v1985 = vsel %vm1921, %v1889, %v1953
        %v1986 = vsel %vm1922, %v1890, %v1954
        %v1987 = vsel %vm1923, %v1891, %v1955
        %v1988 = vsel %vm1924, %v1892, %v1956
        %v1989 = vsel %vm1925, %v1893, %v1957
        %v1990 = vsel %vm1926, %v1894, %v1958
        %v1991 = vsel %vm1927, %v1895, %v1959
        %v1992 = vsel %vm1928, %v1896, %v1960
        %v1993 = vsel %vm1929, %v1897, %v1961
        %v1994 = vsel %vm1930, %v1898, %v1962
        %v1995 = vsel %vm1931, %v1899, %v1963
        %v1996 = vsel %vm1932, %v1900, %v1964
        %1997 = vst [vmem:[%s265] sm:$0xff] %v1965
        %1998 = vst [vmem:[%s265 + $0x8] sm:$0xff] %v1966
        %1999 = vst [vmem:[%s265 + $0x10] sm:$0xff] %v1967
        %2000 = vst [vmem:[%s265 + $0x18] sm:$0xff] %v1968
        %2001 = vst [vmem:[%s265 + $0x20] sm:$0xff] %v1969
        %2002 = vst [vmem:[%s265 + $0x28] sm:$0xff] %v1970
        %2003 = vst [vmem:[%s265 + $0x30] sm:$0xff] %v1971
        %2004 = vst [vmem:[%s265 + $0x38] sm:$0xff] %v1972
        %2005 = vst [vmem:[%s265 + $0x40] sm:$0xff] %v1973
        %2006 = vst [vmem:[%s265 + $0x48] sm:$0xff] %v1974
        %2007 = vst [vmem:[%s265 + $0x50] sm:$0xff] %v1975
        %2008 = vst [vmem:[%s265 + $0x58] sm:$0xff] %v1976
        %2009 = vst [vmem:[%s265 + $0x60] sm:$0xff] %v1977
        %2010 = vst [vmem:[%s265 + $0x68] sm:$0xff] %v1978
        %2011 = vst [vmem:[%s265 + $0x70] sm:$0xff] %v1979
        %2012 = vst [vmem:[%s265 + $0x78] sm:$0xff] %v1980
        %2013 = vst [vmem:[%s265 + $0x80] sm:$0xff] %v1981
        %2014 = vst [vmem:[%s265 + $0x88] sm:$0xff] %v1982
        %2015 = vst [vmem:[%s265 + $0x90] sm:$0xff] %v1983
        %2016 = vst [vmem:[%s265 + $0x98] sm:$0xff] %v1984
        %2017 = vst [vmem:[%s265 + $0xa0] sm:$0xff] %v1985
        %2018 = vst [vmem:[%s265 + $0xa8] sm:$0xff] %v1986
        %2019 = vst [vmem:[%s265 + $0xb0] sm:$0xff] %v1987
        %2020 = vst [vmem:[%s265 + $0xb8] sm:$0xff] %v1988
        %2021 = vst [vmem:[%s265 + $0xc0] sm:$0xff] %v1989
        %2022 = vst [vmem:[%s265 + $0xc8] sm:$0xff] %v1990
        %2023 = vst [vmem:[%s265 + $0xd0] sm:$0xff] %v1991
        %2024 = vst [vmem:[%s265 + $0xd8] sm:$0xff] %v1992
        %2025 = vst [vmem:[%s265 + $0xe0] sm:$0xff] %v1993
        %2026 = vst [vmem:[%s265 + $0xe8] sm:$0xff] %v1994
        %2027 = vst [vmem:[%s265 + $0xf0] sm:$0xff] %v1995
        %2028 = vst [vmem:[%s265 + $0xf8] sm:$0xff] %v1996
      $region48: #{inception_forward.3} parent=35 // pred_fallthru
        _
      %s2029 = smul.u32 %s19, %s20
      %s2030 = smul.u32 32, %s2029
      %p2031 = scmp.lt.s32.totalorder %s2030, 63
      %s2032 = scalar_select %p2031, %s2030, 63
      %s2033 = smul.addr %s2032, 8
      %s2034 = scalar_lea.vmem %s4, %s2033
      // Predicated region
      $region49: #{inception_forward.3} parent=35 // pred_check
        %p2035 = pneg %p149
      $region50: #{inception_forward.3} parent=35 // pred_check_branch
        %2037 = sbr.rel (%p2035) target = $region52
      $region51: #{inception_forward.3} parent=35 // pred_region
        %s2038 = smul.u32 %s19, %s20
        %s2039 = smul.u32 32, %s2038
      $region52: #{inception_forward.3} parent=35 // pred_fallthru
        _
    $region36: #{inception_forward.3} parent=5 // pred_fallthru
      _
    %p2040 = scmp.le.s32.totalorder 2, %s10
    // Predicated region
    $region53: #{inception_forward.3} parent=5 // pred_check
      %p2041 = pneg %p2040
    $region54: #{inception_forward.3} parent=5 // pred_check_branch
      %2043 = sbr.rel (%p2041) target = $region56
    $region55: #{inception_forward.3} parent=5 // pred_region
      %s2044 = ssub.s32 %s10, 2
      // Predicated region
      $region57: #{inception_forward.3} parent=55 // pred_check
        %p2045 = pneg %p155
      $region58: #{inception_forward.3} parent=55 // pred_check_branch
        %2047 = sbr.rel (%p2045) target = $region60
      $region59: #{inception_forward.3} parent=55 // pred_region
        %s2048 = smul.u32 %s21, %s22
        %s2049 = smul.u32 32, %s2048
        %p2050 = scmp.lt.s32.totalorder %s2049, 63
        %s2051 = scalar_select %p2050, %s2049, 63
        %s2052 = smul.addr %s2051, 8
        %s2053 = scalar_lea.vmem %s4, %s2052
      $region60: #{inception_forward.3} parent=55 // pred_fallthru
        _
    $region56: #{inception_forward.3} parent=5 // pred_fallthru
      _
  $region6: #{inception_forward.3} parent=0 // loop_footer
    %s14 = sadd.s32 1, %s10
  $region7: #{inception_forward.3} parent=0 // loop_footer_branch
    %9 = sbr.rel target = $region3
  $region8: #{inception_forward.3} parent=0 // loop_exit
    _

</llo_original>
